<compile_context>
chip_gen: v7x
topology: tpu7x:2x2x1
jax: 0.10.0
libtpu: 0.0.40
codegen_flags: <defaults>
</compile_context>

<pallas_src>
import functools
import math

import jax
import jax.numpy as jnp
from jax import lax
from jax.experimental import pallas as pl
from jax.experimental.pallas import tpu as pltpu


def _block_kernel(x_ref, ln_g_ref, ln_b_ref, wq_ref, wk_ref, wv_ref, wo_ref,
                  bo_ref, w1_ref, b1_ref, w2_ref, b2_ref, out_ref, xs_ref,
                  *, batch, seq, heads):
    layer = pl.program_id(0)
    n_layers = pl.num_programs(0)

    # Layer 0: load the input activations into the resident VMEM state buffer.
    @pl.when(layer == 0)
    def _init():
        xs_ref[...] = x_ref[...]

    x = xs_ref[...]                                   # (B*N, D) float32
    m, d = x.shape

    # ---- PreNorm branch: LayerNorm(dim), eps=1e-5, biased variance ----
    mu = jnp.mean(x, axis=-1, keepdims=True)
    xc = x - mu
    var = jnp.mean(xc * xc, axis=-1, keepdims=True)
    x_ln = xc * lax.rsqrt(var + 1e-5) * ln_g_ref[...] + ln_b_ref[...]

    # ---- Attention: per-head projections (heads on the leading axis) ----
    xh = jnp.broadcast_to(x_ln, (heads, m, d))        # hoisted, reused 3x
    # 1/sqrt(dim_head) is pre-folded into wq at parameter-preparation time.
    q = jnp.einsum('hnd,hdk->hnk', xh, wq_ref[...],
                   preferred_element_type=jnp.float32)   # (H, B*N, dh)
    k = jnp.einsum('hnd,hdk->hnk', xh, wk_ref[...],
                   preferred_element_type=jnp.float32)
    v = jnp.einsum('hnd,hdk->hnk', xh, wv_ref[...],
                   preferred_element_type=jnp.float32)

    # Attention is independent per batch element: static unroll over tiny B,
    # slicing along the sublane (positions) axis, never along lanes.
    ctx = []
    for b in range(batch):
        sl = slice(b * seq, (b + 1) * seq)
        qb, kb, vb = q[:, sl, :], k[:, sl, :], v[:, sl, :]
        dots = jnp.einsum('hnd,hmd->hnm', qb, kb,
                          preferred_element_type=jnp.float32)   # (H, N, N)
        dots = dots - jnp.max(dots, axis=-1, keepdims=True)
        e = jnp.exp(dots)
        denom = jnp.sum(e, axis=-1, keepdims=True)
        attn = e * pl.reciprocal(denom, approx=False)
        ctx.append(jnp.einsum('hnm,hmd->hnd', attn, vb,
                              preferred_element_type=jnp.float32))
    o = jnp.concatenate(ctx, axis=1)                  # (H, B*N, dh)

    # Output projection: sum over heads of o_h @ Wo_h  (== concat(heads) @ Wo).
    proj = jnp.einsum('hnd,hdk->hnk', o, wo_ref[...],
                      preferred_element_type=jnp.float32)        # (H, B*N, D)
    attn_out = jnp.sum(proj, axis=0) + bo_ref[...]

    x = x + attn_out                                  # residual 1

    # ---- FeedForward (no norm for layer_norm_cfg=1): Linear -> GELU -> Linear
    h1 = jnp.dot(x, w1_ref[...], preferred_element_type=jnp.float32) + b1_ref[...]
    h1 = 0.5 * h1 * (1.0 + lax.erf(h1 * (1.0 / math.sqrt(2.0))))
    ff = jnp.dot(h1, w2_ref[...], preferred_element_type=jnp.float32) + b2_ref[...]
    y = x + ff                                        # residual 2

    xs_ref[...] = y                                   # carry state to next layer

    @pl.when(layer == n_layers - 1)
    def _finalize():
        out_ref[...] = y.astype(out_ref.dtype)


# ---------------- one-time parameter preparation ----------------
def prepare_block_params(layer_params, *, heads, dim_head):
    """One-time transform of per-layer PyTorch-style weights into the stacked,
    per-head layout the fused kernel consumes (scale folded into Wq)."""
    inner = heads * dim_head
    scale = dim_head ** (-0.5)
    L = len(layer_params)

    def stack(i):
        return jnp.stack([jnp.asarray(p[i], jnp.float32) for p in layer_params])

    ln_g = stack(0).reshape(L, 1, -1)
    ln_b = stack(1).reshape(L, 1, -1)
    wqkv = stack(2)                                   # (L, D, 3*inner)
    D = wqkv.shape[1]

    def per_head(w):                                  # (L, D, inner) -> (L, H, D, dh)
        return w.reshape(L, D, heads, dim_head).transpose(0, 2, 1, 3)

    wq = per_head(wqkv[:, :, 0 * inner:1 * inner]) * scale
    wk = per_head(wqkv[:, :, 1 * inner:2 * inner])
    wv = per_head(wqkv[:, :, 2 * inner:3 * inner])
    wo = stack(3).reshape(L, heads, dim_head, D)      # (L, inner, D) -> (L, H, dh, D)
    bo = stack(4).reshape(L, 1, -1)
    w1 = stack(5)                                     # (L, D, mlp_dim)
    b1 = stack(6).reshape(L, 1, -1)
    w2 = stack(7)                                     # (L, mlp_dim, D)
    b2 = stack(8).reshape(L, 1, -1)
    return (ln_g, ln_b, wq, wk, wv, wo, bo, w1, b1, w2, b2)


def transformer_block(x, stacked_params, *, heads):
    B, N, D = x.shape
    L = stacked_params[0].shape[0]
    M = B * N
    x2 = x.reshape(M, D)                              # whole batch, lane-dense D

    kernel = functools.partial(_block_kernel, batch=B, seq=N, heads=heads)

    def stacked_spec(p):
        n_rest = p.ndim - 1
        return pl.BlockSpec((None,) + tuple(p.shape[1:]),
                            lambda l, _n=n_rest: (l,) + (0,) * _n)

    out2 = pl.pallas_call(
        kernel,
        out_shape=jax.ShapeDtypeStruct((M, D), x.dtype),
        grid=(L,),                                    # sequential over layers
        in_specs=[pl.BlockSpec((M, D), lambda l: (0, 0))]
                 + [stacked_spec(p) for p in stacked_params],
        out_specs=pl.BlockSpec((M, D), lambda l: (0, 0)),
        scratch_shapes=[pltpu.VMEM((M, D), jnp.float32)],   # resident activation
        compiler_params=pltpu.CompilerParams(dimension_semantics=("arbitrary",)),
    )(x2, *stacked_params)
    return out2.reshape(B, N, D)


# ---------------- pure-JAX reference (for correctness check) ----------------
def _ref_layer(x, params, *, heads, dim_head):
    ln_g, ln_b, wqkv, wo, bo, w1, b1, w2, b2 = params
    inner = heads * dim_head
    scale = dim_head ** (-0.5)

    mu = jnp.mean(x, axis=-1, keepdims=True)
    var = jnp.mean((x - mu) ** 2, axis=-1, keepdims=True)
    x_ln = (x - mu) / jnp.sqrt(var + 1e-5) * ln_g + ln_b

    qkv = x_ln @ wqkv
    q, k, v = jnp.split(qkv, 3, axis=-1)
    B, N, _ = x.shape
    q = q.reshape(B, N, heads, dim_head).transpose(0, 2, 1, 3)
    k = k.reshape(B, N, heads, dim_head).transpose(0, 2, 1, 3)
    v = v.reshape(B, N, heads, dim_head).transpose(0, 2, 1, 3)
    dots = jnp.einsum("bhnd,bhmd->bhnm", q, k) * scale
    attn = jax.nn.softmax(dots, axis=-1)
    o = jnp.einsum("bhnm,bhmd->bhnd", attn, v).transpose(0, 2, 1, 3).reshape(B, N, inner)
    x = x + (o @ wo + bo)

    h1 = x @ w1 + b1
    h1 = 0.5 * h1 * (1.0 + lax.erf(h1 / math.sqrt(2.0)))
    return x + (h1 @ w2 + b2)


def _ref_block(x, layer_params, *, heads, dim_head):
    for p in layer_params:
        x = _ref_layer(x, p, heads=heads, dim_head=dim_head)
    return x


# ---------------- deterministic parameter init (PyTorch-style shapes) --------
def init_layer_params(key, dim, heads, dim_head, mlp_dim):
    inner = heads * dim_head
    ks = jax.random.split(key, 6)
    ln_g = jnp.ones((dim,), jnp.float32)
    ln_b = jnp.zeros((dim,), jnp.float32)
    wqkv = 0.05 * jax.random.normal(ks[0], (dim, 3 * inner), jnp.float32)
    wo = 0.05 * jax.random.normal(ks[1], (inner, dim), jnp.float32)
    bo = 0.05 * jax.random.normal(ks[2], (dim,), jnp.float32)
    w1 = 0.05 * jax.random.normal(ks[3], (dim, mlp_dim), jnp.float32)
    b1 = 0.05 * jax.random.normal(ks[4], (mlp_dim,), jnp.float32)
    w2 = 0.05 * jax.random.normal(ks[5], (mlp_dim, dim), jnp.float32)
    b2 = jnp.zeros((dim,), jnp.float32)
    return (ln_g, ln_b, wqkv, wo, bo, w1, b1, w2, b2)


if __name__ == "__main__":
    # Transformer_block(dim=32, depth=2, heads=4, dim_head=8, mlp_dim=64,
    #                   layer_norm_cfg=1, dropout=0.0)
    B, N, dim = 2, 8, 32
    depth, heads, dim_head, mlp_dim = 2, 4, 8, 64

    root = jax.random.PRNGKey(0)
    x_key, *layer_keys = jax.random.split(root, depth + 1)
    x = jax.random.normal(x_key, (B, N, dim), jnp.float32)
    layer_params = [init_layer_params(k, dim, heads, dim_head, mlp_dim)
                    for k in layer_keys]

    # one-time weight transform (stacking, per-head layout, scale folding)
    stacked = prepare_block_params(layer_params, heads=heads, dim_head=dim_head)

    out = transformer_block(x, stacked, heads=heads)
    out = jax.block_until_ready(out)

    ref = _ref_block(x, layer_params, heads=heads, dim_head=dim_head)
    assert out.shape == (B, N, dim)
    assert jnp.allclose(out, ref, atol=1e-4, rtol=1e-4), \
        "Pallas kernel mismatch vs JAX reference"

    print("KERNEL_OK")
</pallas_src>

<mosaic_0001>
module attributes {stable_mosaic.version = 11 : i64} {
  func.func @_block_kernel(%arg0: i32, %arg1: memref<16x32xf32, #tpu.memory_space<vmem>>, %arg2: memref<1x1x32xf32, #tpu.memory_space<vmem>>, %arg3: memref<1x1x32xf32, #tpu.memory_space<vmem>>, %arg4: memref<1x4x32x8xf32, #tpu.memory_space<vmem>>, %arg5: memref<1x4x32x8xf32, #tpu.memory_space<vmem>>, %arg6: memref<1x4x32x8xf32, #tpu.memory_space<vmem>>, %arg7: memref<1x4x8x32xf32, #tpu.memory_space<vmem>>, %arg8: memref<1x1x32xf32, #tpu.memory_space<vmem>>, %arg9: memref<1x32x64xf32, #tpu.memory_space<vmem>>, %arg10: memref<1x1x64xf32, #tpu.memory_space<vmem>>, %arg11: memref<1x64x32xf32, #tpu.memory_space<vmem>>, %arg12: memref<1x1x32xf32, #tpu.memory_space<vmem>>, %arg13: memref<16x32xf32, #tpu.memory_space<vmem>>, %arg14: memref<16x32xf32, #tpu.memory_space<vmem>>) attributes {dimension_semantics = [#tpu.dimension_semantics<arbitrary>], iteration_bounds = array<i64: 2>, scalar_prefetch = 0 : i64, scratch_operands = 1 : i64, tpu.core_type = #tpu.core_type<tc>, window_params = [{pipeline_mode = #tpu.pipeline_mode<synchronous>, transform_indices = @transform_0, window_bounds = array<i64: 16, 32>}, {transform_indices = @transform_1, window_bounds = array<i64: 1, 1, 32>}, {transform_indices = @transform_2, window_bounds = array<i64: 1, 1, 32>}, {transform_indices = @transform_3, window_bounds = array<i64: 1, 4, 32, 8>}, {transform_indices = @transform_4, window_bounds = array<i64: 1, 4, 32, 8>}, {transform_indices = @transform_5, window_bounds = array<i64: 1, 4, 32, 8>}, {transform_indices = @transform_6, window_bounds = array<i64: 1, 4, 8, 32>}, {transform_indices = @transform_7, window_bounds = array<i64: 1, 1, 32>}, {transform_indices = @transform_8, window_bounds = array<i64: 1, 32, 64>}, {transform_indices = @transform_9, window_bounds = array<i64: 1, 1, 64>}, {transform_indices = @transform_10, window_bounds = array<i64: 1, 64, 32>}, {transform_indices = @transform_11, window_bounds = array<i64: 1, 1, 32>}, {pipeline_mode = #tpu.pipeline_mode<synchronous>, transform_indices = @transform_12, window_bounds = array<i64: 16, 32>}]} {
    %c0_i32 = arith.constant 0 : i32
    %0 = arith.cmpi eq, %arg0, %c0_i32 : i32
    %1 = arith.extui %0 : i1 to i32
    %c0_i32_0 = arith.constant 0 : i32
    %2 = arith.cmpi ne, %1, %c0_i32_0 : i32
    scf.if %2 {
      %c0_64 = arith.constant 0 : index
      %c0_65 = arith.constant 0 : index
      %106 = vector.load %arg1[%c0_64, %c0_65] : memref<16x32xf32, #tpu.memory_space<vmem>>, vector<16x32xf32>
      %c0_66 = arith.constant 0 : index
      %c0_67 = arith.constant 0 : index
      %107 = vector.load %arg14[%c0_66, %c0_67] : memref<16x32xf32, #tpu.memory_space<vmem>>, vector<16x32xf32>
      tpu.vector_store %arg14[%c0_66, %c0_67], %106 {strides = array<i32>} : memref<16x32xf32, #tpu.memory_space<vmem>>, vector<16x32xf32>,
    } else {
    }
    %c0 = arith.constant 0 : index
    %c0_1 = arith.constant 0 : index
    %3 = vector.load %arg14[%c0, %c0_1] : memref<16x32xf32, #tpu.memory_space<vmem>>, vector<16x32xf32>
    %cst = arith.constant dense<0.000000e+00> : vector<16xf32>
    %4 = vector.multi_reduction <add>, %3, %cst [1] : vector<16x32xf32> to vector<16xf32>
    %5 = vector.shape_cast %4 : vector<16xf32> to vector<16x1xf32>
    %cst_2 = arith.constant 3.200000e+01 : f32
    %6 = vector.broadcast %cst_2 : f32 to vector<16x1xf32>
    %7 = arith.divf %5, %6 : vector<16x1xf32>
    %8 = vector.broadcast %7 : vector<16x1xf32> to vector<16x32xf32>
    %9 = arith.subf %3, %8 : vector<16x32xf32>
    %10 = arith.mulf %9, %9 : vector<16x32xf32>
    %cst_3 = arith.constant dense<0.000000e+00> : vector<16xf32>
    %11 = vector.multi_reduction <add>, %10, %cst_3 [1] : vector<16x32xf32> to vector<16xf32>
    %12 = vector.shape_cast %11 : vector<16xf32> to vector<16x1xf32>
    %cst_4 = arith.constant 3.200000e+01 : f32
    %13 = vector.broadcast %cst_4 : f32 to vector<16x1xf32>
    %14 = arith.divf %12, %13 : vector<16x1xf32>
    %cst_5 = arith.constant 9.99999974E-6 : f32
    %15 = vector.broadcast %cst_5 : f32 to vector<16x1xf32>
    %16 = arith.addf %14, %15 : vector<16x1xf32>
    %17 = math.rsqrt %16 : vector<16x1xf32>
    %18 = vector.broadcast %17 : vector<16x1xf32> to vector<16x32xf32>
    %19 = arith.mulf %9, %18 : vector<16x32xf32>
    %c0_6 = arith.constant 0 : index
    %c0_7 = arith.constant 0 : index
    %c0_8 = arith.constant 0 : index
    %20 = vector.load %arg2[%c0_6, %c0_7, %c0_8] : memref<1x1x32xf32, #tpu.memory_space<vmem>>, vector<1x1x32xf32>
    %21 = vector.shape_cast %20 : vector<1x1x32xf32> to vector<1x32xf32>
    %22 = vector.broadcast %21 : vector<1x32xf32> to vector<16x32xf32>
    %23 = arith.mulf %19, %22 : vector<16x32xf32>
    %c0_9 = arith.constant 0 : index
    %c0_10 = arith.constant 0 : index
    %c0_11 = arith.constant 0 : index
    %24 = vector.load %arg3[%c0_9, %c0_10, %c0_11] : memref<1x1x32xf32, #tpu.memory_space<vmem>>, vector<1x1x32xf32>
    %25 = vector.shape_cast %24 : vector<1x1x32xf32> to vector<1x32xf32>
    %26 = vector.broadcast %25 : vector<1x32xf32> to vector<16x32xf32>
    %27 = arith.addf %23, %26 : vector<16x32xf32>
    %28 = vector.shape_cast %27 : vector<16x32xf32> to vector<1x16x32xf32>
    %29 = vector.broadcast %28 : vector<1x16x32xf32> to vector<4x16x32xf32>
    %c0_12 = arith.constant 0 : index
    %c0_13 = arith.constant 0 : index
    %c0_14 = arith.constant 0 : index
    %c0_15 = arith.constant 0 : index
    %30 = vector.load %arg4[%c0_12, %c0_13, %c0_14, %c0_15] : memref<1x4x32x8xf32, #tpu.memory_space<vmem>>, vector<1x4x32x8xf32>
    %31 = vector.shape_cast %30 : vector<1x4x32x8xf32> to vector<4x32x8xf32>
    "tpu.trace_start"() <{level = 10 : i32, message = "hnd,hdk->hnk"}> : () -> ()
    %cst_16 = arith.constant dense<0.000000e+00> : vector<4x16x8xf32>
    %32 = tpu.matmul %29, %31, %cst_16 {dimension_numbers = #tpu.dot_dimension_numbers<[2], [1], [1], [2], [0, 0, 0, 1, 1, 2], [0], [0]>} : vector<4x16x32xf32>, vector<4x32x8xf32>, vector<4x16x8xf32> -> vector<4x16x8xf32>
    "tpu.trace_stop"() : () -> ()
    %c0_17 = arith.constant 0 : index
    %c0_18 = arith.constant 0 : index
    %c0_19 = arith.constant 0 : index
    %c0_20 = arith.constant 0 : index
    %33 = vector.load %arg5[%c0_17, %c0_18, %c0_19, %c0_20] : memref<1x4x32x8xf32, #tpu.memory_space<vmem>>, vector<1x4x32x8xf32>
    %34 = vector.shape_cast %33 : vector<1x4x32x8xf32> to vector<4x32x8xf32>
    "tpu.trace_start"() <{level = 10 : i32, message = "hnd,hdk->hnk"}> : () -> ()
    %cst_21 = arith.constant dense<0.000000e+00> : vector<4x16x8xf32>
    %35 = tpu.matmul %29, %34, %cst_21 {dimension_numbers = #tpu.dot_dimension_numbers<[2], [1], [1], [2], [0, 0, 0, 1, 1, 2], [0], [0]>} : vector<4x16x32xf32>, vector<4x32x8xf32>, vector<4x16x8xf32> -> vector<4x16x8xf32>
    "tpu.trace_stop"() : () -> ()
    %c0_22 = arith.constant 0 : index
    %c0_23 = arith.constant 0 : index
    %c0_24 = arith.constant 0 : index
    %c0_25 = arith.constant 0 : index
    %36 = vector.load %arg6[%c0_22, %c0_23, %c0_24, %c0_25] : memref<1x4x32x8xf32, #tpu.memory_space<vmem>>, vector<1x4x32x8xf32>
    %37 = vector.shape_cast %36 : vector<1x4x32x8xf32> to vector<4x32x8xf32>
    "tpu.trace_start"() <{level = 10 : i32, message = "hnd,hdk->hnk"}> : () -> ()
    %cst_26 = arith.constant dense<0.000000e+00> : vector<4x16x8xf32>
    %38 = tpu.matmul %29, %37, %cst_26 {dimension_numbers = #tpu.dot_dimension_numbers<[2], [1], [1], [2], [0, 0, 0, 1, 1, 2], [0], [0]>} : vector<4x16x32xf32>, vector<4x32x8xf32>, vector<4x16x8xf32> -> vector<4x16x8xf32>
    "tpu.trace_stop"() : () -> ()
    %39 = vector.extract_strided_slice %32 {offsets = [0, 0, 0], sizes = [4, 8, 8], strides = [1, 1, 1]} : vector<4x16x8xf32> to vector<4x8x8xf32>
    %40 = vector.extract_strided_slice %35 {offsets = [0, 0, 0], sizes = [4, 8, 8], strides = [1, 1, 1]} : vector<4x16x8xf32> to vector<4x8x8xf32>
    %41 = vector.extract_strided_slice %38 {offsets = [0, 0, 0], sizes = [4, 8, 8], strides = [1, 1, 1]} : vector<4x16x8xf32> to vector<4x8x8xf32>
    "tpu.trace_start"() <{level = 10 : i32, message = "hnd,hmd->hnm"}> : () -> ()
    %cst_27 = arith.constant dense<0.000000e+00> : vector<4x8x8xf32>
    %42 = tpu.matmul %39, %40, %cst_27 {dimension_numbers = #tpu.dot_dimension_numbers<[2], [2], [1], [1], [0, 0, 0, 1, 1, 1], [0], [0]>} : vector<4x8x8xf32>, vector<4x8x8xf32>, vector<4x8x8xf32> -> vector<4x8x8xf32>
    "tpu.trace_stop"() : () -> ()
    %cst_28 = arith.constant dense<0xFF800000> : vector<4x8xf32>
    %43 = vector.multi_reduction <maximumf>, %42, %cst_28 [2] : vector<4x8x8xf32> to vector<4x8xf32>
    %44 = vector.shape_cast %43 : vector<4x8xf32> to vector<4x8x1xf32>
    %45 = vector.broadcast %44 : vector<4x8x1xf32> to vector<4x8x8xf32>
    %46 = arith.subf %42, %45 : vector<4x8x8xf32>
    %47 = math.exp %46 : vector<4x8x8xf32>
    %cst_29 = arith.constant dense<0.000000e+00> : vector<4x8xf32>
    %48 = vector.multi_reduction <add>, %47, %cst_29 [2] : vector<4x8x8xf32> to vector<4x8xf32>
    %49 = vector.shape_cast %48 : vector<4x8xf32> to vector<4x8x1xf32>
    %50 = tpu.reciprocal %49 : vector<4x8x1xf32> -> vector<4x8x1xf32>
    %51 = vector.broadcast %50 : vector<4x8x1xf32> to vector<4x8x8xf32>
    %52 = arith.mulf %47, %51 : vector<4x8x8xf32>
    "tpu.trace_start"() <{level = 10 : i32, message = "hnm,hmd->hnd"}> : () -> ()
    %cst_30 = arith.constant dense<0.000000e+00> : vector<4x8x8xf32>
    %53 = tpu.matmul %52, %41, %cst_30 {dimension_numbers = #tpu.dot_dimension_numbers<[2], [1], [1], [2], [0, 0, 0, 1, 1, 2], [0], [0]>} : vector<4x8x8xf32>, vector<4x8x8xf32>, vector<4x8x8xf32> -> vector<4x8x8xf32>
    "tpu.trace_stop"() : () -> ()
    %54 = vector.extract_strided_slice %32 {offsets = [0, 8, 0], sizes = [4, 8, 8], strides = [1, 1, 1]} : vector<4x16x8xf32> to vector<4x8x8xf32>
    %55 = vector.extract_strided_slice %35 {offsets = [0, 8, 0], sizes = [4, 8, 8], strides = [1, 1, 1]} : vector<4x16x8xf32> to vector<4x8x8xf32>
    %56 = vector.extract_strided_slice %38 {offsets = [0, 8, 0], sizes = [4, 8, 8], strides = [1, 1, 1]} : vector<4x16x8xf32> to vector<4x8x8xf32>
    "tpu.trace_start"() <{level = 10 : i32, message = "hnd,hmd->hnm"}> : () -> ()
    %cst_31 = arith.constant dense<0.000000e+00> : vector<4x8x8xf32>
    %57 = tpu.matmul %54, %55, %cst_31 {dimension_numbers = #tpu.dot_dimension_numbers<[2], [2], [1], [1], [0, 0, 0, 1, 1, 1], [0], [0]>} : vector<4x8x8xf32>, vector<4x8x8xf32>, vector<4x8x8xf32> -> vector<4x8x8xf32>
    "tpu.trace_stop"() : () -> ()
    %cst_32 = arith.constant dense<0xFF800000> : vector<4x8xf32>
    %58 = vector.multi_reduction <maximumf>, %57, %cst_32 [2] : vector<4x8x8xf32> to vector<4x8xf32>
    %59 = vector.shape_cast %58 : vector<4x8xf32> to vector<4x8x1xf32>
    %60 = vector.broadcast %59 : vector<4x8x1xf32> to vector<4x8x8xf32>
    %61 = arith.subf %57, %60 : vector<4x8x8xf32>
    %62 = math.exp %61 : vector<4x8x8xf32>
    %cst_33 = arith.constant dense<0.000000e+00> : vector<4x8xf32>
    %63 = vector.multi_reduction <add>, %62, %cst_33 [2] : vector<4x8x8xf32> to vector<4x8xf32>
    %64 = vector.shape_cast %63 : vector<4x8xf32> to vector<4x8x1xf32>
    %65 = tpu.reciprocal %64 : vector<4x8x1xf32> -> vector<4x8x1xf32>
    %66 = vector.broadcast %65 : vector<4x8x1xf32> to vector<4x8x8xf32>
    %67 = arith.mulf %62, %66 : vector<4x8x8xf32>
    "tpu.trace_start"() <{level = 10 : i32, message = "hnm,hmd->hnd"}> : () -> ()
    %cst_34 = arith.constant dense<0.000000e+00> : vector<4x8x8xf32>
    %68 = tpu.matmul %67, %56, %cst_34 {dimension_numbers = #tpu.dot_dimension_numbers<[2], [1], [1], [2], [0, 0, 0, 1, 1, 2], [0], [0]>} : vector<4x8x8xf32>, vector<4x8x8xf32>, vector<4x8x8xf32> -> vector<4x8x8xf32>
    "tpu.trace_stop"() : () -> ()
    %69 = tpu.concatenate %53, %68 in 1 : vector<4x8x8xf32>, vector<4x8x8xf32> -> vector<4x16x8xf32>
    %c0_35 = arith.constant 0 : index
    %c0_36 = arith.constant 0 : index
    %c0_37 = arith.constant 0 : index
    %c0_38 = arith.constant 0 : index
    %70 = vector.load %arg7[%c0_35, %c0_36, %c0_37, %c0_38] : memref<1x4x8x32xf32, #tpu.memory_space<vmem>>, vector<1x4x8x32xf32>
    %71 = vector.shape_cast %70 : vector<1x4x8x32xf32> to vector<4x8x32xf32>
    "tpu.trace_start"() <{level = 10 : i32, message = "hnd,hdk->hnk"}> : () -> ()
    %cst_39 = arith.constant dense<0.000000e+00> : vector<4x16x32xf32>
    %72 = tpu.matmul %69, %71, %cst_39 {dimension_numbers = #tpu.dot_dimension_numbers<[2], [1], [1], [2], [0, 0, 0, 1, 1, 2], [0], [0]>} : vector<4x16x8xf32>, vector<4x8x32xf32>, vector<4x16x32xf32> -> vector<4x16x32xf32>
    "tpu.trace_stop"() : () -> ()
    %cst_40 = arith.constant dense<0.000000e+00> : vector<16x32xf32>
    %73 = vector.multi_reduction <add>, %72, %cst_40 [0] : vector<4x16x32xf32> to vector<16x32xf32>
    %c0_41 = arith.constant 0 : index
    %c0_42 = arith.constant 0 : index
    %c0_43 = arith.constant 0 : index
    %74 = vector.load %arg8[%c0_41, %c0_42, %c0_43] : memref<1x1x32xf32, #tpu.memory_space<vmem>>, vector<1x1x32xf32>
    %75 = vector.shape_cast %74 : vector<1x1x32xf32> to vector<1x32xf32>
    %76 = vector.broadcast %75 : vector<1x32xf32> to vector<16x32xf32>
    %77 = arith.addf %73, %76 : vector<16x32xf32>
    %78 = arith.addf %3, %77 : vector<16x32xf32>
    %c0_44 = arith.constant 0 : index
    %c0_45 = arith.constant 0 : index
    %c0_46 = arith.constant 0 : index
    %79 = vector.load %arg9[%c0_44, %c0_45, %c0_46] : memref<1x32x64xf32, #tpu.memory_space<vmem>>, vector<1x32x64xf32>
    %80 = vector.shape_cast %79 : vector<1x32x64xf32> to vector<32x64xf32>
    %cst_47 = arith.constant dense<0.000000e+00> : vector<16x64xf32>
    %81 = tpu.matmul %78, %80, %cst_47 {dimension_numbers = #tpu.dot_dimension_numbers<[1], [0], [0], [1], [0, 0, 1, 1], [], []>} : vector<16x32xf32>, vector<32x64xf32>, vector<16x64xf32> -> vector<16x64xf32>
    %c0_48 = arith.constant 0 : index
    %c0_49 = arith.constant 0 : index
    %c0_50 = arith.constant 0 : index
    %82 = vector.load %arg10[%c0_48, %c0_49, %c0_50] : memref<1x1x64xf32, #tpu.memory_space<vmem>>, vector<1x1x64xf32>
    %83 = vector.shape_cast %82 : vector<1x1x64xf32> to vector<1x64xf32>
    %84 = vector.broadcast %83 : vector<1x64xf32> to vector<16x64xf32>
    %85 = arith.addf %81, %84 : vector<16x64xf32>
    %cst_51 = arith.constant 5.000000e-01 : f32
    %86 = vector.broadcast %cst_51 : f32 to vector<16x64xf32>
    %87 = arith.mulf %86, %85 : vector<16x64xf32>
    %cst_52 = arith.constant 0.707106769 : f32
    %88 = vector.broadcast %cst_52 : f32 to vector<16x64xf32>
    %89 = arith.mulf %85, %88 : vector<16x64xf32>
    %90 = math.erf %89 : vector<16x64xf32>
    %cst_53 = arith.constant 1.000000e+00 : f32
    %91 = vector.broadcast %cst_53 : f32 to vector<16x64xf32>
    %92 = arith.addf %91, %90 : vector<16x64xf32>
    %93 = arith.mulf %87, %92 : vector<16x64xf32>
    %c0_54 = arith.constant 0 : index
    %c0_55 = arith.constant 0 : index
    %c0_56 = arith.constant 0 : index
    %94 = vector.load %arg11[%c0_54, %c0_55, %c0_56] : memref<1x64x32xf32, #tpu.memory_space<vmem>>, vector<1x64x32xf32>
    %95 = vector.shape_cast %94 : vector<1x64x32xf32> to vector<64x32xf32>
    %cst_57 = arith.constant dense<0.000000e+00> : vector<16x32xf32>
    %96 = tpu.matmul %93, %95, %cst_57 {dimension_numbers = #tpu.dot_dimension_numbers<[1], [0], [0], [1], [0, 0, 1, 1], [], []>} : vector<16x64xf32>, vector<64x32xf32>, vector<16x32xf32> -> vector<16x32xf32>
    %c0_58 = arith.constant 0 : index
    %c0_59 = arith.constant 0 : index
    %c0_60 = arith.constant 0 : index
    %97 = vector.load %arg12[%c0_58, %c0_59, %c0_60] : memref<1x1x32xf32, #tpu.memory_space<vmem>>, vector<1x1x32xf32>
    %98 = vector.shape_cast %97 : vector<1x1x32xf32> to vector<1x32xf32>
    %99 = vector.broadcast %98 : vector<1x32xf32> to vector<16x32xf32>
    %100 = arith.addf %96, %99 : vector<16x32xf32>
    %101 = arith.addf %78, %100 : vector<16x32xf32>
    %c0_61 = arith.constant 0 : index
    %c0_62 = arith.constant 0 : index
    %102 = vector.load %arg14[%c0_61, %c0_62] : memref<16x32xf32, #tpu.memory_space<vmem>>, vector<16x32xf32>
    tpu.vector_store %arg14[%c0_61, %c0_62], %101 {strides = array<i32>} : memref<16x32xf32, #tpu.memory_space<vmem>>, vector<16x32xf32>,
    %c1_i32 = arith.constant 1 : i32
    %103 = arith.cmpi eq, %arg0, %c1_i32 : i32
    %104 = arith.extui %103 : i1 to i32
    %c0_i32_63 = arith.constant 0 : i32
    %105 = arith.cmpi ne, %104, %c0_i32_63 : i32
    scf.if %105 {
      %c0_64 = arith.constant 0 : index
      %c0_65 = arith.constant 0 : index
      %106 = vector.load %arg13[%c0_64, %c0_65] : memref<16x32xf32, #tpu.memory_space<vmem>>, vector<16x32xf32>
      tpu.vector_store %arg13[%c0_64, %c0_65], %101 {strides = array<i32>} : memref<16x32xf32, #tpu.memory_space<vmem>>, vector<16x32xf32>,
    } else {
    }
    return
  }
  func.func @transform_0(%arg0: i32) -> (i32, i32) {
    %c0_i32 = arith.constant 0 : i32
    %c0_i32_0 = arith.constant 0 : i32
    %c0_i32_1 = arith.constant 0 : i32
    return %c0_i32, %c0_i32_0 : i32, i32
  }
  func.func @transform_1(%arg0: i32) -> (i32, i32, i32) {
    %c0_i32 = arith.constant 0 : i32
    %c0_i32_0 = arith.constant 0 : i32
    %c0_i32_1 = arith.constant 0 : i32
    return %arg0, %c0_i32, %c0_i32_0 : i32, i32, i32
  }
  func.func @transform_2(%arg0: i32) -> (i32, i32, i32) {
    %c0_i32 = arith.constant 0 : i32
    %c0_i32_0 = arith.constant 0 : i32
    %c0_i32_1 = arith.constant 0 : i32
    return %arg0, %c0_i32, %c0_i32_0 : i32, i32, i32
  }
  func.func @transform_3(%arg0: i32) -> (i32, i32, i32, i32) {
    %c0_i32 = arith.constant 0 : i32
    %c0_i32_0 = arith.constant 0 : i32
    %c0_i32_1 = arith.constant 0 : i32
    %c0_i32_2 = arith.constant 0 : i32
    return %arg0, %c0_i32, %c0_i32_0, %c0_i32_1 : i32, i32, i32, i32
  }
  func.func @transform_4(%arg0: i32) -> (i32, i32, i32, i32) {
    %c0_i32 = arith.constant 0 : i32
    %c0_i32_0 = arith.constant 0 : i32
    %c0_i32_1 = arith.constant 0 : i32
    %c0_i32_2 = arith.constant 0 : i32
    return %arg0, %c0_i32, %c0_i32_0, %c0_i32_1 : i32, i32, i32, i32
  }
  func.func @transform_5(%arg0: i32) -> (i32, i32, i32, i32) {
    %c0_i32 = arith.constant 0 : i32
    %c0_i32_0 = arith.constant 0 : i32
    %c0_i32_1 = arith.constant 0 : i32
    %c0_i32_2 = arith.constant 0 : i32
    return %arg0, %c0_i32, %c0_i32_0, %c0_i32_1 : i32, i32, i32, i32
  }
  func.func @transform_6(%arg0: i32) -> (i32, i32, i32, i32) {
    %c0_i32 = arith.constant 0 : i32
    %c0_i32_0 = arith.constant 0 : i32
    %c0_i32_1 = arith.constant 0 : i32
    %c0_i32_2 = arith.constant 0 : i32
    return %arg0, %c0_i32, %c0_i32_0, %c0_i32_1 : i32, i32, i32, i32
  }
  func.func @transform_7(%arg0: i32) -> (i32, i32, i32) {
    %c0_i32 = arith.constant 0 : i32
    %c0_i32_0 = arith.constant 0 : i32
    %c0_i32_1 = arith.constant 0 : i32
    return %arg0, %c0_i32, %c0_i32_0 : i32, i32, i32
  }
  func.func @transform_8(%arg0: i32) -> (i32, i32, i32) {
    %c0_i32 = arith.constant 0 : i32
    %c0_i32_0 = arith.constant 0 : i32
    %c0_i32_1 = arith.constant 0 : i32
    return %arg0, %c0_i32, %c0_i32_0 : i32, i32, i32
  }
  func.func @transform_9(%arg0: i32) -> (i32, i32, i32) {
    %c0_i32 = arith.constant 0 : i32
    %c0_i32_0 = arith.constant 0 : i32
    %c0_i32_1 = arith.constant 0 : i32
    return %arg0, %c0_i32, %c0_i32_0 : i32, i32, i32
  }
  func.func @transform_10(%arg0: i32) -> (i32, i32, i32) {
    %c0_i32 = arith.constant 0 : i32
    %c0_i32_0 = arith.constant 0 : i32
    %c0_i32_1 = arith.constant 0 : i32
    return %arg0, %c0_i32, %c0_i32_0 : i32, i32, i32
  }
  func.func @transform_11(%arg0: i32) -> (i32, i32, i32) {
    %c0_i32 = arith.constant 0 : i32
    %c0_i32_0 = arith.constant 0 : i32
    %c0_i32_1 = arith.constant 0 : i32
    return %arg0, %c0_i32, %c0_i32_0 : i32, i32, i32
  }
  func.func @transform_12(%arg0: i32) -> (i32, i32) {
    %c0_i32 = arith.constant 0 : i32
    %c0_i32_0 = arith.constant 0 : i32
    %c0_i32_1 = arith.constant 0 : i32
    return %c0_i32, %c0_i32_0 : i32, i32
  }
}

</mosaic_0001>

<llo_original>
// kernel: tpu_custom_call.1
$region0: #{tpu_custom_call.1}
  #allocation0 [shape = 'u32[]', space=smem, size = 0x4, offset = 0x4, fixed_abs, tag = 'smem constant byte address 0x4 - core index']
  #allocation1 [shape = 'u32[144,128]{1,0:T(1,128)}', space=vmem, size = 0x12000, scoped, tag = 'internal scratch']
  #allocation2 [shape = 'f32[16,32]{1,0:T(8,128)}', space=vmem, size = 0x2000, scoped, tag = 'scratch operand']
  %s0 = inlined_call_operand.vmem [shape: f32[16,32], index: 0, kind: input, shape index: {}]
  %s1 = inlined_call_operand.vmem [shape: f32[2,1,32], index: 1, kind: input, shape index: {}]
  %s2 = inlined_call_operand.vmem [shape: f32[2,1,32], index: 2, kind: input, shape index: {}]
  %s3 = inlined_call_operand.vmem [shape: f32[2,4,32,8], index: 3, kind: input, shape index: {}]
  %s4 = inlined_call_operand.vmem [shape: f32[2,4,32,8], index: 4, kind: input, shape index: {}]
  %s5 = inlined_call_operand.vmem [shape: f32[2,4,32,8], index: 5, kind: input, shape index: {}]
  %s6 = inlined_call_operand.vmem [shape: f32[2,4,8,32], index: 6, kind: input, shape index: {}]
  %s7 = inlined_call_operand.vmem [shape: f32[2,1,32], index: 7, kind: input, shape index: {}]
  %s8 = inlined_call_operand.vmem [shape: f32[2,32,64], index: 8, kind: input, shape index: {}]
  %s9 = inlined_call_operand.vmem [shape: f32[2,1,64], index: 9, kind: input, shape index: {}]
  %s10 = inlined_call_operand.vmem [shape: f32[2,64,32], index: 10, kind: input, shape index: {}]
  %s11 = inlined_call_operand.vmem [shape: f32[2,1,32], index: 11, kind: input, shape index: {}]
  %s12 = inlined_call_operand.hbm [shape: f32[16,32], index: 12, kind: output, shape index: {}]
  %s13 = sld [smem:[#allocation0]]
  $region89: #{tpu_custom_call.1} parent=0
    _
  %s15 = ssub.s32 1, %s13
  %s16 = scalar_select 0, %s15, %s13
  $region1: #{tpu_custom_call.1} parent=0
    #allocation3 [shape = 'u8[8192]{0}', space=vmem, size = 0x2000, scoped, tag = 'output window, operand 0, single buffered']
    #allocation4 [shape = 's32[2]{0}', space=sflag, size = 0x8, scoped, tag = 'scoped memory for tpu_custom_call.1']
    %17 = vsyncpa [#allocation4], 0
    loop: start=0, step=1, limit=4
    $region2: #{tpu_custom_call.1} parent=1 // loop_pre_header
      _
    $region3: #{tpu_custom_call.1} parent=1 // loop_header
      %s19 = sphi 0, %s23
      %p20 = scmp.ge.s32.totalorder %s19, 4
      %s27 = sphi 0, %s27
      %s29 = sphi 0, %s27
      %s30 = sphi 0, %s29
      %s44 = sphi 0, %s30
      %s50 = sphi 0, %s52
      %s53 = sphi 0, %s50
      %s54 = sphi 0, %s53
      %s70 = sphi 0, %s54
      %s76 = sphi 0, %s78
      %s79 = sphi 0, %s76
      %s80 = sphi 0, %s79
      %s96 = sphi 0, %s80
      %s102 = sphi 0, %s104
      %s105 = sphi 0, %s102
      %s106 = sphi 0, %s105
      %s122 = sphi 0, %s106
      %s128 = sphi 0, %s130
      %s131 = sphi 0, %s128
      %s132 = sphi 0, %s131
      %s148 = sphi 0, %s132
      %s154 = sphi 0, %s156
      %s157 = sphi 0, %s154
      %s158 = sphi 0, %s157
      %s174 = sphi 0, %s158
      %s180 = sphi 0, %s182
      %s183 = sphi 0, %s180
      %s184 = sphi 0, %s183
      %s200 = sphi 0, %s184
      %s206 = sphi 0, %s208
      %s209 = sphi 0, %s206
      %s210 = sphi 0, %s209
      %s226 = sphi 0, %s210
      %s232 = sphi 0, %s234
      %s235 = sphi 0, %s232
      %s236 = sphi 0, %s235
      %s252 = sphi 0, %s236
      %s258 = sphi 0, %s260
      %s261 = sphi 0, %s258
      %s262 = sphi 0, %s261
      %s278 = sphi 0, %s262
      %s284 = sphi 0, %s286
      %s287 = sphi 0, %s284
      %s288 = sphi 0, %s287
      %s304 = sphi 0, %s288
      %s310 = sphi 0, %s312
      %s313 = sphi 0, %s310
      %s314 = sphi 0, %s313
      %s330 = sphi 0, %s314
      %s334 = sphi 0, %s334
      %s336 = sphi 0, %s334
      %s337 = sphi 0, %s336
      %s351 = sphi 0, %s337
    $region4: #{tpu_custom_call.1} parent=1 // loop_header_branch
      %22 = sbr.rel (%p20) target = $region8
    $region5: #{tpu_custom_call.1} parent=1 // loop_body
      %s24 = ssub.s32 %s19, 1
      %s25 = ssub.s32 %s19, 2
      %s26 = sadd.s32 %s19, 1
      %s28 = sadd.s32 %s27, 1
      %p31 = scmp.eq.s32.totalorder %s19, 1
      %p32 = scmp.ne.s32.totalorder %s27, %s29
      %p33 = scmp.eq.s32.totalorder %s19, 0
      %p34 = por %p32, %p33
      %p35 = scmp.ne.s32.totalorder %s27, %s29
      %p36 = scmp.eq.s32.totalorder %s24, 1
      %p37 = por %p35, %p36
      %p38 = scmp.ne.s32.totalorder %s29, %s30
      %p39 = scmp.eq.s32.totalorder %s24, 0
      %p40 = por %p38, %p39
      %p41 = scmp.ne.s32.totalorder %s29, %s30
      %p42 = scmp.eq.s32.totalorder %s25, 1
      %p43 = por %p41, %p42
      %p45 = scmp.ne.s32.totalorder %s30, %s44
      %p46 = scmp.eq.s32.totalorder %s25, 0
      %p47 = por %p45, %p46
      %s48 = ssub.s32 %s19, %s26
      %p49 = scmp.eq.s32.totalorder %s48, 0
      %s51 = sadd.s32 %s50, 1
      %s52 = scalar_select %p49, %s50, %s51
      %p55 = pneg %p49
      %p56 = scmp.eq.s32.totalorder %s19, 1
      %p57 = por %p55, %p56
      %p58 = scmp.ne.s32.totalorder %s50, %s53
      %p59 = scmp.eq.s32.totalorder %s19, 0
      %p60 = por %p58, %p59
      %p61 = scmp.ne.s32.totalorder %s50, %s53
      %p62 = scmp.eq.s32.totalorder %s24, 1
      %p63 = por %p61, %p62
      %p64 = scmp.ne.s32.totalorder %s53, %s54
      %p65 = scmp.eq.s32.totalorder %s24, 0
      %p66 = por %p64, %p65
      %p67 = scmp.ne.s32.totalorder %s53, %s54
      %p68 = scmp.eq.s32.totalorder %s25, 1
      %p69 = por %p67, %p68
      %p71 = scmp.ne.s32.totalorder %s54, %s70
      %p72 = scmp.eq.s32.totalorder %s25, 0
      %p73 = por %p71, %p72
      %s74 = ssub.s32 %s19, %s26
      %p75 = scmp.eq.s32.totalorder %s74, 0
      %s77 = sadd.s32 %s76, 1
      %s78 = scalar_select %p75, %s76, %s77
      %p81 = pneg %p75
      %p82 = scmp.eq.s32.totalorder %s19, 1
      %p83 = por %p81, %p82
      %p84 = scmp.ne.s32.totalorder %s76, %s79
      %p85 = scmp.eq.s32.totalorder %s19, 0
      %p86 = por %p84, %p85
      %p87 = scmp.ne.s32.totalorder %s76, %s79
      %p88 = scmp.eq.s32.totalorder %s24, 1
      %p89 = por %p87, %p88
      %p90 = scmp.ne.s32.totalorder %s79, %s80
      %p91 = scmp.eq.s32.totalorder %s24, 0
      %p92 = por %p90, %p91
      %p93 = scmp.ne.s32.totalorder %s79, %s80
      %p94 = scmp.eq.s32.totalorder %s25, 1
      %p95 = por %p93, %p94
      %p97 = scmp.ne.s32.totalorder %s80, %s96
      %p98 = scmp.eq.s32.totalorder %s25, 0
      %p99 = por %p97, %p98
      %s100 = ssub.s32 %s19, %s26
      %p101 = scmp.eq.s32.totalorder %s100, 0
      %s103 = sadd.s32 %s102, 1
      %s104 = scalar_select %p101, %s102, %s103
      %p107 = pneg %p101
      %p108 = scmp.eq.s32.totalorder %s19, 1
      %p109 = por %p107, %p108
      %p110 = scmp.ne.s32.totalorder %s102, %s105
      %p111 = scmp.eq.s32.totalorder %s19, 0
      %p112 = por %p110, %p111
      %p113 = scmp.ne.s32.totalorder %s102, %s105
      %p114 = scmp.eq.s32.totalorder %s24, 1
      %p115 = por %p113, %p114
      %p116 = scmp.ne.s32.totalorder %s105, %s106
      %p117 = scmp.eq.s32.totalorder %s24, 0
      %p118 = por %p116, %p117
      %p119 = scmp.ne.s32.totalorder %s105, %s106
      %p120 = scmp.eq.s32.totalorder %s25, 1
      %p121 = por %p119, %p120
      %p123 = scmp.ne.s32.totalorder %s106, %s122
      %p124 = scmp.eq.s32.totalorder %s25, 0
      %p125 = por %p123, %p124
      %s126 = ssub.s32 %s19, %s26
      %p127 = scmp.eq.s32.totalorder %s126, 0
      %s129 = sadd.s32 %s128, 1
      %s130 = scalar_select %p127, %s128, %s129
      %p133 = pneg %p127
      %p134 = scmp.eq.s32.totalorder %s19, 1
      %p135 = por %p133, %p134
      %p136 = scmp.ne.s32.totalorder %s128, %s131
      %p137 = scmp.eq.s32.totalorder %s19, 0
      %p138 = por %p136, %p137
      %p139 = scmp.ne.s32.totalorder %s128, %s131
      %p140 = scmp.eq.s32.totalorder %s24, 1
      %p141 = por %p139, %p140
      %p142 = scmp.ne.s32.totalorder %s131, %s132
      %p143 = scmp.eq.s32.totalorder %s24, 0
      %p144 = por %p142, %p143
      %p145 = scmp.ne.s32.totalorder %s131, %s132
      %p146 = scmp.eq.s32.totalorder %s25, 1
      %p147 = por %p145, %p146
      %p149 = scmp.ne.s32.totalorder %s132, %s148
      %p150 = scmp.eq.s32.totalorder %s25, 0
      %p151 = por %p149, %p150
      %s152 = ssub.s32 %s19, %s26
      %p153 = scmp.eq.s32.totalorder %s152, 0
      %s155 = sadd.s32 %s154, 1
      %s156 = scalar_select %p153, %s154, %s155
      %p159 = pneg %p153
      %p160 = scmp.eq.s32.totalorder %s19, 1
      %p161 = por %p159, %p160
      %p162 = scmp.ne.s32.totalorder %s154, %s157
      %p163 = scmp.eq.s32.totalorder %s19, 0
      %p164 = por %p162, %p163
      %p165 = scmp.ne.s32.totalorder %s154, %s157
      %p166 = scmp.eq.s32.totalorder %s24, 1
      %p167 = por %p165, %p166
      %p168 = scmp.ne.s32.totalorder %s157, %s158
      %p169 = scmp.eq.s32.totalorder %s24, 0
      %p170 = por %p168, %p169
      %p171 = scmp.ne.s32.totalorder %s157, %s158
      %p172 = scmp.eq.s32.totalorder %s25, 1
      %p173 = por %p171, %p172
      %p175 = scmp.ne.s32.totalorder %s158, %s174
      %p176 = scmp.eq.s32.totalorder %s25, 0
      %p177 = por %p175, %p176
      %s178 = ssub.s32 %s19, %s26
      %p179 = scmp.eq.s32.totalorder %s178, 0
      %s181 = sadd.s32 %s180, 1
      %s182 = scalar_select %p179, %s180, %s181
      %p185 = pneg %p179
      %p186 = scmp.eq.s32.totalorder %s19, 1
      %p187 = por %p185, %p186
      %p188 = scmp.ne.s32.totalorder %s180, %s183
      %p189 = scmp.eq.s32.totalorder %s19, 0
      %p190 = por %p188, %p189
      %p191 = scmp.ne.s32.totalorder %s180, %s183
      %p192 = scmp.eq.s32.totalorder %s24, 1
      %p193 = por %p191, %p192
      %p194 = scmp.ne.s32.totalorder %s183, %s184
      %p195 = scmp.eq.s32.totalorder %s24, 0
      %p196 = por %p194, %p195
      %p197 = scmp.ne.s32.totalorder %s183, %s184
      %p198 = scmp.eq.s32.totalorder %s25, 1
      %p199 = por %p197, %p198
      %p201 = scmp.ne.s32.totalorder %s184, %s200
      %p202 = scmp.eq.s32.totalorder %s25, 0
      %p203 = por %p201, %p202
      %s204 = ssub.s32 %s19, %s26
      %p205 = scmp.eq.s32.totalorder %s204, 0
      %s207 = sadd.s32 %s206, 1
      %s208 = scalar_select %p205, %s206, %s207
      %p211 = pneg %p205
      %p212 = scmp.eq.s32.totalorder %s19, 1
      %p213 = por %p211, %p212
      %p214 = scmp.ne.s32.totalorder %s206, %s209
      %p215 = scmp.eq.s32.totalorder %s19, 0
      %p216 = por %p214, %p215
      %p217 = scmp.ne.s32.totalorder %s206, %s209
      %p218 = scmp.eq.s32.totalorder %s24, 1
      %p219 = por %p217, %p218
      %p220 = scmp.ne.s32.totalorder %s209, %s210
      %p221 = scmp.eq.s32.totalorder %s24, 0
      %p222 = por %p220, %p221
      %p223 = scmp.ne.s32.totalorder %s209, %s210
      %p224 = scmp.eq.s32.totalorder %s25, 1
      %p225 = por %p223, %p224
      %p227 = scmp.ne.s32.totalorder %s210, %s226
      %p228 = scmp.eq.s32.totalorder %s25, 0
      %p229 = por %p227, %p228
      %s230 = ssub.s32 %s19, %s26
      %p231 = scmp.eq.s32.totalorder %s230, 0
      %s233 = sadd.s32 %s232, 1
      %s234 = scalar_select %p231, %s232, %s233
      %p237 = pneg %p231
      %p238 = scmp.eq.s32.totalorder %s19, 1
      %p239 = por %p237, %p238
      %p240 = scmp.ne.s32.totalorder %s232, %s235
      %p241 = scmp.eq.s32.totalorder %s19, 0
      %p242 = por %p240, %p241
      %p243 = scmp.ne.s32.totalorder %s232, %s235
      %p244 = scmp.eq.s32.totalorder %s24, 1
      %p245 = por %p243, %p244
      %p246 = scmp.ne.s32.totalorder %s235, %s236
      %p247 = scmp.eq.s32.totalorder %s24, 0
      %p248 = por %p246, %p247
      %p249 = scmp.ne.s32.totalorder %s235, %s236
      %p250 = scmp.eq.s32.totalorder %s25, 1
      %p251 = por %p249, %p250
      %p253 = scmp.ne.s32.totalorder %s236, %s252
      %p254 = scmp.eq.s32.totalorder %s25, 0
      %p255 = por %p253, %p254
      %s256 = ssub.s32 %s19, %s26
      %p257 = scmp.eq.s32.totalorder %s256, 0
      %s259 = sadd.s32 %s258, 1
      %s260 = scalar_select %p257, %s258, %s259
      %p263 = pneg %p257
      %p264 = scmp.eq.s32.totalorder %s19, 1
      %p265 = por %p263, %p264
      %p266 = scmp.ne.s32.totalorder %s258, %s261
      %p267 = scmp.eq.s32.totalorder %s19, 0
      %p268 = por %p266, %p267
      %p269 = scmp.ne.s32.totalorder %s258, %s261
      %p270 = scmp.eq.s32.totalorder %s24, 1
      %p271 = por %p269, %p270
      %p272 = scmp.ne.s32.totalorder %s261, %s262
      %p273 = scmp.eq.s32.totalorder %s24, 0
      %p274 = por %p272, %p273
      %p275 = scmp.ne.s32.totalorder %s261, %s262
      %p276 = scmp.eq.s32.totalorder %s25, 1
      %p277 = por %p275, %p276
      %p279 = scmp.ne.s32.totalorder %s262, %s278
      %p280 = scmp.eq.s32.totalorder %s25, 0
      %p281 = por %p279, %p280
      %s282 = ssub.s32 %s19, %s26
      %p283 = scmp.eq.s32.totalorder %s282, 0
      %s285 = sadd.s32 %s284, 1
      %s286 = scalar_select %p283, %s284, %s285
      %p289 = pneg %p283
      %p290 = scmp.eq.s32.totalorder %s19, 1
      %p291 = por %p289, %p290
      %p292 = scmp.ne.s32.totalorder %s284, %s287
      %p293 = scmp.eq.s32.totalorder %s19, 0
      %p294 = por %p292, %p293
      %p295 = scmp.ne.s32.totalorder %s284, %s287
      %p296 = scmp.eq.s32.totalorder %s24, 1
      %p297 = por %p295, %p296
      %p298 = scmp.ne.s32.totalorder %s287, %s288
      %p299 = scmp.eq.s32.totalorder %s24, 0
      %p300 = por %p298, %p299
      %p301 = scmp.ne.s32.totalorder %s287, %s288
      %p302 = scmp.eq.s32.totalorder %s25, 1
      %p303 = por %p301, %p302
      %p305 = scmp.ne.s32.totalorder %s288, %s304
      %p306 = scmp.eq.s32.totalorder %s25, 0
      %p307 = por %p305, %p306
      %s308 = ssub.s32 %s19, %s26
      %p309 = scmp.eq.s32.totalorder %s308, 0
      %s311 = sadd.s32 %s310, 1
      %s312 = scalar_select %p309, %s310, %s311
      %p315 = pneg %p309
      %p316 = scmp.eq.s32.totalorder %s19, 1
      %p317 = por %p315, %p316
      %p318 = scmp.ne.s32.totalorder %s310, %s313
      %p319 = scmp.eq.s32.totalorder %s19, 0
      %p320 = por %p318, %p319
      %p321 = scmp.ne.s32.totalorder %s310, %s313
      %p322 = scmp.eq.s32.totalorder %s24, 1
      %p323 = por %p321, %p322
      %p324 = scmp.ne.s32.totalorder %s313, %s314
      %p325 = scmp.eq.s32.totalorder %s24, 0
      %p326 = por %p324, %p325
      %p327 = scmp.ne.s32.totalorder %s313, %s314
      %p328 = scmp.eq.s32.totalorder %s25, 1
      %p329 = por %p327, %p328
      %p331 = scmp.ne.s32.totalorder %s314, %s330
      %p332 = scmp.eq.s32.totalorder %s25, 0
      %p333 = por %p331, %p332
      %s335 = sadd.s32 %s334, 1
      %p338 = scmp.eq.s32.totalorder %s19, 1
      %p339 = scmp.ne.s32.totalorder %s334, %s336
      %p340 = scmp.eq.s32.totalorder %s19, 0
      %p341 = por %p339, %p340
      %p342 = scmp.ne.s32.totalorder %s334, %s336
      %p343 = scmp.eq.s32.totalorder %s24, 1
      %p344 = por %p342, %p343
      %p345 = scmp.ne.s32.totalorder %s336, %s337
      %p346 = scmp.eq.s32.totalorder %s24, 0
      %p347 = por %p345, %p346
      %p348 = scmp.ne.s32.totalorder %s336, %s337
      %p349 = scmp.eq.s32.totalorder %s25, 1
      %p350 = por %p348, %p349
      %p352 = scmp.ne.s32.totalorder %s337, %s351
      %p353 = scmp.eq.s32.totalorder %s25, 0
      %p354 = por %p352, %p353
      %p355 = scmp.le.s32.totalorder 1, %s19
      %p356 = scmp.lt.s32.totalorder %s19, 3
      %p357 = pnand %p355, %p356
      %p358 = pneg %p357
      // Predicated region
      $region9: #{tpu_custom_call.1} parent=5 // pred_check
        _
      $region10: #{tpu_custom_call.1} parent=5 // pred_check_branch
        %360 = sbr.rel (%p357) target = $region12
      $region11: #{tpu_custom_call.1} parent=5 // pred_region
        %s361 = ssub.s32 %s19, 1
        // Predicated region
        $region13: #{tpu_custom_call.1} parent=11 // pred_check
          %p362 = pneg %p40
        $region14: #{tpu_custom_call.1} parent=11 // pred_check_branch
          %364 = sbr.rel (%p362) target = $region16
        $region15: #{tpu_custom_call.1} parent=11 // pred_region
          _
        $region16: #{tpu_custom_call.1} parent=11 // pred_fallthru
          _
      $region12: #{tpu_custom_call.1} parent=5 // pred_fallthru
        _
      %p365 = scmp.lt.s32.totalorder %s19, 2
      // Predicated region
      $region17: #{tpu_custom_call.1} parent=5 // pred_check
        %p366 = pneg %p365
      $region18: #{tpu_custom_call.1} parent=5 // pred_check_branch
        %368 = sbr.rel (%p366) target = $region20
      $region19: #{tpu_custom_call.1} parent=5 // pred_region
        // Predicated region
        $region21: #{tpu_custom_call.1} parent=19 // pred_check
          %p369 = pneg %p60
        $region22: #{tpu_custom_call.1} parent=19 // pred_check_branch
          %371 = sbr.rel (%p369) target = $region24
        $region23: #{tpu_custom_call.1} parent=19 // pred_region
          %p372 = scmp.lt.s32.totalorder %s19, 1
          %s373 = scalar_select %p372, %s19, 1
          %s374 = scalar_lea.vmem %s1, %s373
        $region24: #{tpu_custom_call.1} parent=19 // pred_fallthru
          _
        // Predicated region
        $region25: #{tpu_custom_call.1} parent=19 // pred_check
          %p375 = pneg %p86
        $region26: #{tpu_custom_call.1} parent=19 // pred_check_branch
          %377 = sbr.rel (%p375) target = $region28
        $region27: #{tpu_custom_call.1} parent=19 // pred_region
          %p378 = scmp.lt.s32.totalorder %s19, 1
          %s379 = scalar_select %p378, %s19, 1
          %s380 = scalar_lea.vmem %s2, %s379
        $region28: #{tpu_custom_call.1} parent=19 // pred_fallthru
          _
        // Predicated region
        $region29: #{tpu_custom_call.1} parent=19 // pred_check
          %p381 = pneg %p112
        $region30: #{tpu_custom_call.1} parent=19 // pred_check_branch
          %383 = sbr.rel (%p381) target = $region32
        $region31: #{tpu_custom_call.1} parent=19 // pred_region
          %p384 = scmp.lt.s32.totalorder %s19, 1
          %s385 = scalar_select %p384, %s19, 1
          %s386 = smul.addr %s385, 16
          %s387 = smul.addr %s386, 8
          %s388 = scalar_lea.vmem %s3, %s387
        $region32: #{tpu_custom_call.1} parent=19 // pred_fallthru
          _
        // Predicated region
        $region33: #{tpu_custom_call.1} parent=19 // pred_check
          %p389 = pneg %p138
        $region34: #{tpu_custom_call.1} parent=19 // pred_check_branch
          %391 = sbr.rel (%p389) target = $region36
        $region35: #{tpu_custom_call.1} parent=19 // pred_region
          %p392 = scmp.lt.s32.totalorder %s19, 1
          %s393 = scalar_select %p392, %s19, 1
          %s394 = smul.addr %s393, 16
          %s395 = smul.addr %s394, 8
          %s396 = scalar_lea.vmem %s4, %s395
        $region36: #{tpu_custom_call.1} parent=19 // pred_fallthru
          _
        // Predicated region
        $region37: #{tpu_custom_call.1} parent=19 // pred_check
          %p397 = pneg %p164
        $region38: #{tpu_custom_call.1} parent=19 // pred_check_branch
          %399 = sbr.rel (%p397) target = $region40
        $region39: #{tpu_custom_call.1} parent=19 // pred_region
          %p400 = scmp.lt.s32.totalorder %s19, 1
          %s401 = scalar_select %p400, %s19, 1
          %s402 = smul.addr %s401, 16
          %s403 = smul.addr %s402, 8
          %s404 = scalar_lea.vmem %s5, %s403
        $region40: #{tpu_custom_call.1} parent=19 // pred_fallthru
          _
        // Predicated region
        $region41: #{tpu_custom_call.1} parent=19 // pred_check
          %p405 = pneg %p190
        $region42: #{tpu_custom_call.1} parent=19 // pred_check_branch
          %407 = sbr.rel (%p405) target = $region44
        $region43: #{tpu_custom_call.1} parent=19 // pred_region
          %p408 = scmp.lt.s32.totalorder %s19, 1
          %s409 = scalar_select %p408, %s19, 1
          %s410 = smul.addr %s409, 4
          %s411 = smul.addr %s410, 8
          %s412 = scalar_lea.vmem %s6, %s411
        $region44: #{tpu_custom_call.1} parent=19 // pred_fallthru
          _
        // Predicated region
        $region45: #{tpu_custom_call.1} parent=19 // pred_check
          %p413 = pneg %p216
        $region46: #{tpu_custom_call.1} parent=19 // pred_check_branch
          %415 = sbr.rel (%p413) target = $region48
        $region47: #{tpu_custom_call.1} parent=19 // pred_region
          %p416 = scmp.lt.s32.totalorder %s19, 1
          %s417 = scalar_select %p416, %s19, 1
          %s418 = scalar_lea.vmem %s7, %s417
        $region48: #{tpu_custom_call.1} parent=19 // pred_fallthru
          _
        // Predicated region
        $region49: #{tpu_custom_call.1} parent=19 // pred_check
          %p419 = pneg %p242
        $region50: #{tpu_custom_call.1} parent=19 // pred_check_branch
          %421 = sbr.rel (%p419) target = $region52
        $region51: #{tpu_custom_call.1} parent=19 // pred_region
          %p422 = scmp.lt.s32.totalorder %s19, 1
          %s423 = scalar_select %p422, %s19, 1
          %s424 = smul.addr %s423, 4
          %s425 = smul.addr %s424, 8
          %s426 = scalar_lea.vmem %s8, %s425
        $region52: #{tpu_custom_call.1} parent=19 // pred_fallthru
          _
        // Predicated region
        $region53: #{tpu_custom_call.1} parent=19 // pred_check
          %p427 = pneg %p268
        $region54: #{tpu_custom_call.1} parent=19 // pred_check_branch
          %429 = sbr.rel (%p427) target = $region56
        $region55: #{tpu_custom_call.1} parent=19 // pred_region
          %p430 = scmp.lt.s32.totalorder %s19, 1
          %s431 = scalar_select %p430, %s19, 1
          %s432 = scalar_lea.vmem %s9, %s431
        $region56: #{tpu_custom_call.1} parent=19 // pred_fallthru
          _
        // Predicated region
        $region57: #{tpu_custom_call.1} parent=19 // pred_check
          %p433 = pneg %p294
        $region58: #{tpu_custom_call.1} parent=19 // pred_check_branch
          %435 = sbr.rel (%p433) target = $region60
        $region59: #{tpu_custom_call.1} parent=19 // pred_region
          %p436 = scmp.lt.s32.totalorder %s19, 1
          %s437 = scalar_select %p436, %s19, 1
          %s438 = smul.addr %s437, 8
          %s439 = smul.addr %s438, 8
          %s440 = scalar_lea.vmem %s10, %s439
        $region60: #{tpu_custom_call.1} parent=19 // pred_fallthru
          _
        // Predicated region
        $region61: #{tpu_custom_call.1} parent=19 // pred_check
          %p441 = pneg %p320
        $region62: #{tpu_custom_call.1} parent=19 // pred_check_branch
          %443 = sbr.rel (%p441) target = $region64
        $region63: #{tpu_custom_call.1} parent=19 // pred_region
          %p444 = scmp.lt.s32.totalorder %s19, 1
          %s445 = scalar_select %p444, %s19, 1
          %s446 = scalar_lea.vmem %s11, %s445
        $region64: #{tpu_custom_call.1} parent=19 // pred_fallthru
          _
      $region20: #{tpu_custom_call.1} parent=5 // pred_fallthru
        _
      %p447 = scmp.le.s32.totalorder 1, %s19
      %p448 = scmp.lt.s32.totalorder %s19, 3
      %p449 = pnand %p447, %p448
      %p450 = pneg %p449
      // Predicated region
      $region65: #{tpu_custom_call.1} parent=5 // pred_check
        _
      $region66: #{tpu_custom_call.1} parent=5 // pred_check_branch
        %452 = sbr.rel (%p449) target = $region68
      $region67: #{tpu_custom_call.1} parent=5 // pred_region
        %s453 = ssub.s32 %s19, 1
        %p454 = pneg %p40
        %p455 = pneg %p37
        %p456 = scmp.lt.s32.totalorder %s24, 1
        %s457 = scalar_select %p456, %s24, 1
        %s458 = scalar_lea.vmem %s1, %s457
        %p459 = pneg %p66
        %p460 = pneg %p63
        %p461 = scmp.lt.s32.totalorder %s24, 1
        %s462 = scalar_select %p461, %s24, 1
        %s463 = scalar_lea.vmem %s2, %s462
        %p464 = pneg %p92
        %p465 = pneg %p89
        %p466 = scmp.lt.s32.totalorder %s24, 1
        %s467 = scalar_select %p466, %s24, 1
        %s468 = smul.addr %s467, 16
        %s469 = smul.addr %s468, 8
        %s470 = scalar_lea.vmem %s3, %s469
        %p471 = pneg %p118
        %p472 = pneg %p115
        %p473 = scmp.lt.s32.totalorder %s24, 1
        %s474 = scalar_select %p473, %s24, 1
        %s475 = smul.addr %s474, 16
        %s476 = smul.addr %s475, 8
        %s477 = scalar_lea.vmem %s4, %s476
        %p478 = pneg %p144
        %p479 = pneg %p141
        %p480 = scmp.lt.s32.totalorder %s24, 1
        %s481 = scalar_select %p480, %s24, 1
        %s482 = smul.addr %s481, 16
        %s483 = smul.addr %s482, 8
        %s484 = scalar_lea.vmem %s5, %s483
        %p485 = pneg %p170
        %p486 = pneg %p167
        %p487 = scmp.lt.s32.totalorder %s24, 1
        %s488 = scalar_select %p487, %s24, 1
        %s489 = smul.addr %s488, 4
        %s490 = smul.addr %s489, 8
        %s491 = scalar_lea.vmem %s6, %s490
        %p492 = pneg %p196
        %p493 = pneg %p193
        %p494 = scmp.lt.s32.totalorder %s24, 1
        %s495 = scalar_select %p494, %s24, 1
        %s496 = scalar_lea.vmem %s7, %s495
        %p497 = pneg %p222
        %p498 = pneg %p219
        %p499 = scmp.lt.s32.totalorder %s24, 1
        %s500 = scalar_select %p499, %s24, 1
        %s501 = smul.addr %s500, 4
        %s502 = smul.addr %s501, 8
        %s503 = scalar_lea.vmem %s8, %s502
        %p504 = pneg %p248
        %p505 = pneg %p245
        %p506 = scmp.lt.s32.totalorder %s24, 1
        %s507 = scalar_select %p506, %s24, 1
        %s508 = scalar_lea.vmem %s9, %s507
        %p509 = pneg %p274
        %p510 = pneg %p271
        %p511 = scmp.lt.s32.totalorder %s24, 1
        %s512 = scalar_select %p511, %s24, 1
        %s513 = smul.addr %s512, 8
        %s514 = smul.addr %s513, 8
        %s515 = scalar_lea.vmem %s10, %s514
        %p516 = pneg %p300
        %p517 = pneg %p297
        %p518 = scmp.lt.s32.totalorder %s24, 1
        %s519 = scalar_select %p518, %s24, 1
        %s520 = scalar_lea.vmem %s11, %s519
        %p521 = pneg %p326
        %p522 = pneg %p323
        %p523 = pneg %p347
        %p524 = pneg %p344
        %p525 = scmp.lt.s32.totalorder %s24, 1
        %s526 = scalar_select %p525, %s24, 1
        %s527 = scalar_lea.vmem %s1, %s526
        %p528 = scmp.lt.s32.totalorder %s24, 1
        %s529 = scalar_select %p528, %s24, 1
        %s530 = scalar_lea.vmem %s2, %s529
        %p531 = scmp.lt.s32.totalorder %s24, 1
        %s532 = scalar_select %p531, %s24, 1
        %s533 = smul.addr %s532, 16
        %s534 = smul.addr %s533, 8
        %s535 = scalar_lea.vmem %s3, %s534
        %p536 = scmp.lt.s32.totalorder %s24, 1
        %s537 = scalar_select %p536, %s24, 1
        %s538 = smul.addr %s537, 16
        %s539 = smul.addr %s538, 8
        %s540 = scalar_lea.vmem %s4, %s539
        %p541 = scmp.lt.s32.totalorder %s24, 1
        %s542 = scalar_select %p541, %s24, 1
        %s543 = smul.addr %s542, 16
        %s544 = smul.addr %s543, 8
        %s545 = scalar_lea.vmem %s5, %s544
        %p546 = scmp.lt.s32.totalorder %s24, 1
        %s547 = scalar_select %p546, %s24, 1
        %s548 = smul.addr %s547, 4
        %s549 = smul.addr %s548, 8
        %s550 = scalar_lea.vmem %s6, %s549
        %p551 = scmp.lt.s32.totalorder %s24, 1
        %s552 = scalar_select %p551, %s24, 1
        %s553 = scalar_lea.vmem %s7, %s552
        %p554 = scmp.lt.s32.totalorder %s24, 1
        %s555 = scalar_select %p554, %s24, 1
        %s556 = smul.addr %s555, 4
        %s557 = smul.addr %s556, 8
        %s558 = scalar_lea.vmem %s8, %s557
        %p559 = scmp.lt.s32.totalorder %s24, 1
        %s560 = scalar_select %p559, %s24, 1
        %s561 = scalar_lea.vmem %s9, %s560
        %p562 = scmp.lt.s32.totalorder %s24, 1
        %s563 = scalar_select %p562, %s24, 1
        %s564 = smul.addr %s563, 8
        %s565 = smul.addr %s564, 8
        %s566 = scalar_lea.vmem %s10, %s565
        %p567 = scmp.lt.s32.totalorder %s24, 1
        %s568 = scalar_select %p567, %s24, 1
        %s569 = scalar_lea.vmem %s11, %s568
        %p570 = scmp.eq.s32.totalorder %s24, 0
        // Predicated region
        $region69: #{tpu_custom_call.1} parent=67 // pred_check
          %p571 = pneg %p570
        $region70: #{tpu_custom_call.1} parent=67 // pred_check_branch
          %573 = sbr.rel (%p571) target = $region72
        $region71: #{tpu_custom_call.1} parent=67 // pred_region
          %v574 = vld [vmem:[%s0] sm:$0xff]
          %v575 = vld [vmem:[%s0 + $0x8] sm:$0xff]
          %vm576 = vcmask 261120
          %577 = vst.msk [vmem:[#allocation2] sm:$0xff] %vm576, %v574
          %578 = vst.msk [vmem:[#allocation2 + $0x8] sm:$0xff] %vm576, %v575
        $region72: #{tpu_custom_call.1} parent=67 // pred_fallthru
          _
        %v579 = vld [vmem:[#allocation2] sm:$0xff]
        %v580 = vld [vmem:[#allocation2 + $0x8] sm:$0xff]
        %vm581 = vcmask 261120
        %v582 = vsel %vm581, %v579, 0.0
        %583 = vadd.xlane.f32.xlu0 %v582
        %v584 = vpop.xlane.xlu0 %583
        %v585 = vsel %vm581, %v580, 0.0
        %586 = vadd.xlane.f32.xlu0 %v585
        %v587 = vpop.xlane.xlu0 %586
        %v588 = vrcp.pop 32.0
        %v589 = vmul.f32 %v584, %v588
        %v590 = vmul.f32 %v587, %v588
        %v591 = vsub.f32 %v579, %v589
        %v592 = vsub.f32 %v580, %v590
        %v593 = vmul.f32 %v591, %v591
        %v594 = vmul.f32 %v592, %v592
        %v595 = vsel %vm581, %v593, 0.0
        %596 = vadd.xlane.f32.xlu0 %v595
        %v597 = vpop.xlane.xlu0 %596
        %v598 = vsel %vm581, %v594, 0.0
        %599 = vadd.xlane.f32.xlu0 %v598
        %v600 = vpop.xlane.xlu0 %599
        %v601 = vmul.f32 %v597, %v588
        %v602 = vmul.f32 %v600, %v588
        %v603 = vadd.f32 %v601, 1e-05
        %v604 = vadd.f32 %v602, 1e-05
        %v605 = vrsqrt.pop %v603
        %v606 = vrsqrt.pop %v604
        %v607 = vmul.f32 %v591, %v605
        %v608 = vmul.f32 %v592, %v606
        %v609 = vld [vmem:[%s527] sm:$0x1]
        %v611 = vlaneseq
        %v612 = vshrl.u32 %v611, 7
        %v613 = vsub.s32 0, %v612
        %v614 = vrot.slane %v609, %v613
        %v616 = vmul.f32 %v607, %v614
        %v617 = vmul.f32 %v608, %v614
        %v618 = vld [vmem:[%s530] sm:$0x1]
        %v620 = vlaneseq
        %v621 = vshrl.u32 %v620, 7
        %v622 = vsub.s32 0, %v621
        %v623 = vrot.slane %v618, %v622
        %v625 = vadd.f32 %v616, %v623
        %v626 = vadd.f32 %v617, %v623
        %v627 = vld [vmem:[%s535] sm:$0xff]
        %v628 = vld [vmem:[%s535 + $0x8] sm:$0xff]
        %v629 = vld [vmem:[%s535 + $0x10] sm:$0xff]
        %v630 = vld [vmem:[%s535 + $0x18] sm:$0xff]
        %v631 = vld [vmem:[%s535 + $0x20] sm:$0xff]
        %v632 = vld [vmem:[%s535 + $0x28] sm:$0xff]
        %v633 = vld [vmem:[%s535 + $0x30] sm:$0xff]
        %v634 = vld [vmem:[%s535 + $0x38] sm:$0xff]
        %v635 = vld [vmem:[%s535 + $0x40] sm:$0xff]
        %v636 = vld [vmem:[%s535 + $0x48] sm:$0xff]
        %v637 = vld [vmem:[%s535 + $0x50] sm:$0xff]
        %v638 = vld [vmem:[%s535 + $0x58] sm:$0xff]
        %v639 = vld [vmem:[%s535 + $0x60] sm:$0xff]
        %v640 = vld [vmem:[%s535 + $0x68] sm:$0xff]
        %v641 = vld [vmem:[%s535 + $0x70] sm:$0xff]
        %v642 = vld [vmem:[%s535 + $0x78] sm:$0xff]
        %v644 = vsel %vm581, %v625, 0
        %v647 = vsel %vm581, %v626, 0
        %649 = vmatprep.subr.mxu0 0.0
        %650 = vmatpush1.msra.mxu0 %v627
        %651 = vmatprep.subr.mxu0 0.0
        %652 = vmatpush1.msra.mxu0 %v628
        %653 = vmatprep.subr.mxu0 0.0
        %654 = vmatpush1.msra.mxu0 %v629
        %655 = vmatprep.subr.mxu0 0.0
        %656 = vmatpush1.msra.mxu0 %v630
        %657 = vmatprep.subr.mxu0 0.0
        %658 = vmatpush1.msra.mxu0 0.0
        %659 = vmatprep.subr.mxu0 0.0
        %660 = vmatpush1.msra.mxu0 0.0
        %661 = vmatprep.subr.mxu0 0.0
        %662 = vmatpush1.msra.mxu0 0.0
        %663 = vmatprep.subr.mxu0 0.0
        %664 = vmatpush1.msra.mxu0 0.0
        %665 = vmatprep.subr.mxu0 0.0
        %666 = vmatpush1.msra.mxu0 0.0
        %667 = vmatprep.subr.mxu0 0.0
        %668 = vmatpush1.msra.mxu0 0.0
        %669 = vmatprep.subr.mxu0 0.0
        %670 = vmatpush1.msra.mxu0 0.0
        %671 = vmatprep.subr.mxu0 0.0
        %672 = vmatpush1.msra.mxu0 0.0
        %673 = vmatprep.subr.mxu0 0.0
        %674 = vmatpush1.msra.mxu0 0.0
        %675 = vmatprep.subr.mxu0 0.0
        %676 = vmatpush1.msra.mxu0 0.0
        %677 = vmatprep.subr.mxu0 0.0
        %678 = vmatpush1.msra.mxu0 0.0
        %679 = vmatprep.subr.mxu0 0.0
        %680 = vmatpush1.msra.mxu0 0.0
        %681 = vmatprep.subr.mxu0 0.0
        %682 = vmatpush1.msra.mxu0 0.0
        %683 = vmatprep.subr.mxu0 0.0
        %684 = vmatpush1.msra.mxu0 0.0
        %685 = vmatprep.subr.mxu0 0.0
        %686 = vmatpush1.msra.mxu0 0.0
        %687 = vmatprep.subr.mxu0 0.0
        %688 = vmatpush1.msra.mxu0 0.0
        %689 = vmatprep.subr.mxu0 0.0
        %690 = vmatpush1.msra.mxu0 0.0
        %691 = vmatprep.subr.mxu0 0.0
        %692 = vmatpush1.msra.mxu0 0.0
        %693 = vmatprep.subr.mxu0 0.0
        %694 = vmatpush1.msra.mxu0 0.0
        %695 = vmatprep.subr.mxu0 0.0
        %696 = vmatpush1.msra.mxu0 0.0
        %697 = vmatprep.subr.mxu0 0.0
        %698 = vmatpush1.msra.mxu0 0.0
        %699 = vmatprep.subr.mxu0 0.0
        %700 = vmatpush1.msra.mxu0 0.0
        %701 = vmatprep.subr.mxu0 0.0
        %702 = vmatpush1.msra.mxu0 0.0
        %703 = vmatprep.subr.mxu0 0.0
        %704 = vmatpush1.msra.mxu0 0.0
        %705 = vmatprep.subr.mxu0 0.0
        %706 = vmatpush1.msra.mxu0 0.0
        %707 = vmatprep.subr.mxu0 0.0
        %708 = vmatpush1.msra.mxu0 0.0
        %709 = vmatprep.subr.mxu0 0.0
        %710 = vmatpush1.msra.mxu0 0.0
        %711 = vmatprep.subr.mxu0 0.0
        %712 = vmatpush1.msra.mxu0 0.0
        %713 = vmatprep.mubr.f32.mxu0 0.0
        %714 = vmatmul.mubr.f32.gmra.mrb[0].mxu0 %v644
        %v715 = vpop.f32.mrb[0].mxu0
        %v716 = vadd.f32 0.0, %v715
        %v717 = vpop.f32.mrb[0].mxu0
        %718 = vmatprep.mubr.f32.mxu0 0.0
        %719 = vmatmul.mubr.f32.gmra.mrb[0].mxu0 %v647
        %v720 = vpop.f32.mrb[0].mxu0
        %v721 = vadd.f32 0.0, %v720
        %v722 = vpop.f32.mrb[0].mxu0
        %723 = vdwg.mxu0
        %724 = vmatprep.subr.mxu0 0.0
        %725 = vmatpush1.msra.mxu0 %v631
        %726 = vmatprep.subr.mxu0 0.0
        %727 = vmatpush1.msra.mxu0 %v632
        %728 = vmatprep.subr.mxu0 0.0
        %729 = vmatpush1.msra.mxu0 %v633
        %730 = vmatprep.subr.mxu0 0.0
        %731 = vmatpush1.msra.mxu0 %v634
        %732 = vmatprep.subr.mxu0 0.0
        %733 = vmatpush1.msra.mxu0 0.0
        %734 = vmatprep.subr.mxu0 0.0
        %735 = vmatpush1.msra.mxu0 0.0
        %736 = vmatprep.subr.mxu0 0.0
        %737 = vmatpush1.msra.mxu0 0.0
        %738 = vmatprep.subr.mxu0 0.0
        %739 = vmatpush1.msra.mxu0 0.0
        %740 = vmatprep.subr.mxu0 0.0
        %741 = vmatpush1.msra.mxu0 0.0
        %742 = vmatprep.subr.mxu0 0.0
        %743 = vmatpush1.msra.mxu0 0.0
        %744 = vmatprep.subr.mxu0 0.0
        %745 = vmatpush1.msra.mxu0 0.0
        %746 = vmatprep.subr.mxu0 0.0
        %747 = vmatpush1.msra.mxu0 0.0
        %748 = vmatprep.subr.mxu0 0.0
        %749 = vmatpush1.msra.mxu0 0.0
        %750 = vmatprep.subr.mxu0 0.0
        %751 = vmatpush1.msra.mxu0 0.0
        %752 = vmatprep.subr.mxu0 0.0
        %753 = vmatpush1.msra.mxu0 0.0
        %754 = vmatprep.subr.mxu0 0.0
        %755 = vmatpush1.msra.mxu0 0.0
        %756 = vmatprep.subr.mxu0 0.0
        %757 = vmatpush1.msra.mxu0 0.0
        %758 = vmatprep.subr.mxu0 0.0
        %759 = vmatpush1.msra.mxu0 0.0
        %760 = vmatprep.subr.mxu0 0.0
        %761 = vmatpush1.msra.mxu0 0.0
        %762 = vmatprep.subr.mxu0 0.0
        %763 = vmatpush1.msra.mxu0 0.0
        %764 = vmatprep.subr.mxu0 0.0
        %765 = vmatpush1.msra.mxu0 0.0
        %766 = vmatprep.subr.mxu0 0.0
        %767 = vmatpush1.msra.mxu0 0.0
        %768 = vmatprep.subr.mxu0 0.0
        %769 = vmatpush1.msra.mxu0 0.0
        %770 = vmatprep.subr.mxu0 0.0
        %771 = vmatpush1.msra.mxu0 0.0
        %772 = vmatprep.subr.mxu0 0.0
        %773 = vmatpush1.msra.mxu0 0.0
        %774 = vmatprep.subr.mxu0 0.0
        %775 = vmatpush1.msra.mxu0 0.0
        %776 = vmatprep.subr.mxu0 0.0
        %777 = vmatpush1.msra.mxu0 0.0
        %778 = vmatprep.subr.mxu0 0.0
        %779 = vmatpush1.msra.mxu0 0.0
        %780 = vmatprep.subr.mxu0 0.0
        %781 = vmatpush1.msra.mxu0 0.0
        %782 = vmatprep.subr.mxu0 0.0
        %783 = vmatpush1.msra.mxu0 0.0
        %784 = vmatprep.subr.mxu0 0.0
        %785 = vmatpush1.msra.mxu0 0.0
        %786 = vmatprep.subr.mxu0 0.0
        %787 = vmatpush1.msra.mxu0 0.0
        %788 = vmatprep.mubr.f32.mxu0 0.0
        %789 = vmatmul.mubr.f32.gmra.mrb[0].mxu0 %v644
        %v790 = vpop.f32.mrb[0].mxu0
        %v791 = vadd.f32 0.0, %v790
        %v792 = vpop.f32.mrb[0].mxu0
        %793 = vmatprep.mubr.f32.mxu0 0.0
        %794 = vmatmul.mubr.f32.gmra.mrb[0].mxu0 %v647
        %v795 = vpop.f32.mrb[0].mxu0
        %v796 = vadd.f32 0.0, %v795
        %v797 = vpop.f32.mrb[0].mxu0
        %798 = vdwg.mxu0
        %799 = vmatprep.subr.mxu0 0.0
        %800 = vmatpush1.msra.mxu0 %v635
        %801 = vmatprep.subr.mxu0 0.0
        %802 = vmatpush1.msra.mxu0 %v636
        %803 = vmatprep.subr.mxu0 0.0
        %804 = vmatpush1.msra.mxu0 %v637
        %805 = vmatprep.subr.mxu0 0.0
        %806 = vmatpush1.msra.mxu0 %v638
        %807 = vmatprep.subr.mxu0 0.0
        %808 = vmatpush1.msra.mxu0 0.0
        %809 = vmatprep.subr.mxu0 0.0
        %810 = vmatpush1.msra.mxu0 0.0
        %811 = vmatprep.subr.mxu0 0.0
        %812 = vmatpush1.msra.mxu0 0.0
        %813 = vmatprep.subr.mxu0 0.0
        %814 = vmatpush1.msra.mxu0 0.0
        %815 = vmatprep.subr.mxu0 0.0
        %816 = vmatpush1.msra.mxu0 0.0
        %817 = vmatprep.subr.mxu0 0.0
        %818 = vmatpush1.msra.mxu0 0.0
        %819 = vmatprep.subr.mxu0 0.0
        %820 = vmatpush1.msra.mxu0 0.0
        %821 = vmatprep.subr.mxu0 0.0
        %822 = vmatpush1.msra.mxu0 0.0
        %823 = vmatprep.subr.mxu0 0.0
        %824 = vmatpush1.msra.mxu0 0.0
        %825 = vmatprep.subr.mxu0 0.0
        %826 = vmatpush1.msra.mxu0 0.0
        %827 = vmatprep.subr.mxu0 0.0
        %828 = vmatpush1.msra.mxu0 0.0
        %829 = vmatprep.subr.mxu0 0.0
        %830 = vmatpush1.msra.mxu0 0.0
        %831 = vmatprep.subr.mxu0 0.0
        %832 = vmatpush1.msra.mxu0 0.0
        %833 = vmatprep.subr.mxu0 0.0
        %834 = vmatpush1.msra.mxu0 0.0
        %835 = vmatprep.subr.mxu0 0.0
        %836 = vmatpush1.msra.mxu0 0.0
        %837 = vmatprep.subr.mxu0 0.0
        %838 = vmatpush1.msra.mxu0 0.0
        %839 = vmatprep.subr.mxu0 0.0
        %840 = vmatpush1.msra.mxu0 0.0
        %841 = vmatprep.subr.mxu0 0.0
        %842 = vmatpush1.msra.mxu0 0.0
        %843 = vmatprep.subr.mxu0 0.0
        %844 = vmatpush1.msra.mxu0 0.0
        %845 = vmatprep.subr.mxu0 0.0
        %846 = vmatpush1.msra.mxu0 0.0
        %847 = vmatprep.subr.mxu0 0.0
        %848 = vmatpush1.msra.mxu0 0.0
        %849 = vmatprep.subr.mxu0 0.0
        %850 = vmatpush1.msra.mxu0 0.0
        %851 = vmatprep.subr.mxu0 0.0
        %852 = vmatpush1.msra.mxu0 0.0
        %853 = vmatprep.subr.mxu0 0.0
        %854 = vmatpush1.msra.mxu0 0.0
        %855 = vmatprep.subr.mxu0 0.0
        %856 = vmatpush1.msra.mxu0 0.0
        %857 = vmatprep.subr.mxu0 0.0
        %858 = vmatpush1.msra.mxu0 0.0
        %859 = vmatprep.subr.mxu0 0.0
        %860 = vmatpush1.msra.mxu0 0.0
        %861 = vmatprep.subr.mxu0 0.0
        %862 = vmatpush1.msra.mxu0 0.0
        %863 = vmatprep.mubr.f32.mxu0 0.0
        %864 = vmatmul.mubr.f32.gmra.mrb[0].mxu0 %v644
        %v865 = vpop.f32.mrb[0].mxu0
        %v866 = vadd.f32 0.0, %v865
        %v867 = vpop.f32.mrb[0].mxu0
        %868 = vmatprep.mubr.f32.mxu0 0.0
        %869 = vmatmul.mubr.f32.gmra.mrb[0].mxu0 %v647
        %v870 = vpop.f32.mrb[0].mxu0
        %v871 = vadd.f32 0.0, %v870
        %v872 = vpop.f32.mrb[0].mxu0
        %873 = vdwg.mxu0
        %874 = vmatprep.subr.mxu0 0.0
        %875 = vmatpush1.msra.mxu0 %v639
        %876 = vmatprep.subr.mxu0 0.0
        %877 = vmatpush1.msra.mxu0 %v640
        %878 = vmatprep.subr.mxu0 0.0
        %879 = vmatpush1.msra.mxu0 %v641
        %880 = vmatprep.subr.mxu0 0.0
        %881 = vmatpush1.msra.mxu0 %v642
        %882 = vmatprep.subr.mxu0 0.0
        %883 = vmatpush1.msra.mxu0 0.0
        %884 = vmatprep.subr.mxu0 0.0
        %885 = vmatpush1.msra.mxu0 0.0
        %886 = vmatprep.subr.mxu0 0.0
        %887 = vmatpush1.msra.mxu0 0.0
        %888 = vmatprep.subr.mxu0 0.0
        %889 = vmatpush1.msra.mxu0 0.0
        %890 = vmatprep.subr.mxu0 0.0
        %891 = vmatpush1.msra.mxu0 0.0
        %892 = vmatprep.subr.mxu0 0.0
        %893 = vmatpush1.msra.mxu0 0.0
        %894 = vmatprep.subr.mxu0 0.0
        %895 = vmatpush1.msra.mxu0 0.0
        %896 = vmatprep.subr.mxu0 0.0
        %897 = vmatpush1.msra.mxu0 0.0
        %898 = vmatprep.subr.mxu0 0.0
        %899 = vmatpush1.msra.mxu0 0.0
        %900 = vmatprep.subr.mxu0 0.0
        %901 = vmatpush1.msra.mxu0 0.0
        %902 = vmatprep.subr.mxu0 0.0
        %903 = vmatpush1.msra.mxu0 0.0
        %904 = vmatprep.subr.mxu0 0.0
        %905 = vmatpush1.msra.mxu0 0.0
        %906 = vmatprep.subr.mxu0 0.0
        %907 = vmatpush1.msra.mxu0 0.0
        %908 = vmatprep.subr.mxu0 0.0
        %909 = vmatpush1.msra.mxu0 0.0
        %910 = vmatprep.subr.mxu0 0.0
        %911 = vmatpush1.msra.mxu0 0.0
        %912 = vmatprep.subr.mxu0 0.0
        %913 = vmatpush1.msra.mxu0 0.0
        %914 = vmatprep.subr.mxu0 0.0
        %915 = vmatpush1.msra.mxu0 0.0
        %916 = vmatprep.subr.mxu0 0.0
        %917 = vmatpush1.msra.mxu0 0.0
        %918 = vmatprep.subr.mxu0 0.0
        %919 = vmatpush1.msra.mxu0 0.0
        %920 = vmatprep.subr.mxu0 0.0
        %921 = vmatpush1.msra.mxu0 0.0
        %922 = vmatprep.subr.mxu0 0.0
        %923 = vmatpush1.msra.mxu0 0.0
        %924 = vmatprep.subr.mxu0 0.0
        %925 = vmatpush1.msra.mxu0 0.0
        %926 = vmatprep.subr.mxu0 0.0
        %927 = vmatpush1.msra.mxu0 0.0
        %928 = vmatprep.subr.mxu0 0.0
        %929 = vmatpush1.msra.mxu0 0.0
        %930 = vmatprep.subr.mxu0 0.0
        %931 = vmatpush1.msra.mxu0 0.0
        %932 = vmatprep.subr.mxu0 0.0
        %933 = vmatpush1.msra.mxu0 0.0
        %934 = vmatprep.subr.mxu0 0.0
        %935 = vmatpush1.msra.mxu0 0.0
        %936 = vmatprep.subr.mxu0 0.0
        %937 = vmatpush1.msra.mxu0 0.0
        %938 = vmatprep.mubr.f32.mxu0 0.0
        %939 = vmatmul.mubr.f32.gmra.mrb[0].mxu0 %v644
        %v940 = vpop.f32.mrb[0].mxu0
        %v941 = vadd.f32 0.0, %v940
        %v942 = vpop.f32.mrb[0].mxu0
        %943 = vmatprep.mubr.f32.mxu0 0.0
        %944 = vmatmul.mubr.f32.gmra.mrb[0].mxu0 %v647
        %v945 = vpop.f32.mrb[0].mxu0
        %v946 = vadd.f32 0.0, %v945
        %v947 = vpop.f32.mrb[0].mxu0
        %948 = vdwg.mxu0
        %v949 = vld [vmem:[%s540] sm:$0xff]
        %v950 = vld [vmem:[%s540 + $0x8] sm:$0xff]
        %v951 = vld [vmem:[%s540 + $0x10] sm:$0xff]
        %v952 = vld [vmem:[%s540 + $0x18] sm:$0xff]
        %v953 = vld [vmem:[%s540 + $0x20] sm:$0xff]
        %v954 = vld [vmem:[%s540 + $0x28] sm:$0xff]
        %v955 = vld [vmem:[%s540 + $0x30] sm:$0xff]
        %v956 = vld [vmem:[%s540 + $0x38] sm:$0xff]
        %v957 = vld [vmem:[%s540 + $0x40] sm:$0xff]
        %v958 = vld [vmem:[%s540 + $0x48] sm:$0xff]
        %v959 = vld [vmem:[%s540 + $0x50] sm:$0xff]
        %v960 = vld [vmem:[%s540 + $0x58] sm:$0xff]
        %v961 = vld [vmem:[%s540 + $0x60] sm:$0xff]
        %v962 = vld [vmem:[%s540 + $0x68] sm:$0xff]
        %v963 = vld [vmem:[%s540 + $0x70] sm:$0xff]
        %v964 = vld [vmem:[%s540 + $0x78] sm:$0xff]
        %965 = vmatprep.subr.mxu0 0.0
        %966 = vmatpush1.msra.mxu0 %v949
        %967 = vmatprep.subr.mxu0 0.0
        %968 = vmatpush1.msra.mxu0 %v950
        %969 = vmatprep.subr.mxu0 0.0
        %970 = vmatpush1.msra.mxu0 %v951
        %971 = vmatprep.subr.mxu0 0.0
        %972 = vmatpush1.msra.mxu0 %v952
        %973 = vmatprep.subr.mxu0 0.0
        %974 = vmatpush1.msra.mxu0 0.0
        %975 = vmatprep.subr.mxu0 0.0
        %976 = vmatpush1.msra.mxu0 0.0
        %977 = vmatprep.subr.mxu0 0.0
        %978 = vmatpush1.msra.mxu0 0.0
        %979 = vmatprep.subr.mxu0 0.0
        %980 = vmatpush1.msra.mxu0 0.0
        %981 = vmatprep.subr.mxu0 0.0
        %982 = vmatpush1.msra.mxu0 0.0
        %983 = vmatprep.subr.mxu0 0.0
        %984 = vmatpush1.msra.mxu0 0.0
        %985 = vmatprep.subr.mxu0 0.0
        %986 = vmatpush1.msra.mxu0 0.0
        %987 = vmatprep.subr.mxu0 0.0
        %988 = vmatpush1.msra.mxu0 0.0
        %989 = vmatprep.subr.mxu0 0.0
        %990 = vmatpush1.msra.mxu0 0.0
        %991 = vmatprep.subr.mxu0 0.0
        %992 = vmatpush1.msra.mxu0 0.0
        %993 = vmatprep.subr.mxu0 0.0
        %994 = vmatpush1.msra.mxu0 0.0
        %995 = vmatprep.subr.mxu0 0.0
        %996 = vmatpush1.msra.mxu0 0.0
        %997 = vmatprep.subr.mxu0 0.0
        %998 = vmatpush1.msra.mxu0 0.0
        %999 = vmatprep.subr.mxu0 0.0
        %1000 = vmatpush1.msra.mxu0 0.0
        %1001 = vmatprep.subr.mxu0 0.0
        %1002 = vmatpush1.msra.mxu0 0.0
        %1003 = vmatprep.subr.mxu0 0.0
        %1004 = vmatpush1.msra.mxu0 0.0
        %1005 = vmatprep.subr.mxu0 0.0
        %1006 = vmatpush1.msra.mxu0 0.0
        %1007 = vmatprep.subr.mxu0 0.0
        %1008 = vmatpush1.msra.mxu0 0.0
        %1009 = vmatprep.subr.mxu0 0.0
        %1010 = vmatpush1.msra.mxu0 0.0
        %1011 = vmatprep.subr.mxu0 0.0
        %1012 = vmatpush1.msra.mxu0 0.0
        %1013 = vmatprep.subr.mxu0 0.0
        %1014 = vmatpush1.msra.mxu0 0.0
        %1015 = vmatprep.subr.mxu0 0.0
        %1016 = vmatpush1.msra.mxu0 0.0
        %1017 = vmatprep.subr.mxu0 0.0
        %1018 = vmatpush1.msra.mxu0 0.0
        %1019 = vmatprep.subr.mxu0 0.0
        %1020 = vmatpush1.msra.mxu0 0.0
        %1021 = vmatprep.subr.mxu0 0.0
        %1022 = vmatpush1.msra.mxu0 0.0
        %1023 = vmatprep.subr.mxu0 0.0
        %1024 = vmatpush1.msra.mxu0 0.0
        %1025 = vmatprep.subr.mxu0 0.0
        %1026 = vmatpush1.msra.mxu0 0.0
        %1027 = vmatprep.subr.mxu0 0.0
        %1028 = vmatpush1.msra.mxu0 0.0
        %1029 = vmatprep.mubr.f32.mxu0 0.0
        %1030 = vmatmul.mubr.f32.gmra.mrb[0].mxu0 %v644
        %v1031 = vpop.f32.mrb[0].mxu0
        %v1032 = vadd.f32 0.0, %v1031
        %v1033 = vpop.f32.mrb[0].mxu0
        %1034 = vmatprep.mubr.f32.mxu0 0.0
        %1035 = vmatmul.mubr.f32.gmra.mrb[0].mxu0 %v647
        %v1036 = vpop.f32.mrb[0].mxu0
        %v1037 = vadd.f32 0.0, %v1036
        %v1038 = vpop.f32.mrb[0].mxu0
        %1039 = vdwg.mxu0
        %1040 = vmatprep.subr.mxu0 0.0
        %1041 = vmatpush1.msra.mxu0 %v953
        %1042 = vmatprep.subr.mxu0 0.0
        %1043 = vmatpush1.msra.mxu0 %v954
        %1044 = vmatprep.subr.mxu0 0.0
        %1045 = vmatpush1.msra.mxu0 %v955
        %1046 = vmatprep.subr.mxu0 0.0
        %1047 = vmatpush1.msra.mxu0 %v956
        %1048 = vmatprep.subr.mxu0 0.0
        %1049 = vmatpush1.msra.mxu0 0.0
        %1050 = vmatprep.subr.mxu0 0.0
        %1051 = vmatpush1.msra.mxu0 0.0
        %1052 = vmatprep.subr.mxu0 0.0
        %1053 = vmatpush1.msra.mxu0 0.0
        %1054 = vmatprep.subr.mxu0 0.0
        %1055 = vmatpush1.msra.mxu0 0.0
        %1056 = vmatprep.subr.mxu0 0.0
        %1057 = vmatpush1.msra.mxu0 0.0
        %1058 = vmatprep.subr.mxu0 0.0
        %1059 = vmatpush1.msra.mxu0 0.0
        %1060 = vmatprep.subr.mxu0 0.0
        %1061 = vmatpush1.msra.mxu0 0.0
        %1062 = vmatprep.subr.mxu0 0.0
        %1063 = vmatpush1.msra.mxu0 0.0
        %1064 = vmatprep.subr.mxu0 0.0
        %1065 = vmatpush1.msra.mxu0 0.0
        %1066 = vmatprep.subr.mxu0 0.0
        %1067 = vmatpush1.msra.mxu0 0.0
        %1068 = vmatprep.subr.mxu0 0.0
        %1069 = vmatpush1.msra.mxu0 0.0
        %1070 = vmatprep.subr.mxu0 0.0
        %1071 = vmatpush1.msra.mxu0 0.0
        %1072 = vmatprep.subr.mxu0 0.0
        %1073 = vmatpush1.msra.mxu0 0.0
        %1074 = vmatprep.subr.mxu0 0.0
        %1075 = vmatpush1.msra.mxu0 0.0
        %1076 = vmatprep.subr.mxu0 0.0
        %1077 = vmatpush1.msra.mxu0 0.0
        %1078 = vmatprep.subr.mxu0 0.0
        %1079 = vmatpush1.msra.mxu0 0.0
        %1080 = vmatprep.subr.mxu0 0.0
        %1081 = vmatpush1.msra.mxu0 0.0
        %1082 = vmatprep.subr.mxu0 0.0
        %1083 = vmatpush1.msra.mxu0 0.0
        %1084 = vmatprep.subr.mxu0 0.0
        %1085 = vmatpush1.msra.mxu0 0.0
        %1086 = vmatprep.subr.mxu0 0.0
        %1087 = vmatpush1.msra.mxu0 0.0
        %1088 = vmatprep.subr.mxu0 0.0
        %1089 = vmatpush1.msra.mxu0 0.0
        %1090 = vmatprep.subr.mxu0 0.0
        %1091 = vmatpush1.msra.mxu0 0.0
        %1092 = vmatprep.subr.mxu0 0.0
        %1093 = vmatpush1.msra.mxu0 0.0
        %1094 = vmatprep.subr.mxu0 0.0
        %1095 = vmatpush1.msra.mxu0 0.0
        %1096 = vmatprep.subr.mxu0 0.0
        %1097 = vmatpush1.msra.mxu0 0.0
        %1098 = vmatprep.subr.mxu0 0.0
        %1099 = vmatpush1.msra.mxu0 0.0
        %1100 = vmatprep.subr.mxu0 0.0
        %1101 = vmatpush1.msra.mxu0 0.0
        %1102 = vmatprep.subr.mxu0 0.0
        %1103 = vmatpush1.msra.mxu0 0.0
        %1104 = vmatprep.mubr.f32.mxu0 0.0
        %1105 = vmatmul.mubr.f32.gmra.mrb[0].mxu0 %v644
        %v1106 = vpop.f32.mrb[0].mxu0
        %v1107 = vadd.f32 0.0, %v1106
        %v1108 = vpop.f32.mrb[0].mxu0
        %1109 = vmatprep.mubr.f32.mxu0 0.0
        %1110 = vmatmul.mubr.f32.gmra.mrb[0].mxu0 %v647
        %v1111 = vpop.f32.mrb[0].mxu0
        %v1112 = vadd.f32 0.0, %v1111
        %v1113 = vpop.f32.mrb[0].mxu0
        %1114 = vdwg.mxu0
        %1115 = vmatprep.subr.mxu0 0.0
        %1116 = vmatpush1.msra.mxu0 %v957
        %1117 = vmatprep.subr.mxu0 0.0
        %1118 = vmatpush1.msra.mxu0 %v958
        %1119 = vmatprep.subr.mxu0 0.0
        %1120 = vmatpush1.msra.mxu0 %v959
        %1121 = vmatprep.subr.mxu0 0.0
        %1122 = vmatpush1.msra.mxu0 %v960
        %1123 = vmatprep.subr.mxu0 0.0
        %1124 = vmatpush1.msra.mxu0 0.0
        %1125 = vmatprep.subr.mxu0 0.0
        %1126 = vmatpush1.msra.mxu0 0.0
        %1127 = vmatprep.subr.mxu0 0.0
        %1128 = vmatpush1.msra.mxu0 0.0
        %1129 = vmatprep.subr.mxu0 0.0
        %1130 = vmatpush1.msra.mxu0 0.0
        %1131 = vmatprep.subr.mxu0 0.0
        %1132 = vmatpush1.msra.mxu0 0.0
        %1133 = vmatprep.subr.mxu0 0.0
        %1134 = vmatpush1.msra.mxu0 0.0
        %1135 = vmatprep.subr.mxu0 0.0
        %1136 = vmatpush1.msra.mxu0 0.0
        %1137 = vmatprep.subr.mxu0 0.0
        %1138 = vmatpush1.msra.mxu0 0.0
        %1139 = vmatprep.subr.mxu0 0.0
        %1140 = vmatpush1.msra.mxu0 0.0
        %1141 = vmatprep.subr.mxu0 0.0
        %1142 = vmatpush1.msra.mxu0 0.0
        %1143 = vmatprep.subr.mxu0 0.0
        %1144 = vmatpush1.msra.mxu0 0.0
        %1145 = vmatprep.subr.mxu0 0.0
        %1146 = vmatpush1.msra.mxu0 0.0
        %1147 = vmatprep.subr.mxu0 0.0
        %1148 = vmatpush1.msra.mxu0 0.0
        %1149 = vmatprep.subr.mxu0 0.0
        %1150 = vmatpush1.msra.mxu0 0.0
        %1151 = vmatprep.subr.mxu0 0.0
        %1152 = vmatpush1.msra.mxu0 0.0
        %1153 = vmatprep.subr.mxu0 0.0
        %1154 = vmatpush1.msra.mxu0 0.0
        %1155 = vmatprep.subr.mxu0 0.0
        %1156 = vmatpush1.msra.mxu0 0.0
        %1157 = vmatprep.subr.mxu0 0.0
        %1158 = vmatpush1.msra.mxu0 0.0
        %1159 = vmatprep.subr.mxu0 0.0
        %1160 = vmatpush1.msra.mxu0 0.0
        %1161 = vmatprep.subr.mxu0 0.0
        %1162 = vmatpush1.msra.mxu0 0.0
        %1163 = vmatprep.subr.mxu0 0.0
        %1164 = vmatpush1.msra.mxu0 0.0
        %1165 = vmatprep.subr.mxu0 0.0
        %1166 = vmatpush1.msra.mxu0 0.0
        %1167 = vmatprep.subr.mxu0 0.0
        %1168 = vmatpush1.msra.mxu0 0.0
        %1169 = vmatprep.subr.mxu0 0.0
        %1170 = vmatpush1.msra.mxu0 0.0
        %1171 = vmatprep.subr.mxu0 0.0
        %1172 = vmatpush1.msra.mxu0 0.0
        %1173 = vmatprep.subr.mxu0 0.0
        %1174 = vmatpush1.msra.mxu0 0.0
        %1175 = vmatprep.subr.mxu0 0.0
        %1176 = vmatpush1.msra.mxu0 0.0
        %1177 = vmatprep.subr.mxu0 0.0
        %1178 = vmatpush1.msra.mxu0 0.0
        %1179 = vmatprep.mubr.f32.mxu0 0.0
        %1180 = vmatmul.mubr.f32.gmra.mrb[0].mxu0 %v644
        %v1181 = vpop.f32.mrb[0].mxu0
        %v1182 = vadd.f32 0.0, %v1181
        %v1183 = vpop.f32.mrb[0].mxu0
        %1184 = vmatprep.mubr.f32.mxu0 0.0
        %1185 = vmatmul.mubr.f32.gmra.mrb[0].mxu0 %v647
        %v1186 = vpop.f32.mrb[0].mxu0
        %v1187 = vadd.f32 0.0, %v1186
        %v1188 = vpop.f32.mrb[0].mxu0
        %1189 = vdwg.mxu0
        %1190 = vmatprep.subr.mxu0 0.0
        %1191 = vmatpush1.msra.mxu0 %v961
        %1192 = vmatprep.subr.mxu0 0.0
        %1193 = vmatpush1.msra.mxu0 %v962
        %1194 = vmatprep.subr.mxu0 0.0
        %1195 = vmatpush1.msra.mxu0 %v963
        %1196 = vmatprep.subr.mxu0 0.0
        %1197 = vmatpush1.msra.mxu0 %v964
        %1198 = vmatprep.subr.mxu0 0.0
        %1199 = vmatpush1.msra.mxu0 0.0
        %1200 = vmatprep.subr.mxu0 0.0
        %1201 = vmatpush1.msra.mxu0 0.0
        %1202 = vmatprep.subr.mxu0 0.0
        %1203 = vmatpush1.msra.mxu0 0.0
        %1204 = vmatprep.subr.mxu0 0.0
        %1205 = vmatpush1.msra.mxu0 0.0
        %1206 = vmatprep.subr.mxu0 0.0
        %1207 = vmatpush1.msra.mxu0 0.0
        %1208 = vmatprep.subr.mxu0 0.0
        %1209 = vmatpush1.msra.mxu0 0.0
        %1210 = vmatprep.subr.mxu0 0.0
        %1211 = vmatpush1.msra.mxu0 0.0
        %1212 = vmatprep.subr.mxu0 0.0
        %1213 = vmatpush1.msra.mxu0 0.0
        %1214 = vmatprep.subr.mxu0 0.0
        %1215 = vmatpush1.msra.mxu0 0.0
        %1216 = vmatprep.subr.mxu0 0.0
        %1217 = vmatpush1.msra.mxu0 0.0
        %1218 = vmatprep.subr.mxu0 0.0
        %1219 = vmatpush1.msra.mxu0 0.0
        %1220 = vmatprep.subr.mxu0 0.0
        %1221 = vmatpush1.msra.mxu0 0.0
        %1222 = vmatprep.subr.mxu0 0.0
        %1223 = vmatpush1.msra.mxu0 0.0
        %1224 = vmatprep.subr.mxu0 0.0
        %1225 = vmatpush1.msra.mxu0 0.0
        %1226 = vmatprep.subr.mxu0 0.0
        %1227 = vmatpush1.msra.mxu0 0.0
        %1228 = vmatprep.subr.mxu0 0.0
        %1229 = vmatpush1.msra.mxu0 0.0
        %1230 = vmatprep.subr.mxu0 0.0
        %1231 = vmatpush1.msra.mxu0 0.0
        %1232 = vmatprep.subr.mxu0 0.0
        %1233 = vmatpush1.msra.mxu0 0.0
        %1234 = vmatprep.subr.mxu0 0.0
        %1235 = vmatpush1.msra.mxu0 0.0
        %1236 = vmatprep.subr.mxu0 0.0
        %1237 = vmatpush1.msra.mxu0 0.0
        %1238 = vmatprep.subr.mxu0 0.0
        %1239 = vmatpush1.msra.mxu0 0.0
        %1240 = vmatprep.subr.mxu0 0.0
        %1241 = vmatpush1.msra.mxu0 0.0
        %1242 = vmatprep.subr.mxu0 0.0
        %1243 = vmatpush1.msra.mxu0 0.0
        %1244 = vmatprep.subr.mxu0 0.0
        %1245 = vmatpush1.msra.mxu0 0.0
        %1246 = vmatprep.subr.mxu0 0.0
        %1247 = vmatpush1.msra.mxu0 0.0
        %1248 = vmatprep.subr.mxu0 0.0
        %1249 = vmatpush1.msra.mxu0 0.0
        %1250 = vmatprep.subr.mxu0 0.0
        %1251 = vmatpush1.msra.mxu0 0.0
        %1252 = vmatprep.subr.mxu0 0.0
        %1253 = vmatpush1.msra.mxu0 0.0
        %1254 = vmatprep.mubr.f32.mxu0 0.0
        %1255 = vmatmul.mubr.f32.gmra.mrb[0].mxu0 %v644
        %v1256 = vpop.f32.mrb[0].mxu0
        %v1257 = vadd.f32 0.0, %v1256
        %v1258 = vpop.f32.mrb[0].mxu0
        %1259 = vmatprep.mubr.f32.mxu0 0.0
        %1260 = vmatmul.mubr.f32.gmra.mrb[0].mxu0 %v647
        %v1261 = vpop.f32.mrb[0].mxu0
        %v1262 = vadd.f32 0.0, %v1261
        %v1263 = vpop.f32.mrb[0].mxu0
        %1264 = vdwg.mxu0
        %v1265 = vld [vmem:[%s545] sm:$0xff]
        %v1266 = vld [vmem:[%s545 + $0x8] sm:$0xff]
        %v1267 = vld [vmem:[%s545 + $0x10] sm:$0xff]
        %v1268 = vld [vmem:[%s545 + $0x18] sm:$0xff]
        %v1269 = vld [vmem:[%s545 + $0x20] sm:$0xff]
        %v1270 = vld [vmem:[%s545 + $0x28] sm:$0xff]
        %v1271 = vld [vmem:[%s545 + $0x30] sm:$0xff]
        %v1272 = vld [vmem:[%s545 + $0x38] sm:$0xff]
        %v1273 = vld [vmem:[%s545 + $0x40] sm:$0xff]
        %v1274 = vld [vmem:[%s545 + $0x48] sm:$0xff]
        %v1275 = vld [vmem:[%s545 + $0x50] sm:$0xff]
        %v1276 = vld [vmem:[%s545 + $0x58] sm:$0xff]
        %v1277 = vld [vmem:[%s545 + $0x60] sm:$0xff]
        %v1278 = vld [vmem:[%s545 + $0x68] sm:$0xff]
        %v1279 = vld [vmem:[%s545 + $0x70] sm:$0xff]
        %v1280 = vld [vmem:[%s545 + $0x78] sm:$0xff]
        %1281 = vmatprep.subr.mxu0 0.0
        %1282 = vmatpush1.msra.mxu0 %v1265
        %1283 = vmatprep.subr.mxu0 0.0
        %1284 = vmatpush1.msra.mxu0 %v1266
        %1285 = vmatprep.subr.mxu0 0.0
        %1286 = vmatpush1.msra.mxu0 %v1267
        %1287 = vmatprep.subr.mxu0 0.0
        %1288 = vmatpush1.msra.mxu0 %v1268
        %1289 = vmatprep.subr.mxu0 0.0
        %1290 = vmatpush1.msra.mxu0 0.0
        %1291 = vmatprep.subr.mxu0 0.0
        %1292 = vmatpush1.msra.mxu0 0.0
        %1293 = vmatprep.subr.mxu0 0.0
        %1294 = vmatpush1.msra.mxu0 0.0
        %1295 = vmatprep.subr.mxu0 0.0
        %1296 = vmatpush1.msra.mxu0 0.0
        %1297 = vmatprep.subr.mxu0 0.0
        %1298 = vmatpush1.msra.mxu0 0.0
        %1299 = vmatprep.subr.mxu0 0.0
        %1300 = vmatpush1.msra.mxu0 0.0
        %1301 = vmatprep.subr.mxu0 0.0
        %1302 = vmatpush1.msra.mxu0 0.0
        %1303 = vmatprep.subr.mxu0 0.0
        %1304 = vmatpush1.msra.mxu0 0.0
        %1305 = vmatprep.subr.mxu0 0.0
        %1306 = vmatpush1.msra.mxu0 0.0
        %1307 = vmatprep.subr.mxu0 0.0
        %1308 = vmatpush1.msra.mxu0 0.0
        %1309 = vmatprep.subr.mxu0 0.0
        %1310 = vmatpush1.msra.mxu0 0.0
        %1311 = vmatprep.subr.mxu0 0.0
        %1312 = vmatpush1.msra.mxu0 0.0
        %1313 = vmatprep.subr.mxu0 0.0
        %1314 = vmatpush1.msra.mxu0 0.0
        %1315 = vmatprep.subr.mxu0 0.0
        %1316 = vmatpush1.msra.mxu0 0.0
        %1317 = vmatprep.subr.mxu0 0.0
        %1318 = vmatpush1.msra.mxu0 0.0
        %1319 = vmatprep.subr.mxu0 0.0
        %1320 = vmatpush1.msra.mxu0 0.0
        %1321 = vmatprep.subr.mxu0 0.0
        %1322 = vmatpush1.msra.mxu0 0.0
        %1323 = vmatprep.subr.mxu0 0.0
        %1324 = vmatpush1.msra.mxu0 0.0
        %1325 = vmatprep.subr.mxu0 0.0
        %1326 = vmatpush1.msra.mxu0 0.0
        %1327 = vmatprep.subr.mxu0 0.0
        %1328 = vmatpush1.msra.mxu0 0.0
        %1329 = vmatprep.subr.mxu0 0.0
        %1330 = vmatpush1.msra.mxu0 0.0
        %1331 = vmatprep.subr.mxu0 0.0
        %1332 = vmatpush1.msra.mxu0 0.0
        %1333 = vmatprep.subr.mxu0 0.0
        %1334 = vmatpush1.msra.mxu0 0.0
        %1335 = vmatprep.subr.mxu0 0.0
        %1336 = vmatpush1.msra.mxu0 0.0
        %1337 = vmatprep.subr.mxu0 0.0
        %1338 = vmatpush1.msra.mxu0 0.0
        %1339 = vmatprep.subr.mxu0 0.0
        %1340 = vmatpush1.msra.mxu0 0.0
        %1341 = vmatprep.subr.mxu0 0.0
        %1342 = vmatpush1.msra.mxu0 0.0
        %1343 = vmatprep.subr.mxu0 0.0
        %1344 = vmatpush1.msra.mxu0 0.0
        %1345 = vmatprep.mubr.f32.mxu0 0.0
        %1346 = vmatmul.mubr.f32.gmra.mrb[0].mxu0 %v644
        %v1347 = vpop.f32.mrb[0].mxu0
        %v1348 = vadd.f32 0.0, %v1347
        %v1349 = vpop.f32.mrb[0].mxu0
        %1350 = vmatprep.mubr.f32.mxu0 0.0
        %1351 = vmatmul.mubr.f32.gmra.mrb[0].mxu0 %v647
        %v1352 = vpop.f32.mrb[0].mxu0
        %v1353 = vadd.f32 0.0, %v1352
        %v1354 = vpop.f32.mrb[0].mxu0
        %1355 = vdwg.mxu0
        %1356 = vmatprep.subr.mxu0 0.0
        %1357 = vmatpush1.msra.mxu0 %v1269
        %1358 = vmatprep.subr.mxu0 0.0
        %1359 = vmatpush1.msra.mxu0 %v1270
        %1360 = vmatprep.subr.mxu0 0.0
        %1361 = vmatpush1.msra.mxu0 %v1271
        %1362 = vmatprep.subr.mxu0 0.0
        %1363 = vmatpush1.msra.mxu0 %v1272
        %1364 = vmatprep.subr.mxu0 0.0
        %1365 = vmatpush1.msra.mxu0 0.0
        %1366 = vmatprep.subr.mxu0 0.0
        %1367 = vmatpush1.msra.mxu0 0.0
        %1368 = vmatprep.subr.mxu0 0.0
        %1369 = vmatpush1.msra.mxu0 0.0
        %1370 = vmatprep.subr.mxu0 0.0
        %1371 = vmatpush1.msra.mxu0 0.0
        %1372 = vmatprep.subr.mxu0 0.0
        %1373 = vmatpush1.msra.mxu0 0.0
        %1374 = vmatprep.subr.mxu0 0.0
        %1375 = vmatpush1.msra.mxu0 0.0
        %1376 = vmatprep.subr.mxu0 0.0
        %1377 = vmatpush1.msra.mxu0 0.0
        %1378 = vmatprep.subr.mxu0 0.0
        %1379 = vmatpush1.msra.mxu0 0.0
        %1380 = vmatprep.subr.mxu0 0.0
        %1381 = vmatpush1.msra.mxu0 0.0
        %1382 = vmatprep.subr.mxu0 0.0
        %1383 = vmatpush1.msra.mxu0 0.0
        %1384 = vmatprep.subr.mxu0 0.0
        %1385 = vmatpush1.msra.mxu0 0.0
        %1386 = vmatprep.subr.mxu0 0.0
        %1387 = vmatpush1.msra.mxu0 0.0
        %1388 = vmatprep.subr.mxu0 0.0
        %1389 = vmatpush1.msra.mxu0 0.0
        %1390 = vmatprep.subr.mxu0 0.0
        %1391 = vmatpush1.msra.mxu0 0.0
        %1392 = vmatprep.subr.mxu0 0.0
        %1393 = vmatpush1.msra.mxu0 0.0
        %1394 = vmatprep.subr.mxu0 0.0
        %1395 = vmatpush1.msra.mxu0 0.0
        %1396 = vmatprep.subr.mxu0 0.0
        %1397 = vmatpush1.msra.mxu0 0.0
        %1398 = vmatprep.subr.mxu0 0.0
        %1399 = vmatpush1.msra.mxu0 0.0
        %1400 = vmatprep.subr.mxu0 0.0
        %1401 = vmatpush1.msra.mxu0 0.0
        %1402 = vmatprep.subr.mxu0 0.0
        %1403 = vmatpush1.msra.mxu0 0.0
        %1404 = vmatprep.subr.mxu0 0.0
        %1405 = vmatpush1.msra.mxu0 0.0
        %1406 = vmatprep.subr.mxu0 0.0
        %1407 = vmatpush1.msra.mxu0 0.0
        %1408 = vmatprep.subr.mxu0 0.0
        %1409 = vmatpush1.msra.mxu0 0.0
        %1410 = vmatprep.subr.mxu0 0.0
        %1411 = vmatpush1.msra.mxu0 0.0
        %1412 = vmatprep.subr.mxu0 0.0
        %1413 = vmatpush1.msra.mxu0 0.0
        %1414 = vmatprep.subr.mxu0 0.0
        %1415 = vmatpush1.msra.mxu0 0.0
        %1416 = vmatprep.subr.mxu0 0.0
        %1417 = vmatpush1.msra.mxu0 0.0
        %1418 = vmatprep.subr.mxu0 0.0
        %1419 = vmatpush1.msra.mxu0 0.0
        %1420 = vmatprep.mubr.f32.mxu0 0.0
        %1421 = vmatmul.mubr.f32.gmra.mrb[0].mxu0 %v644
        %v1422 = vpop.f32.mrb[0].mxu0
        %v1423 = vadd.f32 0.0, %v1422
        %v1424 = vpop.f32.mrb[0].mxu0
        %1425 = vmatprep.mubr.f32.mxu0 0.0
        %1426 = vmatmul.mubr.f32.gmra.mrb[0].mxu0 %v647
        %v1427 = vpop.f32.mrb[0].mxu0
        %v1428 = vadd.f32 0.0, %v1427
        %v1429 = vpop.f32.mrb[0].mxu0
        %1430 = vdwg.mxu0
        %1431 = vmatprep.subr.mxu0 0.0
        %1432 = vmatpush1.msra.mxu0 %v1273
        %1433 = vmatprep.subr.mxu0 0.0
        %1434 = vmatpush1.msra.mxu0 %v1274
        %1435 = vmatprep.subr.mxu0 0.0
        %1436 = vmatpush1.msra.mxu0 %v1275
        %1437 = vmatprep.subr.mxu0 0.0
        %1438 = vmatpush1.msra.mxu0 %v1276
        %1439 = vmatprep.subr.mxu0 0.0
        %1440 = vmatpush1.msra.mxu0 0.0
        %1441 = vmatprep.subr.mxu0 0.0
        %1442 = vmatpush1.msra.mxu0 0.0
        %1443 = vmatprep.subr.mxu0 0.0
        %1444 = vmatpush1.msra.mxu0 0.0
        %1445 = vmatprep.subr.mxu0 0.0
        %1446 = vmatpush1.msra.mxu0 0.0
        %1447 = vmatprep.subr.mxu0 0.0
        %1448 = vmatpush1.msra.mxu0 0.0
        %1449 = vmatprep.subr.mxu0 0.0
        %1450 = vmatpush1.msra.mxu0 0.0
        %1451 = vmatprep.subr.mxu0 0.0
        %1452 = vmatpush1.msra.mxu0 0.0
        %1453 = vmatprep.subr.mxu0 0.0
        %1454 = vmatpush1.msra.mxu0 0.0
        %1455 = vmatprep.subr.mxu0 0.0
        %1456 = vmatpush1.msra.mxu0 0.0
        %1457 = vmatprep.subr.mxu0 0.0
        %1458 = vmatpush1.msra.mxu0 0.0
        %1459 = vmatprep.subr.mxu0 0.0
        %1460 = vmatpush1.msra.mxu0 0.0
        %1461 = vmatprep.subr.mxu0 0.0
        %1462 = vmatpush1.msra.mxu0 0.0
        %1463 = vmatprep.subr.mxu0 0.0
        %1464 = vmatpush1.msra.mxu0 0.0
        %1465 = vmatprep.subr.mxu0 0.0
        %1466 = vmatpush1.msra.mxu0 0.0
        %1467 = vmatprep.subr.mxu0 0.0
        %1468 = vmatpush1.msra.mxu0 0.0
        %1469 = vmatprep.subr.mxu0 0.0
        %1470 = vmatpush1.msra.mxu0 0.0
        %1471 = vmatprep.subr.mxu0 0.0
        %1472 = vmatpush1.msra.mxu0 0.0
        %1473 = vmatprep.subr.mxu0 0.0
        %1474 = vmatpush1.msra.mxu0 0.0
        %1475 = vmatprep.subr.mxu0 0.0
        %1476 = vmatpush1.msra.mxu0 0.0
        %1477 = vmatprep.subr.mxu0 0.0
        %1478 = vmatpush1.msra.mxu0 0.0
        %1479 = vmatprep.subr.mxu0 0.0
        %1480 = vmatpush1.msra.mxu0 0.0
        %1481 = vmatprep.subr.mxu0 0.0
        %1482 = vmatpush1.msra.mxu0 0.0
        %1483 = vmatprep.subr.mxu0 0.0
        %1484 = vmatpush1.msra.mxu0 0.0
        %1485 = vmatprep.subr.mxu0 0.0
        %1486 = vmatpush1.msra.mxu0 0.0
        %1487 = vmatprep.subr.mxu0 0.0
        %1488 = vmatpush1.msra.mxu0 0.0
        %1489 = vmatprep.subr.mxu0 0.0
        %1490 = vmatpush1.msra.mxu0 0.0
        %1491 = vmatprep.subr.mxu0 0.0
        %1492 = vmatpush1.msra.mxu0 0.0
        %1493 = vmatprep.subr.mxu0 0.0
        %1494 = vmatpush1.msra.mxu0 0.0
        %1495 = vmatprep.mubr.f32.mxu0 0.0
        %1496 = vmatmul.mubr.f32.gmra.mrb[0].mxu0 %v644
        %v1497 = vpop.f32.mrb[0].mxu0
        %v1498 = vadd.f32 0.0, %v1497
        %v1499 = vpop.f32.mrb[0].mxu0
        %1500 = vmatprep.mubr.f32.mxu0 0.0
        %1501 = vmatmul.mubr.f32.gmra.mrb[0].mxu0 %v647
        %v1502 = vpop.f32.mrb[0].mxu0
        %v1503 = vadd.f32 0.0, %v1502
        %v1504 = vpop.f32.mrb[0].mxu0
        %1505 = vdwg.mxu0
        %1506 = vmatprep.subr.mxu0 0.0
        %1507 = vmatpush1.msra.mxu0 %v1277
        %1508 = vmatprep.subr.mxu0 0.0
        %1509 = vmatpush1.msra.mxu0 %v1278
        %1510 = vmatprep.subr.mxu0 0.0
        %1511 = vmatpush1.msra.mxu0 %v1279
        %1512 = vmatprep.subr.mxu0 0.0
        %1513 = vmatpush1.msra.mxu0 %v1280
        %1514 = vmatprep.subr.mxu0 0.0
        %1515 = vmatpush1.msra.mxu0 0.0
        %1516 = vmatprep.subr.mxu0 0.0
        %1517 = vmatpush1.msra.mxu0 0.0
        %1518 = vmatprep.subr.mxu0 0.0
        %1519 = vmatpush1.msra.mxu0 0.0
        %1520 = vmatprep.subr.mxu0 0.0
        %1521 = vmatpush1.msra.mxu0 0.0
        %1522 = vmatprep.subr.mxu0 0.0
        %1523 = vmatpush1.msra.mxu0 0.0
        %1524 = vmatprep.subr.mxu0 0.0
        %1525 = vmatpush1.msra.mxu0 0.0
        %1526 = vmatprep.subr.mxu0 0.0
        %1527 = vmatpush1.msra.mxu0 0.0
        %1528 = vmatprep.subr.mxu0 0.0
        %1529 = vmatpush1.msra.mxu0 0.0
        %1530 = vmatprep.subr.mxu0 0.0
        %1531 = vmatpush1.msra.mxu0 0.0
        %1532 = vmatprep.subr.mxu0 0.0
        %1533 = vmatpush1.msra.mxu0 0.0
        %1534 = vmatprep.subr.mxu0 0.0
        %1535 = vmatpush1.msra.mxu0 0.0
        %1536 = vmatprep.subr.mxu0 0.0
        %1537 = vmatpush1.msra.mxu0 0.0
        %1538 = vmatprep.subr.mxu0 0.0
        %1539 = vmatpush1.msra.mxu0 0.0
        %1540 = vmatprep.subr.mxu0 0.0
        %1541 = vmatpush1.msra.mxu0 0.0
        %1542 = vmatprep.subr.mxu0 0.0
        %1543 = vmatpush1.msra.mxu0 0.0
        %1544 = vmatprep.subr.mxu0 0.0
        %1545 = vmatpush1.msra.mxu0 0.0
        %1546 = vmatprep.subr.mxu0 0.0
        %1547 = vmatpush1.msra.mxu0 0.0
        %1548 = vmatprep.subr.mxu0 0.0
        %1549 = vmatpush1.msra.mxu0 0.0
        %1550 = vmatprep.subr.mxu0 0.0
        %1551 = vmatpush1.msra.mxu0 0.0
        %1552 = vmatprep.subr.mxu0 0.0
        %1553 = vmatpush1.msra.mxu0 0.0
        %1554 = vmatprep.subr.mxu0 0.0
        %1555 = vmatpush1.msra.mxu0 0.0
        %1556 = vmatprep.subr.mxu0 0.0
        %1557 = vmatpush1.msra.mxu0 0.0
        %1558 = vmatprep.subr.mxu0 0.0
        %1559 = vmatpush1.msra.mxu0 0.0
        %1560 = vmatprep.subr.mxu0 0.0
        %1561 = vmatpush1.msra.mxu0 0.0
        %1562 = vmatprep.subr.mxu0 0.0
        %1563 = vmatpush1.msra.mxu0 0.0
        %1564 = vmatprep.subr.mxu0 0.0
        %1565 = vmatpush1.msra.mxu0 0.0
        %1566 = vmatprep.subr.mxu0 0.0
        %1567 = vmatpush1.msra.mxu0 0.0
        %1568 = vmatprep.subr.mxu0 0.0
        %1569 = vmatpush1.msra.mxu0 0.0
        %1570 = vmatprep.mubr.f32.mxu0 0.0
        %1571 = vmatmul.mubr.f32.gmra.mrb[0].mxu0 %v644
        %v1572 = vpop.f32.mrb[0].mxu0
        %v1573 = vadd.f32 0.0, %v1572
        %v1574 = vpop.f32.mrb[0].mxu0
        %1575 = vmatprep.mubr.f32.mxu0 0.0
        %1576 = vmatmul.mubr.f32.gmra.mrb[0].mxu0 %v647
        %v1577 = vpop.f32.mrb[0].mxu0
        %v1578 = vadd.f32 0.0, %v1577
        %v1579 = vpop.f32.mrb[0].mxu0
        %1580 = vdwg.mxu0
        %vm1581 = vcmask 64512
        %v1583 = vsel %vm1581, %v716, 0
        %v1586 = vsel %vm1581, %v1032, 0
        %1588 = vmatprep.subr.mxu0 0.0
        %1589 = vmatpush1.xpose.msra.mxu0 %v1586
        %1590 = vmatprep.subr.mxu0 0.0
        %1591 = vmatpush1.xpose.msra.mxu0 0.0
        %1592 = vmatprep.subr.mxu0 0.0
        %1593 = vmatpush1.xpose.msra.mxu0 0.0
        %1594 = vmatprep.subr.mxu0 0.0
        %1595 = vmatpush1.xpose.msra.mxu0 0.0
        %1596 = vmatprep.subr.mxu0 0.0
        %1597 = vmatpush1.xpose.msra.mxu0 0.0
        %1598 = vmatprep.subr.mxu0 0.0
        %1599 = vmatpush1.xpose.msra.mxu0 0.0
        %1600 = vmatprep.subr.mxu0 0.0
        %1601 = vmatpush1.xpose.msra.mxu0 0.0
        %1602 = vmatprep.subr.mxu0 0.0
        %1603 = vmatpush1.xpose.msra.mxu0 0.0
        %1604 = vmatprep.subr.mxu0 0.0
        %1605 = vmatpush1.xpose.msra.mxu0 0.0
        %1606 = vmatprep.subr.mxu0 0.0
        %1607 = vmatpush1.xpose.msra.mxu0 0.0
        %1608 = vmatprep.subr.mxu0 0.0
        %1609 = vmatpush1.xpose.msra.mxu0 0.0
        %1610 = vmatprep.subr.mxu0 0.0
        %1611 = vmatpush1.xpose.msra.mxu0 0.0
        %1612 = vmatprep.subr.mxu0 0.0
        %1613 = vmatpush1.xpose.msra.mxu0 0.0
        %1614 = vmatprep.subr.mxu0 0.0
        %1615 = vmatpush1.xpose.msra.mxu0 0.0
        %1616 = vmatprep.subr.mxu0 0.0
        %1617 = vmatpush1.xpose.msra.mxu0 0.0
        %1618 = vmatprep.subr.mxu0 0.0
        %1619 = vmatpush1.xpose.msra.mxu0 0.0
        %1620 = vmatprep.subr.mxu0 0.0
        %1621 = vmatpush1.xpose.msra.mxu0 0.0
        %1622 = vmatprep.subr.mxu0 0.0
        %1623 = vmatpush1.xpose.msra.mxu0 0.0
        %1624 = vmatprep.subr.mxu0 0.0
        %1625 = vmatpush1.xpose.msra.mxu0 0.0
        %1626 = vmatprep.subr.mxu0 0.0
        %1627 = vmatpush1.xpose.msra.mxu0 0.0
        %1628 = vmatprep.subr.mxu0 0.0
        %1629 = vmatpush1.xpose.msra.mxu0 0.0
        %1630 = vmatprep.subr.mxu0 0.0
        %1631 = vmatpush1.xpose.msra.mxu0 0.0
        %1632 = vmatprep.subr.mxu0 0.0
        %1633 = vmatpush1.xpose.msra.mxu0 0.0
        %1634 = vmatprep.subr.mxu0 0.0
        %1635 = vmatpush1.xpose.msra.mxu0 0.0
        %1636 = vmatprep.subr.mxu0 0.0
        %1637 = vmatpush1.xpose.msra.mxu0 0.0
        %1638 = vmatprep.subr.mxu0 0.0
        %1639 = vmatpush1.xpose.msra.mxu0 0.0
        %1640 = vmatprep.subr.mxu0 0.0
        %1641 = vmatpush1.xpose.msra.mxu0 0.0
        %1642 = vmatprep.subr.mxu0 0.0
        %1643 = vmatpush1.xpose.msra.mxu0 0.0
        %1644 = vmatprep.subr.mxu0 0.0
        %1645 = vmatpush1.xpose.msra.mxu0 0.0
        %1646 = vmatprep.subr.mxu0 0.0
        %1647 = vmatpush1.xpose.msra.mxu0 0.0
        %1648 = vmatprep.subr.mxu0 0.0
        %1649 = vmatpush1.xpose.msra.mxu0 0.0
        %1650 = vmatprep.subr.mxu0 0.0
        %1651 = vmatpush1.xpose.msra.mxu0 0.0
        %1652 = vmatprep.mubr.f32.mxu0 0.0
        %1653 = vmatmul.mubr.f32.gmra.mrb[0].mxu0 %v1583
        %v1654 = vpop.f32.mrb[0].mxu0
        %v1655 = vadd.f32 0.0, %v1654
        %v1656 = vpop.f32.mrb[0].mxu0
        %1657 = vdwg.mxu0
        %v1659 = vsel %vm1581, %v791, 0
        %v1662 = vsel %vm1581, %v1107, 0
        %1664 = vmatprep.subr.mxu0 0.0
        %1665 = vmatpush1.xpose.msra.mxu0 %v1662
        %1666 = vmatprep.subr.mxu0 0.0
        %1667 = vmatpush1.xpose.msra.mxu0 0.0
        %1668 = vmatprep.subr.mxu0 0.0
        %1669 = vmatpush1.xpose.msra.mxu0 0.0
        %1670 = vmatprep.subr.mxu0 0.0
        %1671 = vmatpush1.xpose.msra.mxu0 0.0
        %1672 = vmatprep.subr.mxu0 0.0
        %1673 = vmatpush1.xpose.msra.mxu0 0.0
        %1674 = vmatprep.subr.mxu0 0.0
        %1675 = vmatpush1.xpose.msra.mxu0 0.0
        %1676 = vmatprep.subr.mxu0 0.0
        %1677 = vmatpush1.xpose.msra.mxu0 0.0
        %1678 = vmatprep.subr.mxu0 0.0
        %1679 = vmatpush1.xpose.msra.mxu0 0.0
        %1680 = vmatprep.subr.mxu0 0.0
        %1681 = vmatpush1.xpose.msra.mxu0 0.0
        %1682 = vmatprep.subr.mxu0 0.0
        %1683 = vmatpush1.xpose.msra.mxu0 0.0
        %1684 = vmatprep.subr.mxu0 0.0
        %1685 = vmatpush1.xpose.msra.mxu0 0.0
        %1686 = vmatprep.subr.mxu0 0.0
        %1687 = vmatpush1.xpose.msra.mxu0 0.0
        %1688 = vmatprep.subr.mxu0 0.0
        %1689 = vmatpush1.xpose.msra.mxu0 0.0
        %1690 = vmatprep.subr.mxu0 0.0
        %1691 = vmatpush1.xpose.msra.mxu0 0.0
        %1692 = vmatprep.subr.mxu0 0.0
        %1693 = vmatpush1.xpose.msra.mxu0 0.0
        %1694 = vmatprep.subr.mxu0 0.0
        %1695 = vmatpush1.xpose.msra.mxu0 0.0
        %1696 = vmatprep.subr.mxu0 0.0
        %1697 = vmatpush1.xpose.msra.mxu0 0.0
        %1698 = vmatprep.subr.mxu0 0.0
        %1699 = vmatpush1.xpose.msra.mxu0 0.0
        %1700 = vmatprep.subr.mxu0 0.0
        %1701 = vmatpush1.xpose.msra.mxu0 0.0
        %1702 = vmatprep.subr.mxu0 0.0
        %1703 = vmatpush1.xpose.msra.mxu0 0.0
        %1704 = vmatprep.subr.mxu0 0.0
        %1705 = vmatpush1.xpose.msra.mxu0 0.0
        %1706 = vmatprep.subr.mxu0 0.0
        %1707 = vmatpush1.xpose.msra.mxu0 0.0
        %1708 = vmatprep.subr.mxu0 0.0
        %1709 = vmatpush1.xpose.msra.mxu0 0.0
        %1710 = vmatprep.subr.mxu0 0.0
        %1711 = vmatpush1.xpose.msra.mxu0 0.0
        %1712 = vmatprep.subr.mxu0 0.0
        %1713 = vmatpush1.xpose.msra.mxu0 0.0
        %1714 = vmatprep.subr.mxu0 0.0
        %1715 = vmatpush1.xpose.msra.mxu0 0.0
        %1716 = vmatprep.subr.mxu0 0.0
        %1717 = vmatpush1.xpose.msra.mxu0 0.0
        %1718 = vmatprep.subr.mxu0 0.0
        %1719 = vmatpush1.xpose.msra.mxu0 0.0
        %1720 = vmatprep.subr.mxu0 0.0
        %1721 = vmatpush1.xpose.msra.mxu0 0.0
        %1722 = vmatprep.subr.mxu0 0.0
        %1723 = vmatpush1.xpose.msra.mxu0 0.0
        %1724 = vmatprep.subr.mxu0 0.0
        %1725 = vmatpush1.xpose.msra.mxu0 0.0
        %1726 = vmatprep.subr.mxu0 0.0
        %1727 = vmatpush1.xpose.msra.mxu0 0.0
        %1728 = vmatprep.mubr.f32.mxu0 0.0
        %1729 = vmatmul.mubr.f32.gmra.mrb[0].mxu0 %v1659
        %v1730 = vpop.f32.mrb[0].mxu0
        %v1731 = vadd.f32 0.0, %v1730
        %v1732 = vpop.f32.mrb[0].mxu0
        %1733 = vdwg.mxu0
        %v1735 = vsel %vm1581, %v866, 0
        %v1738 = vsel %vm1581, %v1182, 0
        %1740 = vmatprep.subr.mxu0 0.0
        %1741 = vmatpush1.xpose.msra.mxu0 %v1738
        %1742 = vmatprep.subr.mxu0 0.0
        %1743 = vmatpush1.xpose.msra.mxu0 0.0
        %1744 = vmatprep.subr.mxu0 0.0
        %1745 = vmatpush1.xpose.msra.mxu0 0.0
        %1746 = vmatprep.subr.mxu0 0.0
        %1747 = vmatpush1.xpose.msra.mxu0 0.0
        %1748 = vmatprep.subr.mxu0 0.0
        %1749 = vmatpush1.xpose.msra.mxu0 0.0
        %1750 = vmatprep.subr.mxu0 0.0
        %1751 = vmatpush1.xpose.msra.mxu0 0.0
        %1752 = vmatprep.subr.mxu0 0.0
        %1753 = vmatpush1.xpose.msra.mxu0 0.0
        %1754 = vmatprep.subr.mxu0 0.0
        %1755 = vmatpush1.xpose.msra.mxu0 0.0
        %1756 = vmatprep.subr.mxu0 0.0
        %1757 = vmatpush1.xpose.msra.mxu0 0.0
        %1758 = vmatprep.subr.mxu0 0.0
        %1759 = vmatpush1.xpose.msra.mxu0 0.0
        %1760 = vmatprep.subr.mxu0 0.0
        %1761 = vmatpush1.xpose.msra.mxu0 0.0
        %1762 = vmatprep.subr.mxu0 0.0
        %1763 = vmatpush1.xpose.msra.mxu0 0.0
        %1764 = vmatprep.subr.mxu0 0.0
        %1765 = vmatpush1.xpose.msra.mxu0 0.0
        %1766 = vmatprep.subr.mxu0 0.0
        %1767 = vmatpush1.xpose.msra.mxu0 0.0
        %1768 = vmatprep.subr.mxu0 0.0
        %1769 = vmatpush1.xpose.msra.mxu0 0.0
        %1770 = vmatprep.subr.mxu0 0.0
        %1771 = vmatpush1.xpose.msra.mxu0 0.0
        %1772 = vmatprep.subr.mxu0 0.0
        %1773 = vmatpush1.xpose.msra.mxu0 0.0
        %1774 = vmatprep.subr.mxu0 0.0
        %1775 = vmatpush1.xpose.msra.mxu0 0.0
        %1776 = vmatprep.subr.mxu0 0.0
        %1777 = vmatpush1.xpose.msra.mxu0 0.0
        %1778 = vmatprep.subr.mxu0 0.0
        %1779 = vmatpush1.xpose.msra.mxu0 0.0
        %1780 = vmatprep.subr.mxu0 0.0
        %1781 = vmatpush1.xpose.msra.mxu0 0.0
        %1782 = vmatprep.subr.mxu0 0.0
        %1783 = vmatpush1.xpose.msra.mxu0 0.0
        %1784 = vmatprep.subr.mxu0 0.0
        %1785 = vmatpush1.xpose.msra.mxu0 0.0
        %1786 = vmatprep.subr.mxu0 0.0
        %1787 = vmatpush1.xpose.msra.mxu0 0.0
        %1788 = vmatprep.subr.mxu0 0.0
        %1789 = vmatpush1.xpose.msra.mxu0 0.0
        %1790 = vmatprep.subr.mxu0 0.0
        %1791 = vmatpush1.xpose.msra.mxu0 0.0
        %1792 = vmatprep.subr.mxu0 0.0
        %1793 = vmatpush1.xpose.msra.mxu0 0.0
        %1794 = vmatprep.subr.mxu0 0.0
        %1795 = vmatpush1.xpose.msra.mxu0 0.0
        %1796 = vmatprep.subr.mxu0 0.0
        %1797 = vmatpush1.xpose.msra.mxu0 0.0
        %1798 = vmatprep.subr.mxu0 0.0
        %1799 = vmatpush1.xpose.msra.mxu0 0.0
        %1800 = vmatprep.subr.mxu0 0.0
        %1801 = vmatpush1.xpose.msra.mxu0 0.0
        %1802 = vmatprep.subr.mxu0 0.0
        %1803 = vmatpush1.xpose.msra.mxu0 0.0
        %1804 = vmatprep.mubr.f32.mxu0 0.0
        %1805 = vmatmul.mubr.f32.gmra.mrb[0].mxu0 %v1735
        %v1806 = vpop.f32.mrb[0].mxu0
        %v1807 = vadd.f32 0.0, %v1806
        %v1808 = vpop.f32.mrb[0].mxu0
        %1809 = vdwg.mxu0
        %v1811 = vsel %vm1581, %v941, 0
        %v1814 = vsel %vm1581, %v1257, 0
        %1816 = vmatprep.subr.mxu0 0.0
        %1817 = vmatpush1.xpose.msra.mxu0 %v1814
        %1818 = vmatprep.subr.mxu0 0.0
        %1819 = vmatpush1.xpose.msra.mxu0 0.0
        %1820 = vmatprep.subr.mxu0 0.0
        %1821 = vmatpush1.xpose.msra.mxu0 0.0
        %1822 = vmatprep.subr.mxu0 0.0
        %1823 = vmatpush1.xpose.msra.mxu0 0.0
        %1824 = vmatprep.subr.mxu0 0.0
        %1825 = vmatpush1.xpose.msra.mxu0 0.0
        %1826 = vmatprep.subr.mxu0 0.0
        %1827 = vmatpush1.xpose.msra.mxu0 0.0
        %1828 = vmatprep.subr.mxu0 0.0
        %1829 = vmatpush1.xpose.msra.mxu0 0.0
        %1830 = vmatprep.subr.mxu0 0.0
        %1831 = vmatpush1.xpose.msra.mxu0 0.0
        %1832 = vmatprep.subr.mxu0 0.0
        %1833 = vmatpush1.xpose.msra.mxu0 0.0
        %1834 = vmatprep.subr.mxu0 0.0
        %1835 = vmatpush1.xpose.msra.mxu0 0.0
        %1836 = vmatprep.subr.mxu0 0.0
        %1837 = vmatpush1.xpose.msra.mxu0 0.0
        %1838 = vmatprep.subr.mxu0 0.0
        %1839 = vmatpush1.xpose.msra.mxu0 0.0
        %1840 = vmatprep.subr.mxu0 0.0
        %1841 = vmatpush1.xpose.msra.mxu0 0.0
        %1842 = vmatprep.subr.mxu0 0.0
        %1843 = vmatpush1.xpose.msra.mxu0 0.0
        %1844 = vmatprep.subr.mxu0 0.0
        %1845 = vmatpush1.xpose.msra.mxu0 0.0
        %1846 = vmatprep.subr.mxu0 0.0
        %1847 = vmatpush1.xpose.msra.mxu0 0.0
        %1848 = vmatprep.subr.mxu0 0.0
        %1849 = vmatpush1.xpose.msra.mxu0 0.0
        %1850 = vmatprep.subr.mxu0 0.0
        %1851 = vmatpush1.xpose.msra.mxu0 0.0
        %1852 = vmatprep.subr.mxu0 0.0
        %1853 = vmatpush1.xpose.msra.mxu0 0.0
        %1854 = vmatprep.subr.mxu0 0.0
        %1855 = vmatpush1.xpose.msra.mxu0 0.0
        %1856 = vmatprep.subr.mxu0 0.0
        %1857 = vmatpush1.xpose.msra.mxu0 0.0
        %1858 = vmatprep.subr.mxu0 0.0
        %1859 = vmatpush1.xpose.msra.mxu0 0.0
        %1860 = vmatprep.subr.mxu0 0.0
        %1861 = vmatpush1.xpose.msra.mxu0 0.0
        %1862 = vmatprep.subr.mxu0 0.0
        %1863 = vmatpush1.xpose.msra.mxu0 0.0
        %1864 = vmatprep.subr.mxu0 0.0
        %1865 = vmatpush1.xpose.msra.mxu0 0.0
        %1866 = vmatprep.subr.mxu0 0.0
        %1867 = vmatpush1.xpose.msra.mxu0 0.0
        %1868 = vmatprep.subr.mxu0 0.0
        %1869 = vmatpush1.xpose.msra.mxu0 0.0
        %1870 = vmatprep.subr.mxu0 0.0
        %1871 = vmatpush1.xpose.msra.mxu0 0.0
        %1872 = vmatprep.subr.mxu0 0.0
        %1873 = vmatpush1.xpose.msra.mxu0 0.0
        %1874 = vmatprep.subr.mxu0 0.0
        %1875 = vmatpush1.xpose.msra.mxu0 0.0
        %1876 = vmatprep.subr.mxu0 0.0
        %1877 = vmatpush1.xpose.msra.mxu0 0.0
        %1878 = vmatprep.subr.mxu0 0.0
        %1879 = vmatpush1.xpose.msra.mxu0 0.0
        %1880 = vmatprep.mubr.f32.mxu0 0.0
        %1881 = vmatmul.mubr.f32.gmra.mrb[0].mxu0 %v1811
        %v1882 = vpop.f32.mrb[0].mxu0
        %v1883 = vadd.f32 0.0, %v1882
        %v1884 = vpop.f32.mrb[0].mxu0
        %1885 = vdwg.mxu0
        %v1886 = vsel %vm1581, %v1655, -inf
        %1887 = vmax.xlane.f32.xlu0 %v1886
        %v1888 = vpop.xlane.xlu0 %1887
        %v1889 = vsel %vm1581, %v1731, -inf
        %1890 = vmax.xlane.f32.xlu0 %v1889
        %v1891 = vpop.xlane.xlu0 %1890
        %v1892 = vsel %vm1581, %v1807, -inf
        %1893 = vmax.xlane.f32.xlu0 %v1892
        %v1894 = vpop.xlane.xlu0 %1893
        %v1895 = vsel %vm1581, %v1883, -inf
        %1896 = vmax.xlane.f32.xlu0 %v1895
        %v1897 = vpop.xlane.xlu0 %1896
        %v1898 = vsub.f32 %v1655, %v1888
        %v1899 = vsub.f32 %v1731, %v1891
        %v1900 = vsub.f32 %v1807, %v1894
        %v1901 = vsub.f32 %v1883, %v1897
        %v1902 = vmul.f32 %v1898, 1.442695
        %v1903 = vpow.pop %v1902
        %v1904 = vmul.f32 %v1899, 1.442695
        %v1905 = vpow.pop %v1904
        %v1906 = vmul.f32 %v1900, 1.442695
        %v1907 = vpow.pop %v1906
        %v1908 = vmul.f32 %v1901, 1.442695
        %v1909 = vpow.pop %v1908
        %v1910 = vsel %vm1581, %v1903, 0.0
        %1911 = vadd.xlane.f32.xlu0 %v1910
        %v1912 = vpop.xlane.xlu0 %1911
        %v1913 = vsel %vm1581, %v1905, 0.0
        %1914 = vadd.xlane.f32.xlu0 %v1913
        %v1915 = vpop.xlane.xlu0 %1914
        %v1916 = vsel %vm1581, %v1907, 0.0
        %1917 = vadd.xlane.f32.xlu0 %v1916
        %v1918 = vpop.xlane.xlu0 %1917
        %v1919 = vsel %vm1581, %v1909, 0.0
        %1920 = vadd.xlane.f32.xlu0 %v1919
        %v1921 = vpop.xlane.xlu0 %1920
        %v1922 = vrcp.pop %v1912
        %v1923 = vrcp.pop %v1915
        %v1924 = vrcp.pop %v1918
        %v1925 = vrcp.pop %v1921
        %v1926 = vmul.f32 %v1903, %v1922
        %v1927 = vmul.f32 %v1905, %v1923
        %v1928 = vmul.f32 %v1907, %v1924
        %v1929 = vmul.f32 %v1909, %v1925
        %v1931 = vsel %vm1581, %v1926, 0
        %1933 = vmatprep.subr.mxu0 0.0
        %1934 = vmatpush1.msra.mxu0 %v1348
        %1935 = vmatprep.subr.mxu0 0.0
        %1936 = vmatpush1.msra.mxu0 0.0
        %1937 = vmatprep.subr.mxu0 0.0
        %1938 = vmatpush1.msra.mxu0 0.0
        %1939 = vmatprep.subr.mxu0 0.0
        %1940 = vmatpush1.msra.mxu0 0.0
        %1941 = vmatprep.subr.mxu0 0.0
        %1942 = vmatpush1.msra.mxu0 0.0
        %1943 = vmatprep.subr.mxu0 0.0
        %1944 = vmatpush1.msra.mxu0 0.0
        %1945 = vmatprep.subr.mxu0 0.0
        %1946 = vmatpush1.msra.mxu0 0.0
        %1947 = vmatprep.subr.mxu0 0.0
        %1948 = vmatpush1.msra.mxu0 0.0
        %1949 = vmatprep.subr.mxu0 0.0
        %1950 = vmatpush1.msra.mxu0 0.0
        %1951 = vmatprep.subr.mxu0 0.0
        %1952 = vmatpush1.msra.mxu0 0.0
        %1953 = vmatprep.subr.mxu0 0.0
        %1954 = vmatpush1.msra.mxu0 0.0
        %1955 = vmatprep.subr.mxu0 0.0
        %1956 = vmatpush1.msra.mxu0 0.0
        %1957 = vmatprep.subr.mxu0 0.0
        %1958 = vmatpush1.msra.mxu0 0.0
        %1959 = vmatprep.subr.mxu0 0.0
        %1960 = vmatpush1.msra.mxu0 0.0
        %1961 = vmatprep.subr.mxu0 0.0
        %1962 = vmatpush1.msra.mxu0 0.0
        %1963 = vmatprep.subr.mxu0 0.0
        %1964 = vmatpush1.msra.mxu0 0.0
        %1965 = vmatprep.subr.mxu0 0.0
        %1966 = vmatpush1.msra.mxu0 0.0
        %1967 = vmatprep.subr.mxu0 0.0
        %1968 = vmatpush1.msra.mxu0 0.0
        %1969 = vmatprep.subr.mxu0 0.0
        %1970 = vmatpush1.msra.mxu0 0.0
        %1971 = vmatprep.subr.mxu0 0.0
        %1972 = vmatpush1.msra.mxu0 0.0
        %1973 = vmatprep.subr.mxu0 0.0
        %1974 = vmatpush1.msra.mxu0 0.0
        %1975 = vmatprep.subr.mxu0 0.0
        %1976 = vmatpush1.msra.mxu0 0.0
        %1977 = vmatprep.subr.mxu0 0.0
        %1978 = vmatpush1.msra.mxu0 0.0
        %1979 = vmatprep.subr.mxu0 0.0
        %1980 = vmatpush1.msra.mxu0 0.0
        %1981 = vmatprep.subr.mxu0 0.0
        %1982 = vmatpush1.msra.mxu0 0.0
        %1983 = vmatprep.subr.mxu0 0.0
        %1984 = vmatpush1.msra.mxu0 0.0
        %1985 = vmatprep.subr.mxu0 0.0
        %1986 = vmatpush1.msra.mxu0 0.0
        %1987 = vmatprep.subr.mxu0 0.0
        %1988 = vmatpush1.msra.mxu0 0.0
        %1989 = vmatprep.subr.mxu0 0.0
        %1990 = vmatpush1.msra.mxu0 0.0
        %1991 = vmatprep.subr.mxu0 0.0
        %1992 = vmatpush1.msra.mxu0 0.0
        %1993 = vmatprep.subr.mxu0 0.0
        %1994 = vmatpush1.msra.mxu0 0.0
        %1995 = vmatprep.subr.mxu0 0.0
        %1996 = vmatpush1.msra.mxu0 0.0
        %1997 = vmatprep.mubr.f32.mxu0 0.0
        %1998 = vmatmul.mubr.f32.gmra.mrb[0].mxu0 %v1931
        %v1999 = vpop.f32.mrb[0].mxu0
        %v2000 = vadd.f32 0.0, %v1999
        %v2001 = vpop.f32.mrb[0].mxu0
        %2002 = vdwg.mxu0
        %v2004 = vsel %vm1581, %v1927, 0
        %2006 = vmatprep.subr.mxu0 0.0
        %2007 = vmatpush1.msra.mxu0 %v1423
        %2008 = vmatprep.subr.mxu0 0.0
        %2009 = vmatpush1.msra.mxu0 0.0
        %2010 = vmatprep.subr.mxu0 0.0
        %2011 = vmatpush1.msra.mxu0 0.0
        %2012 = vmatprep.subr.mxu0 0.0
        %2013 = vmatpush1.msra.mxu0 0.0
        %2014 = vmatprep.subr.mxu0 0.0
        %2015 = vmatpush1.msra.mxu0 0.0
        %2016 = vmatprep.subr.mxu0 0.0
        %2017 = vmatpush1.msra.mxu0 0.0
        %2018 = vmatprep.subr.mxu0 0.0
        %2019 = vmatpush1.msra.mxu0 0.0
        %2020 = vmatprep.subr.mxu0 0.0
        %2021 = vmatpush1.msra.mxu0 0.0
        %2022 = vmatprep.subr.mxu0 0.0
        %2023 = vmatpush1.msra.mxu0 0.0
        %2024 = vmatprep.subr.mxu0 0.0
        %2025 = vmatpush1.msra.mxu0 0.0
        %2026 = vmatprep.subr.mxu0 0.0
        %2027 = vmatpush1.msra.mxu0 0.0
        %2028 = vmatprep.subr.mxu0 0.0
        %2029 = vmatpush1.msra.mxu0 0.0
        %2030 = vmatprep.subr.mxu0 0.0
        %2031 = vmatpush1.msra.mxu0 0.0
        %2032 = vmatprep.subr.mxu0 0.0
        %2033 = vmatpush1.msra.mxu0 0.0
        %2034 = vmatprep.subr.mxu0 0.0
        %2035 = vmatpush1.msra.mxu0 0.0
        %2036 = vmatprep.subr.mxu0 0.0
        %2037 = vmatpush1.msra.mxu0 0.0
        %2038 = vmatprep.subr.mxu0 0.0
        %2039 = vmatpush1.msra.mxu0 0.0
        %2040 = vmatprep.subr.mxu0 0.0
        %2041 = vmatpush1.msra.mxu0 0.0
        %2042 = vmatprep.subr.mxu0 0.0
        %2043 = vmatpush1.msra.mxu0 0.0
        %2044 = vmatprep.subr.mxu0 0.0
        %2045 = vmatpush1.msra.mxu0 0.0
        %2046 = vmatprep.subr.mxu0 0.0
        %2047 = vmatpush1.msra.mxu0 0.0
        %2048 = vmatprep.subr.mxu0 0.0
        %2049 = vmatpush1.msra.mxu0 0.0
        %2050 = vmatprep.subr.mxu0 0.0
        %2051 = vmatpush1.msra.mxu0 0.0
        %2052 = vmatprep.subr.mxu0 0.0
        %2053 = vmatpush1.msra.mxu0 0.0
        %2054 = vmatprep.subr.mxu0 0.0
        %2055 = vmatpush1.msra.mxu0 0.0
        %2056 = vmatprep.subr.mxu0 0.0
        %2057 = vmatpush1.msra.mxu0 0.0
        %2058 = vmatprep.subr.mxu0 0.0
        %2059 = vmatpush1.msra.mxu0 0.0
        %2060 = vmatprep.subr.mxu0 0.0
        %2061 = vmatpush1.msra.mxu0 0.0
        %2062 = vmatprep.subr.mxu0 0.0
        %2063 = vmatpush1.msra.mxu0 0.0
        %2064 = vmatprep.subr.mxu0 0.0
        %2065 = vmatpush1.msra.mxu0 0.0
        %2066 = vmatprep.subr.mxu0 0.0
        %2067 = vmatpush1.msra.mxu0 0.0
        %2068 = vmatprep.subr.mxu0 0.0
        %2069 = vmatpush1.msra.mxu0 0.0
        %2070 = vmatprep.mubr.f32.mxu0 0.0
        %2071 = vmatmul.mubr.f32.gmra.mrb[0].mxu0 %v2004
        %v2072 = vpop.f32.mrb[0].mxu0
        %v2073 = vadd.f32 0.0, %v2072
        %v2074 = vpop.f32.mrb[0].mxu0
        %2075 = vdwg.mxu0
        %v2077 = vsel %vm1581, %v1928, 0
        %2079 = vmatprep.subr.mxu0 0.0
        %2080 = vmatpush1.msra.mxu0 %v1498
        %2081 = vmatprep.subr.mxu0 0.0
        %2082 = vmatpush1.msra.mxu0 0.0
        %2083 = vmatprep.subr.mxu0 0.0
        %2084 = vmatpush1.msra.mxu0 0.0
        %2085 = vmatprep.subr.mxu0 0.0
        %2086 = vmatpush1.msra.mxu0 0.0
        %2087 = vmatprep.subr.mxu0 0.0
        %2088 = vmatpush1.msra.mxu0 0.0
        %2089 = vmatprep.subr.mxu0 0.0
        %2090 = vmatpush1.msra.mxu0 0.0
        %2091 = vmatprep.subr.mxu0 0.0
        %2092 = vmatpush1.msra.mxu0 0.0
        %2093 = vmatprep.subr.mxu0 0.0
        %2094 = vmatpush1.msra.mxu0 0.0
        %2095 = vmatprep.subr.mxu0 0.0
        %2096 = vmatpush1.msra.mxu0 0.0
        %2097 = vmatprep.subr.mxu0 0.0
        %2098 = vmatpush1.msra.mxu0 0.0
        %2099 = vmatprep.subr.mxu0 0.0
        %2100 = vmatpush1.msra.mxu0 0.0
        %2101 = vmatprep.subr.mxu0 0.0
        %2102 = vmatpush1.msra.mxu0 0.0
        %2103 = vmatprep.subr.mxu0 0.0
        %2104 = vmatpush1.msra.mxu0 0.0
        %2105 = vmatprep.subr.mxu0 0.0
        %2106 = vmatpush1.msra.mxu0 0.0
        %2107 = vmatprep.subr.mxu0 0.0
        %2108 = vmatpush1.msra.mxu0 0.0
        %2109 = vmatprep.subr.mxu0 0.0
        %2110 = vmatpush1.msra.mxu0 0.0
        %2111 = vmatprep.subr.mxu0 0.0
        %2112 = vmatpush1.msra.mxu0 0.0
        %2113 = vmatprep.subr.mxu0 0.0
        %2114 = vmatpush1.msra.mxu0 0.0
        %2115 = vmatprep.subr.mxu0 0.0
        %2116 = vmatpush1.msra.mxu0 0.0
        %2117 = vmatprep.subr.mxu0 0.0
        %2118 = vmatpush1.msra.mxu0 0.0
        %2119 = vmatprep.subr.mxu0 0.0
        %2120 = vmatpush1.msra.mxu0 0.0
        %2121 = vmatprep.subr.mxu0 0.0
        %2122 = vmatpush1.msra.mxu0 0.0
        %2123 = vmatprep.subr.mxu0 0.0
        %2124 = vmatpush1.msra.mxu0 0.0
        %2125 = vmatprep.subr.mxu0 0.0
        %2126 = vmatpush1.msra.mxu0 0.0
        %2127 = vmatprep.subr.mxu0 0.0
        %2128 = vmatpush1.msra.mxu0 0.0
        %2129 = vmatprep.subr.mxu0 0.0
        %2130 = vmatpush1.msra.mxu0 0.0
        %2131 = vmatprep.subr.mxu0 0.0
        %2132 = vmatpush1.msra.mxu0 0.0
        %2133 = vmatprep.subr.mxu0 0.0
        %2134 = vmatpush1.msra.mxu0 0.0
        %2135 = vmatprep.subr.mxu0 0.0
        %2136 = vmatpush1.msra.mxu0 0.0
        %2137 = vmatprep.subr.mxu0 0.0
        %2138 = vmatpush1.msra.mxu0 0.0
        %2139 = vmatprep.subr.mxu0 0.0
        %2140 = vmatpush1.msra.mxu0 0.0
        %2141 = vmatprep.subr.mxu0 0.0
        %2142 = vmatpush1.msra.mxu0 0.0
        %2143 = vmatprep.mubr.f32.mxu0 0.0
        %2144 = vmatmul.mubr.f32.gmra.mrb[0].mxu0 %v2077
        %v2145 = vpop.f32.mrb[0].mxu0
        %v2146 = vadd.f32 0.0, %v2145
        %v2147 = vpop.f32.mrb[0].mxu0
        %2148 = vdwg.mxu0
        %v2150 = vsel %vm1581, %v1929, 0
        %2152 = vmatprep.subr.mxu0 0.0
        %2153 = vmatpush1.msra.mxu0 %v1573
        %2154 = vmatprep.subr.mxu0 0.0
        %2155 = vmatpush1.msra.mxu0 0.0
        %2156 = vmatprep.subr.mxu0 0.0
        %2157 = vmatpush1.msra.mxu0 0.0
        %2158 = vmatprep.subr.mxu0 0.0
        %2159 = vmatpush1.msra.mxu0 0.0
        %2160 = vmatprep.subr.mxu0 0.0
        %2161 = vmatpush1.msra.mxu0 0.0
        %2162 = vmatprep.subr.mxu0 0.0
        %2163 = vmatpush1.msra.mxu0 0.0
        %2164 = vmatprep.subr.mxu0 0.0
        %2165 = vmatpush1.msra.mxu0 0.0
        %2166 = vmatprep.subr.mxu0 0.0
        %2167 = vmatpush1.msra.mxu0 0.0
        %2168 = vmatprep.subr.mxu0 0.0
        %2169 = vmatpush1.msra.mxu0 0.0
        %2170 = vmatprep.subr.mxu0 0.0
        %2171 = vmatpush1.msra.mxu0 0.0
        %2172 = vmatprep.subr.mxu0 0.0
        %2173 = vmatpush1.msra.mxu0 0.0
        %2174 = vmatprep.subr.mxu0 0.0
        %2175 = vmatpush1.msra.mxu0 0.0
        %2176 = vmatprep.subr.mxu0 0.0
        %2177 = vmatpush1.msra.mxu0 0.0
        %2178 = vmatprep.subr.mxu0 0.0
        %2179 = vmatpush1.msra.mxu0 0.0
        %2180 = vmatprep.subr.mxu0 0.0
        %2181 = vmatpush1.msra.mxu0 0.0
        %2182 = vmatprep.subr.mxu0 0.0
        %2183 = vmatpush1.msra.mxu0 0.0
        %2184 = vmatprep.subr.mxu0 0.0
        %2185 = vmatpush1.msra.mxu0 0.0
        %2186 = vmatprep.subr.mxu0 0.0
        %2187 = vmatpush1.msra.mxu0 0.0
        %2188 = vmatprep.subr.mxu0 0.0
        %2189 = vmatpush1.msra.mxu0 0.0
        %2190 = vmatprep.subr.mxu0 0.0
        %2191 = vmatpush1.msra.mxu0 0.0
        %2192 = vmatprep.subr.mxu0 0.0
        %2193 = vmatpush1.msra.mxu0 0.0
        %2194 = vmatprep.subr.mxu0 0.0
        %2195 = vmatpush1.msra.mxu0 0.0
        %2196 = vmatprep.subr.mxu0 0.0
        %2197 = vmatpush1.msra.mxu0 0.0
        %2198 = vmatprep.subr.mxu0 0.0
        %2199 = vmatpush1.msra.mxu0 0.0
        %2200 = vmatprep.subr.mxu0 0.0
        %2201 = vmatpush1.msra.mxu0 0.0
        %2202 = vmatprep.subr.mxu0 0.0
        %2203 = vmatpush1.msra.mxu0 0.0
        %2204 = vmatprep.subr.mxu0 0.0
        %2205 = vmatpush1.msra.mxu0 0.0
        %2206 = vmatprep.subr.mxu0 0.0
        %2207 = vmatpush1.msra.mxu0 0.0
        %2208 = vmatprep.subr.mxu0 0.0
        %2209 = vmatpush1.msra.mxu0 0.0
        %2210 = vmatprep.subr.mxu0 0.0
        %2211 = vmatpush1.msra.mxu0 0.0
        %2212 = vmatprep.subr.mxu0 0.0
        %2213 = vmatpush1.msra.mxu0 0.0
        %2214 = vmatprep.subr.mxu0 0.0
        %2215 = vmatpush1.msra.mxu0 0.0
        %2216 = vmatprep.mubr.f32.mxu0 0.0
        %2217 = vmatmul.mubr.f32.gmra.mrb[0].mxu0 %v2150
        %v2218 = vpop.f32.mrb[0].mxu0
        %v2219 = vadd.f32 0.0, %v2218
        %v2220 = vpop.f32.mrb[0].mxu0
        %2221 = vdwg.mxu0
        %v2223 = vsel %vm1581, %v721, 0
        %v2226 = vsel %vm1581, %v1037, 0
        %2228 = vmatprep.subr.mxu0 0.0
        %2229 = vmatpush1.xpose.msra.mxu0 %v2226
        %2230 = vmatprep.subr.mxu0 0.0
        %2231 = vmatpush1.xpose.msra.mxu0 0.0
        %2232 = vmatprep.subr.mxu0 0.0
        %2233 = vmatpush1.xpose.msra.mxu0 0.0
        %2234 = vmatprep.subr.mxu0 0.0
        %2235 = vmatpush1.xpose.msra.mxu0 0.0
        %2236 = vmatprep.subr.mxu0 0.0
        %2237 = vmatpush1.xpose.msra.mxu0 0.0
        %2238 = vmatprep.subr.mxu0 0.0
        %2239 = vmatpush1.xpose.msra.mxu0 0.0
        %2240 = vmatprep.subr.mxu0 0.0
        %2241 = vmatpush1.xpose.msra.mxu0 0.0
        %2242 = vmatprep.subr.mxu0 0.0
        %2243 = vmatpush1.xpose.msra.mxu0 0.0
        %2244 = vmatprep.subr.mxu0 0.0
        %2245 = vmatpush1.xpose.msra.mxu0 0.0
        %2246 = vmatprep.subr.mxu0 0.0
        %2247 = vmatpush1.xpose.msra.mxu0 0.0
        %2248 = vmatprep.subr.mxu0 0.0
        %2249 = vmatpush1.xpose.msra.mxu0 0.0
        %2250 = vmatprep.subr.mxu0 0.0
        %2251 = vmatpush1.xpose.msra.mxu0 0.0
        %2252 = vmatprep.subr.mxu0 0.0
        %2253 = vmatpush1.xpose.msra.mxu0 0.0
        %2254 = vmatprep.subr.mxu0 0.0
        %2255 = vmatpush1.xpose.msra.mxu0 0.0
        %2256 = vmatprep.subr.mxu0 0.0
        %2257 = vmatpush1.xpose.msra.mxu0 0.0
        %2258 = vmatprep.subr.mxu0 0.0
        %2259 = vmatpush1.xpose.msra.mxu0 0.0
        %2260 = vmatprep.subr.mxu0 0.0
        %2261 = vmatpush1.xpose.msra.mxu0 0.0
        %2262 = vmatprep.subr.mxu0 0.0
        %2263 = vmatpush1.xpose.msra.mxu0 0.0
        %2264 = vmatprep.subr.mxu0 0.0
        %2265 = vmatpush1.xpose.msra.mxu0 0.0
        %2266 = vmatprep.subr.mxu0 0.0
        %2267 = vmatpush1.xpose.msra.mxu0 0.0
        %2268 = vmatprep.subr.mxu0 0.0
        %2269 = vmatpush1.xpose.msra.mxu0 0.0
        %2270 = vmatprep.subr.mxu0 0.0
        %2271 = vmatpush1.xpose.msra.mxu0 0.0
        %2272 = vmatprep.subr.mxu0 0.0
        %2273 = vmatpush1.xpose.msra.mxu0 0.0
        %2274 = vmatprep.subr.mxu0 0.0
        %2275 = vmatpush1.xpose.msra.mxu0 0.0
        %2276 = vmatprep.subr.mxu0 0.0
        %2277 = vmatpush1.xpose.msra.mxu0 0.0
        %2278 = vmatprep.subr.mxu0 0.0
        %2279 = vmatpush1.xpose.msra.mxu0 0.0
        %2280 = vmatprep.subr.mxu0 0.0
        %2281 = vmatpush1.xpose.msra.mxu0 0.0
        %2282 = vmatprep.subr.mxu0 0.0
        %2283 = vmatpush1.xpose.msra.mxu0 0.0
        %2284 = vmatprep.subr.mxu0 0.0
        %2285 = vmatpush1.xpose.msra.mxu0 0.0
        %2286 = vmatprep.subr.mxu0 0.0
        %2287 = vmatpush1.xpose.msra.mxu0 0.0
        %2288 = vmatprep.subr.mxu0 0.0
        %2289 = vmatpush1.xpose.msra.mxu0 0.0
        %2290 = vmatprep.subr.mxu0 0.0
        %2291 = vmatpush1.xpose.msra.mxu0 0.0
        %2292 = vmatprep.mubr.f32.mxu0 0.0
        %2293 = vmatmul.mubr.f32.gmra.mrb[0].mxu0 %v2223
        %v2294 = vpop.f32.mrb[0].mxu0
        %v2295 = vadd.f32 0.0, %v2294
        %v2296 = vpop.f32.mrb[0].mxu0
        %2297 = vdwg.mxu0
        %v2299 = vsel %vm1581, %v796, 0
        %v2302 = vsel %vm1581, %v1112, 0
        %2304 = vmatprep.subr.mxu0 0.0
        %2305 = vmatpush1.xpose.msra.mxu0 %v2302
        %2306 = vmatprep.subr.mxu0 0.0
        %2307 = vmatpush1.xpose.msra.mxu0 0.0
        %2308 = vmatprep.subr.mxu0 0.0
        %2309 = vmatpush1.xpose.msra.mxu0 0.0
        %2310 = vmatprep.subr.mxu0 0.0
        %2311 = vmatpush1.xpose.msra.mxu0 0.0
        %2312 = vmatprep.subr.mxu0 0.0
        %2313 = vmatpush1.xpose.msra.mxu0 0.0
        %2314 = vmatprep.subr.mxu0 0.0
        %2315 = vmatpush1.xpose.msra.mxu0 0.0
        %2316 = vmatprep.subr.mxu0 0.0
        %2317 = vmatpush1.xpose.msra.mxu0 0.0
        %2318 = vmatprep.subr.mxu0 0.0
        %2319 = vmatpush1.xpose.msra.mxu0 0.0
        %2320 = vmatprep.subr.mxu0 0.0
        %2321 = vmatpush1.xpose.msra.mxu0 0.0
        %2322 = vmatprep.subr.mxu0 0.0
        %2323 = vmatpush1.xpose.msra.mxu0 0.0
        %2324 = vmatprep.subr.mxu0 0.0
        %2325 = vmatpush1.xpose.msra.mxu0 0.0
        %2326 = vmatprep.subr.mxu0 0.0
        %2327 = vmatpush1.xpose.msra.mxu0 0.0
        %2328 = vmatprep.subr.mxu0 0.0
        %2329 = vmatpush1.xpose.msra.mxu0 0.0
        %2330 = vmatprep.subr.mxu0 0.0
        %2331 = vmatpush1.xpose.msra.mxu0 0.0
        %2332 = vmatprep.subr.mxu0 0.0
        %2333 = vmatpush1.xpose.msra.mxu0 0.0
        %2334 = vmatprep.subr.mxu0 0.0
        %2335 = vmatpush1.xpose.msra.mxu0 0.0
        %2336 = vmatprep.subr.mxu0 0.0
        %2337 = vmatpush1.xpose.msra.mxu0 0.0
        %2338 = vmatprep.subr.mxu0 0.0
        %2339 = vmatpush1.xpose.msra.mxu0 0.0
        %2340 = vmatprep.subr.mxu0 0.0
        %2341 = vmatpush1.xpose.msra.mxu0 0.0
        %2342 = vmatprep.subr.mxu0 0.0
        %2343 = vmatpush1.xpose.msra.mxu0 0.0
        %2344 = vmatprep.subr.mxu0 0.0
        %2345 = vmatpush1.xpose.msra.mxu0 0.0
        %2346 = vmatprep.subr.mxu0 0.0
        %2347 = vmatpush1.xpose.msra.mxu0 0.0
        %2348 = vmatprep.subr.mxu0 0.0
        %2349 = vmatpush1.xpose.msra.mxu0 0.0
        %2350 = vmatprep.subr.mxu0 0.0
        %2351 = vmatpush1.xpose.msra.mxu0 0.0
        %2352 = vmatprep.subr.mxu0 0.0
        %2353 = vmatpush1.xpose.msra.mxu0 0.0
        %2354 = vmatprep.subr.mxu0 0.0
        %2355 = vmatpush1.xpose.msra.mxu0 0.0
        %2356 = vmatprep.subr.mxu0 0.0
        %2357 = vmatpush1.xpose.msra.mxu0 0.0
        %2358 = vmatprep.subr.mxu0 0.0
        %2359 = vmatpush1.xpose.msra.mxu0 0.0
        %2360 = vmatprep.subr.mxu0 0.0
        %2361 = vmatpush1.xpose.msra.mxu0 0.0
        %2362 = vmatprep.subr.mxu0 0.0
        %2363 = vmatpush1.xpose.msra.mxu0 0.0
        %2364 = vmatprep.subr.mxu0 0.0
        %2365 = vmatpush1.xpose.msra.mxu0 0.0
        %2366 = vmatprep.subr.mxu0 0.0
        %2367 = vmatpush1.xpose.msra.mxu0 0.0
        %2368 = vmatprep.mubr.f32.mxu0 0.0
        %2369 = vmatmul.mubr.f32.gmra.mrb[0].mxu0 %v2299
        %v2370 = vpop.f32.mrb[0].mxu0
        %v2371 = vadd.f32 0.0, %v2370
        %v2372 = vpop.f32.mrb[0].mxu0
        %2373 = vdwg.mxu0
        %v2375 = vsel %vm1581, %v871, 0
        %v2378 = vsel %vm1581, %v1187, 0
        %2380 = vmatprep.subr.mxu0 0.0
        %2381 = vmatpush1.xpose.msra.mxu0 %v2378
        %2382 = vmatprep.subr.mxu0 0.0
        %2383 = vmatpush1.xpose.msra.mxu0 0.0
        %2384 = vmatprep.subr.mxu0 0.0
        %2385 = vmatpush1.xpose.msra.mxu0 0.0
        %2386 = vmatprep.subr.mxu0 0.0
        %2387 = vmatpush1.xpose.msra.mxu0 0.0
        %2388 = vmatprep.subr.mxu0 0.0
        %2389 = vmatpush1.xpose.msra.mxu0 0.0
        %2390 = vmatprep.subr.mxu0 0.0
        %2391 = vmatpush1.xpose.msra.mxu0 0.0
        %2392 = vmatprep.subr.mxu0 0.0
        %2393 = vmatpush1.xpose.msra.mxu0 0.0
        %2394 = vmatprep.subr.mxu0 0.0
        %2395 = vmatpush1.xpose.msra.mxu0 0.0
        %2396 = vmatprep.subr.mxu0 0.0
        %2397 = vmatpush1.xpose.msra.mxu0 0.0
        %2398 = vmatprep.subr.mxu0 0.0
        %2399 = vmatpush1.xpose.msra.mxu0 0.0
        %2400 = vmatprep.subr.mxu0 0.0
        %2401 = vmatpush1.xpose.msra.mxu0 0.0
        %2402 = vmatprep.subr.mxu0 0.0
        %2403 = vmatpush1.xpose.msra.mxu0 0.0
        %2404 = vmatprep.subr.mxu0 0.0
        %2405 = vmatpush1.xpose.msra.mxu0 0.0
        %2406 = vmatprep.subr.mxu0 0.0
        %2407 = vmatpush1.xpose.msra.mxu0 0.0
        %2408 = vmatprep.subr.mxu0 0.0
        %2409 = vmatpush1.xpose.msra.mxu0 0.0
        %2410 = vmatprep.subr.mxu0 0.0
        %2411 = vmatpush1.xpose.msra.mxu0 0.0
        %2412 = vmatprep.subr.mxu0 0.0
        %2413 = vmatpush1.xpose.msra.mxu0 0.0
        %2414 = vmatprep.subr.mxu0 0.0
        %2415 = vmatpush1.xpose.msra.mxu0 0.0
        %2416 = vmatprep.subr.mxu0 0.0
        %2417 = vmatpush1.xpose.msra.mxu0 0.0
        %2418 = vmatprep.subr.mxu0 0.0
        %2419 = vmatpush1.xpose.msra.mxu0 0.0
        %2420 = vmatprep.subr.mxu0 0.0
        %2421 = vmatpush1.xpose.msra.mxu0 0.0
        %2422 = vmatprep.subr.mxu0 0.0
        %2423 = vmatpush1.xpose.msra.mxu0 0.0
        %2424 = vmatprep.subr.mxu0 0.0
        %2425 = vmatpush1.xpose.msra.mxu0 0.0
        %2426 = vmatprep.subr.mxu0 0.0
        %2427 = vmatpush1.xpose.msra.mxu0 0.0
        %2428 = vmatprep.subr.mxu0 0.0
        %2429 = vmatpush1.xpose.msra.mxu0 0.0
        %2430 = vmatprep.subr.mxu0 0.0
        %2431 = vmatpush1.xpose.msra.mxu0 0.0
        %2432 = vmatprep.subr.mxu0 0.0
        %2433 = vmatpush1.xpose.msra.mxu0 0.0
        %2434 = vmatprep.subr.mxu0 0.0
        %2435 = vmatpush1.xpose.msra.mxu0 0.0
        %2436 = vmatprep.subr.mxu0 0.0
        %2437 = vmatpush1.xpose.msra.mxu0 0.0
        %2438 = vmatprep.subr.mxu0 0.0
        %2439 = vmatpush1.xpose.msra.mxu0 0.0
        %2440 = vmatprep.subr.mxu0 0.0
        %2441 = vmatpush1.xpose.msra.mxu0 0.0
        %2442 = vmatprep.subr.mxu0 0.0
        %2443 = vmatpush1.xpose.msra.mxu0 0.0
        %2444 = vmatprep.mubr.f32.mxu0 0.0
        %2445 = vmatmul.mubr.f32.gmra.mrb[0].mxu0 %v2375
        %v2446 = vpop.f32.mrb[0].mxu0
        %v2447 = vadd.f32 0.0, %v2446
        %v2448 = vpop.f32.mrb[0].mxu0
        %2449 = vdwg.mxu0
        %v2451 = vsel %vm1581, %v946, 0
        %v2454 = vsel %vm1581, %v1262, 0
        %2456 = vmatprep.subr.mxu0 0.0
        %2457 = vmatpush1.xpose.msra.mxu0 %v2454
        %2458 = vmatprep.subr.mxu0 0.0
        %2459 = vmatpush1.xpose.msra.mxu0 0.0
        %2460 = vmatprep.subr.mxu0 0.0
        %2461 = vmatpush1.xpose.msra.mxu0 0.0
        %2462 = vmatprep.subr.mxu0 0.0
        %2463 = vmatpush1.xpose.msra.mxu0 0.0
        %2464 = vmatprep.subr.mxu0 0.0
        %2465 = vmatpush1.xpose.msra.mxu0 0.0
        %2466 = vmatprep.subr.mxu0 0.0
        %2467 = vmatpush1.xpose.msra.mxu0 0.0
        %2468 = vmatprep.subr.mxu0 0.0
        %2469 = vmatpush1.xpose.msra.mxu0 0.0
        %2470 = vmatprep.subr.mxu0 0.0
        %2471 = vmatpush1.xpose.msra.mxu0 0.0
        %2472 = vmatprep.subr.mxu0 0.0
        %2473 = vmatpush1.xpose.msra.mxu0 0.0
        %2474 = vmatprep.subr.mxu0 0.0
        %2475 = vmatpush1.xpose.msra.mxu0 0.0
        %2476 = vmatprep.subr.mxu0 0.0
        %2477 = vmatpush1.xpose.msra.mxu0 0.0
        %2478 = vmatprep.subr.mxu0 0.0
        %2479 = vmatpush1.xpose.msra.mxu0 0.0
        %2480 = vmatprep.subr.mxu0 0.0
        %2481 = vmatpush1.xpose.msra.mxu0 0.0
        %2482 = vmatprep.subr.mxu0 0.0
        %2483 = vmatpush1.xpose.msra.mxu0 0.0
        %2484 = vmatprep.subr.mxu0 0.0
        %2485 = vmatpush1.xpose.msra.mxu0 0.0
        %2486 = vmatprep.subr.mxu0 0.0
        %2487 = vmatpush1.xpose.msra.mxu0 0.0
        %2488 = vmatprep.subr.mxu0 0.0
        %2489 = vmatpush1.xpose.msra.mxu0 0.0
        %2490 = vmatprep.subr.mxu0 0.0
        %2491 = vmatpush1.xpose.msra.mxu0 0.0
        %2492 = vmatprep.subr.mxu0 0.0
        %2493 = vmatpush1.xpose.msra.mxu0 0.0
        %2494 = vmatprep.subr.mxu0 0.0
        %2495 = vmatpush1.xpose.msra.mxu0 0.0
        %2496 = vmatprep.subr.mxu0 0.0
        %2497 = vmatpush1.xpose.msra.mxu0 0.0
        %2498 = vmatprep.subr.mxu0 0.0
        %2499 = vmatpush1.xpose.msra.mxu0 0.0
        %2500 = vmatprep.subr.mxu0 0.0
        %2501 = vmatpush1.xpose.msra.mxu0 0.0
        %2502 = vmatprep.subr.mxu0 0.0
        %2503 = vmatpush1.xpose.msra.mxu0 0.0
        %2504 = vmatprep.subr.mxu0 0.0
        %2505 = vmatpush1.xpose.msra.mxu0 0.0
        %2506 = vmatprep.subr.mxu0 0.0
        %2507 = vmatpush1.xpose.msra.mxu0 0.0
        %2508 = vmatprep.subr.mxu0 0.0
        %2509 = vmatpush1.xpose.msra.mxu0 0.0
        %2510 = vmatprep.subr.mxu0 0.0
        %2511 = vmatpush1.xpose.msra.mxu0 0.0
        %2512 = vmatprep.subr.mxu0 0.0
        %2513 = vmatpush1.xpose.msra.mxu0 0.0
        %2514 = vmatprep.subr.mxu0 0.0
        %2515 = vmatpush1.xpose.msra.mxu0 0.0
        %2516 = vmatprep.subr.mxu0 0.0
        %2517 = vmatpush1.xpose.msra.mxu0 0.0
        %2518 = vmatprep.subr.mxu0 0.0
        %2519 = vmatpush1.xpose.msra.mxu0 0.0
        %2520 = vmatprep.mubr.f32.mxu0 0.0
        %2521 = vmatmul.mubr.f32.gmra.mrb[0].mxu0 %v2451
        %v2522 = vpop.f32.mrb[0].mxu0
        %v2523 = vadd.f32 0.0, %v2522
        %v2524 = vpop.f32.mrb[0].mxu0
        %2525 = vdwg.mxu0
        %v2526 = vsel %vm1581, %v2295, -inf
        %2527 = vmax.xlane.f32.xlu0 %v2526
        %v2528 = vpop.xlane.xlu0 %2527
        %v2529 = vsel %vm1581, %v2371, -inf
        %2530 = vmax.xlane.f32.xlu0 %v2529
        %v2531 = vpop.xlane.xlu0 %2530
        %v2532 = vsel %vm1581, %v2447, -inf
        %2533 = vmax.xlane.f32.xlu0 %v2532
        %v2534 = vpop.xlane.xlu0 %2533
        %v2535 = vsel %vm1581, %v2523, -inf
        %2536 = vmax.xlane.f32.xlu0 %v2535
        %v2537 = vpop.xlane.xlu0 %2536
        %v2538 = vsub.f32 %v2295, %v2528
        %v2539 = vsub.f32 %v2371, %v2531
        %v2540 = vsub.f32 %v2447, %v2534
        %v2541 = vsub.f32 %v2523, %v2537
        %v2542 = vmul.f32 %v2538, 1.442695
        %v2543 = vpow.pop %v2542
        %v2544 = vmul.f32 %v2539, 1.442695
        %v2545 = vpow.pop %v2544
        %v2546 = vmul.f32 %v2540, 1.442695
        %v2547 = vpow.pop %v2546
        %v2548 = vmul.f32 %v2541, 1.442695
        %v2549 = vpow.pop %v2548
        %v2550 = vsel %vm1581, %v2543, 0.0
        %2551 = vadd.xlane.f32.xlu0 %v2550
        %v2552 = vpop.xlane.xlu0 %2551
        %v2553 = vsel %vm1581, %v2545, 0.0
        %2554 = vadd.xlane.f32.xlu0 %v2553
        %v2555 = vpop.xlane.xlu0 %2554
        %v2556 = vsel %vm1581, %v2547, 0.0
        %2557 = vadd.xlane.f32.xlu0 %v2556
        %v2558 = vpop.xlane.xlu0 %2557
        %v2559 = vsel %vm1581, %v2549, 0.0
        %2560 = vadd.xlane.f32.xlu0 %v2559
        %v2561 = vpop.xlane.xlu0 %2560
        %v2562 = vrcp.pop %v2552
        %v2563 = vrcp.pop %v2555
        %v2564 = vrcp.pop %v2558
        %v2565 = vrcp.pop %v2561
        %v2566 = vmul.f32 %v2543, %v2562
        %v2567 = vmul.f32 %v2545, %v2563
        %v2568 = vmul.f32 %v2547, %v2564
        %v2569 = vmul.f32 %v2549, %v2565
        %v2571 = vsel %vm1581, %v2566, 0
        %2573 = vmatprep.subr.mxu0 0.0
        %2574 = vmatpush1.msra.mxu0 %v1353
        %2575 = vmatprep.subr.mxu0 0.0
        %2576 = vmatpush1.msra.mxu0 0.0
        %2577 = vmatprep.subr.mxu0 0.0
        %2578 = vmatpush1.msra.mxu0 0.0
        %2579 = vmatprep.subr.mxu0 0.0
        %2580 = vmatpush1.msra.mxu0 0.0
        %2581 = vmatprep.subr.mxu0 0.0
        %2582 = vmatpush1.msra.mxu0 0.0
        %2583 = vmatprep.subr.mxu0 0.0
        %2584 = vmatpush1.msra.mxu0 0.0
        %2585 = vmatprep.subr.mxu0 0.0
        %2586 = vmatpush1.msra.mxu0 0.0
        %2587 = vmatprep.subr.mxu0 0.0
        %2588 = vmatpush1.msra.mxu0 0.0
        %2589 = vmatprep.subr.mxu0 0.0
        %2590 = vmatpush1.msra.mxu0 0.0
        %2591 = vmatprep.subr.mxu0 0.0
        %2592 = vmatpush1.msra.mxu0 0.0
        %2593 = vmatprep.subr.mxu0 0.0
        %2594 = vmatpush1.msra.mxu0 0.0
        %2595 = vmatprep.subr.mxu0 0.0
        %2596 = vmatpush1.msra.mxu0 0.0
        %2597 = vmatprep.subr.mxu0 0.0
        %2598 = vmatpush1.msra.mxu0 0.0
        %2599 = vmatprep.subr.mxu0 0.0
        %2600 = vmatpush1.msra.mxu0 0.0
        %2601 = vmatprep.subr.mxu0 0.0
        %2602 = vmatpush1.msra.mxu0 0.0
        %2603 = vmatprep.subr.mxu0 0.0
        %2604 = vmatpush1.msra.mxu0 0.0
        %2605 = vmatprep.subr.mxu0 0.0
        %2606 = vmatpush1.msra.mxu0 0.0
        %2607 = vmatprep.subr.mxu0 0.0
        %2608 = vmatpush1.msra.mxu0 0.0
        %2609 = vmatprep.subr.mxu0 0.0
        %2610 = vmatpush1.msra.mxu0 0.0
        %2611 = vmatprep.subr.mxu0 0.0
        %2612 = vmatpush1.msra.mxu0 0.0
        %2613 = vmatprep.subr.mxu0 0.0
        %2614 = vmatpush1.msra.mxu0 0.0
        %2615 = vmatprep.subr.mxu0 0.0
        %2616 = vmatpush1.msra.mxu0 0.0
        %2617 = vmatprep.subr.mxu0 0.0
        %2618 = vmatpush1.msra.mxu0 0.0
        %2619 = vmatprep.subr.mxu0 0.0
        %2620 = vmatpush1.msra.mxu0 0.0
        %2621 = vmatprep.subr.mxu0 0.0
        %2622 = vmatpush1.msra.mxu0 0.0
        %2623 = vmatprep.subr.mxu0 0.0
        %2624 = vmatpush1.msra.mxu0 0.0
        %2625 = vmatprep.subr.mxu0 0.0
        %2626 = vmatpush1.msra.mxu0 0.0
        %2627 = vmatprep.subr.mxu0 0.0
        %2628 = vmatpush1.msra.mxu0 0.0
        %2629 = vmatprep.subr.mxu0 0.0
        %2630 = vmatpush1.msra.mxu0 0.0
        %2631 = vmatprep.subr.mxu0 0.0
        %2632 = vmatpush1.msra.mxu0 0.0
        %2633 = vmatprep.subr.mxu0 0.0
        %2634 = vmatpush1.msra.mxu0 0.0
        %2635 = vmatprep.subr.mxu0 0.0
        %2636 = vmatpush1.msra.mxu0 0.0
        %2637 = vmatprep.mubr.f32.mxu0 0.0
        %2638 = vmatmul.mubr.f32.gmra.mrb[0].mxu0 %v2571
        %v2639 = vpop.f32.mrb[0].mxu0
        %v2640 = vadd.f32 0.0, %v2639
        %v2641 = vpop.f32.mrb[0].mxu0
        %2642 = vdwg.mxu0
        %v2644 = vsel %vm1581, %v2567, 0
        %2646 = vmatprep.subr.mxu0 0.0
        %2647 = vmatpush1.msra.mxu0 %v1428
        %2648 = vmatprep.subr.mxu0 0.0
        %2649 = vmatpush1.msra.mxu0 0.0
        %2650 = vmatprep.subr.mxu0 0.0
        %2651 = vmatpush1.msra.mxu0 0.0
        %2652 = vmatprep.subr.mxu0 0.0
        %2653 = vmatpush1.msra.mxu0 0.0
        %2654 = vmatprep.subr.mxu0 0.0
        %2655 = vmatpush1.msra.mxu0 0.0
        %2656 = vmatprep.subr.mxu0 0.0
        %2657 = vmatpush1.msra.mxu0 0.0
        %2658 = vmatprep.subr.mxu0 0.0
        %2659 = vmatpush1.msra.mxu0 0.0
        %2660 = vmatprep.subr.mxu0 0.0
        %2661 = vmatpush1.msra.mxu0 0.0
        %2662 = vmatprep.subr.mxu0 0.0
        %2663 = vmatpush1.msra.mxu0 0.0
        %2664 = vmatprep.subr.mxu0 0.0
        %2665 = vmatpush1.msra.mxu0 0.0
        %2666 = vmatprep.subr.mxu0 0.0
        %2667 = vmatpush1.msra.mxu0 0.0
        %2668 = vmatprep.subr.mxu0 0.0
        %2669 = vmatpush1.msra.mxu0 0.0
        %2670 = vmatprep.subr.mxu0 0.0
        %2671 = vmatpush1.msra.mxu0 0.0
        %2672 = vmatprep.subr.mxu0 0.0
        %2673 = vmatpush1.msra.mxu0 0.0
        %2674 = vmatprep.subr.mxu0 0.0
        %2675 = vmatpush1.msra.mxu0 0.0
        %2676 = vmatprep.subr.mxu0 0.0
        %2677 = vmatpush1.msra.mxu0 0.0
        %2678 = vmatprep.subr.mxu0 0.0
        %2679 = vmatpush1.msra.mxu0 0.0
        %2680 = vmatprep.subr.mxu0 0.0
        %2681 = vmatpush1.msra.mxu0 0.0
        %2682 = vmatprep.subr.mxu0 0.0
        %2683 = vmatpush1.msra.mxu0 0.0
        %2684 = vmatprep.subr.mxu0 0.0
        %2685 = vmatpush1.msra.mxu0 0.0
        %2686 = vmatprep.subr.mxu0 0.0
        %2687 = vmatpush1.msra.mxu0 0.0
        %2688 = vmatprep.subr.mxu0 0.0
        %2689 = vmatpush1.msra.mxu0 0.0
        %2690 = vmatprep.subr.mxu0 0.0
        %2691 = vmatpush1.msra.mxu0 0.0
        %2692 = vmatprep.subr.mxu0 0.0
        %2693 = vmatpush1.msra.mxu0 0.0
        %2694 = vmatprep.subr.mxu0 0.0
        %2695 = vmatpush1.msra.mxu0 0.0
        %2696 = vmatprep.subr.mxu0 0.0
        %2697 = vmatpush1.msra.mxu0 0.0
        %2698 = vmatprep.subr.mxu0 0.0
        %2699 = vmatpush1.msra.mxu0 0.0
        %2700 = vmatprep.subr.mxu0 0.0
        %2701 = vmatpush1.msra.mxu0 0.0
        %2702 = vmatprep.subr.mxu0 0.0
        %2703 = vmatpush1.msra.mxu0 0.0
        %2704 = vmatprep.subr.mxu0 0.0
        %2705 = vmatpush1.msra.mxu0 0.0
        %2706 = vmatprep.subr.mxu0 0.0
        %2707 = vmatpush1.msra.mxu0 0.0
        %2708 = vmatprep.subr.mxu0 0.0
        %2709 = vmatpush1.msra.mxu0 0.0
        %2710 = vmatprep.mubr.f32.mxu0 0.0
        %2711 = vmatmul.mubr.f32.gmra.mrb[0].mxu0 %v2644
        %v2712 = vpop.f32.mrb[0].mxu0
        %v2713 = vadd.f32 0.0, %v2712
        %v2714 = vpop.f32.mrb[0].mxu0
        %2715 = vdwg.mxu0
        %v2717 = vsel %vm1581, %v2568, 0
        %2719 = vmatprep.subr.mxu0 0.0
        %2720 = vmatpush1.msra.mxu0 %v1503
        %2721 = vmatprep.subr.mxu0 0.0
        %2722 = vmatpush1.msra.mxu0 0.0
        %2723 = vmatprep.subr.mxu0 0.0
        %2724 = vmatpush1.msra.mxu0 0.0
        %2725 = vmatprep.subr.mxu0 0.0
        %2726 = vmatpush1.msra.mxu0 0.0
        %2727 = vmatprep.subr.mxu0 0.0
        %2728 = vmatpush1.msra.mxu0 0.0
        %2729 = vmatprep.subr.mxu0 0.0
        %2730 = vmatpush1.msra.mxu0 0.0
        %2731 = vmatprep.subr.mxu0 0.0
        %2732 = vmatpush1.msra.mxu0 0.0
        %2733 = vmatprep.subr.mxu0 0.0
        %2734 = vmatpush1.msra.mxu0 0.0
        %2735 = vmatprep.subr.mxu0 0.0
        %2736 = vmatpush1.msra.mxu0 0.0
        %2737 = vmatprep.subr.mxu0 0.0
        %2738 = vmatpush1.msra.mxu0 0.0
        %2739 = vmatprep.subr.mxu0 0.0
        %2740 = vmatpush1.msra.mxu0 0.0
        %2741 = vmatprep.subr.mxu0 0.0
        %2742 = vmatpush1.msra.mxu0 0.0
        %2743 = vmatprep.subr.mxu0 0.0
        %2744 = vmatpush1.msra.mxu0 0.0
        %2745 = vmatprep.subr.mxu0 0.0
        %2746 = vmatpush1.msra.mxu0 0.0
        %2747 = vmatprep.subr.mxu0 0.0
        %2748 = vmatpush1.msra.mxu0 0.0
        %2749 = vmatprep.subr.mxu0 0.0
        %2750 = vmatpush1.msra.mxu0 0.0
        %2751 = vmatprep.subr.mxu0 0.0
        %2752 = vmatpush1.msra.mxu0 0.0
        %2753 = vmatprep.subr.mxu0 0.0
        %2754 = vmatpush1.msra.mxu0 0.0
        %2755 = vmatprep.subr.mxu0 0.0
        %2756 = vmatpush1.msra.mxu0 0.0
        %2757 = vmatprep.subr.mxu0 0.0
        %2758 = vmatpush1.msra.mxu0 0.0
        %2759 = vmatprep.subr.mxu0 0.0
        %2760 = vmatpush1.msra.mxu0 0.0
        %2761 = vmatprep.subr.mxu0 0.0
        %2762 = vmatpush1.msra.mxu0 0.0
        %2763 = vmatprep.subr.mxu0 0.0
        %2764 = vmatpush1.msra.mxu0 0.0
        %2765 = vmatprep.subr.mxu0 0.0
        %2766 = vmatpush1.msra.mxu0 0.0
        %2767 = vmatprep.subr.mxu0 0.0
        %2768 = vmatpush1.msra.mxu0 0.0
        %2769 = vmatprep.subr.mxu0 0.0
        %2770 = vmatpush1.msra.mxu0 0.0
        %2771 = vmatprep.subr.mxu0 0.0
        %2772 = vmatpush1.msra.mxu0 0.0
        %2773 = vmatprep.subr.mxu0 0.0
        %2774 = vmatpush1.msra.mxu0 0.0
        %2775 = vmatprep.subr.mxu0 0.0
        %2776 = vmatpush1.msra.mxu0 0.0
        %2777 = vmatprep.subr.mxu0 0.0
        %2778 = vmatpush1.msra.mxu0 0.0
        %2779 = vmatprep.subr.mxu0 0.0
        %2780 = vmatpush1.msra.mxu0 0.0
        %2781 = vmatprep.subr.mxu0 0.0
        %2782 = vmatpush1.msra.mxu0 0.0
        %2783 = vmatprep.mubr.f32.mxu0 0.0
        %2784 = vmatmul.mubr.f32.gmra.mrb[0].mxu0 %v2717
        %v2785 = vpop.f32.mrb[0].mxu0
        %v2786 = vadd.f32 0.0, %v2785
        %v2787 = vpop.f32.mrb[0].mxu0
        %2788 = vdwg.mxu0
        %v2790 = vsel %vm1581, %v2569, 0
        %2792 = vmatprep.subr.mxu0 0.0
        %2793 = vmatpush1.msra.mxu0 %v1578
        %2794 = vmatprep.subr.mxu0 0.0
        %2795 = vmatpush1.msra.mxu0 0.0
        %2796 = vmatprep.subr.mxu0 0.0
        %2797 = vmatpush1.msra.mxu0 0.0
        %2798 = vmatprep.subr.mxu0 0.0
        %2799 = vmatpush1.msra.mxu0 0.0
        %2800 = vmatprep.subr.mxu0 0.0
        %2801 = vmatpush1.msra.mxu0 0.0
        %2802 = vmatprep.subr.mxu0 0.0
        %2803 = vmatpush1.msra.mxu0 0.0
        %2804 = vmatprep.subr.mxu0 0.0
        %2805 = vmatpush1.msra.mxu0 0.0
        %2806 = vmatprep.subr.mxu0 0.0
        %2807 = vmatpush1.msra.mxu0 0.0
        %2808 = vmatprep.subr.mxu0 0.0
        %2809 = vmatpush1.msra.mxu0 0.0
        %2810 = vmatprep.subr.mxu0 0.0
        %2811 = vmatpush1.msra.mxu0 0.0
        %2812 = vmatprep.subr.mxu0 0.0
        %2813 = vmatpush1.msra.mxu0 0.0
        %2814 = vmatprep.subr.mxu0 0.0
        %2815 = vmatpush1.msra.mxu0 0.0
        %2816 = vmatprep.subr.mxu0 0.0
        %2817 = vmatpush1.msra.mxu0 0.0
        %2818 = vmatprep.subr.mxu0 0.0
        %2819 = vmatpush1.msra.mxu0 0.0
        %2820 = vmatprep.subr.mxu0 0.0
        %2821 = vmatpush1.msra.mxu0 0.0
        %2822 = vmatprep.subr.mxu0 0.0
        %2823 = vmatpush1.msra.mxu0 0.0
        %2824 = vmatprep.subr.mxu0 0.0
        %2825 = vmatpush1.msra.mxu0 0.0
        %2826 = vmatprep.subr.mxu0 0.0
        %2827 = vmatpush1.msra.mxu0 0.0
        %2828 = vmatprep.subr.mxu0 0.0
        %2829 = vmatpush1.msra.mxu0 0.0
        %2830 = vmatprep.subr.mxu0 0.0
        %2831 = vmatpush1.msra.mxu0 0.0
        %2832 = vmatprep.subr.mxu0 0.0
        %2833 = vmatpush1.msra.mxu0 0.0
        %2834 = vmatprep.subr.mxu0 0.0
        %2835 = vmatpush1.msra.mxu0 0.0
        %2836 = vmatprep.subr.mxu0 0.0
        %2837 = vmatpush1.msra.mxu0 0.0
        %2838 = vmatprep.subr.mxu0 0.0
        %2839 = vmatpush1.msra.mxu0 0.0
        %2840 = vmatprep.subr.mxu0 0.0
        %2841 = vmatpush1.msra.mxu0 0.0
        %2842 = vmatprep.subr.mxu0 0.0
        %2843 = vmatpush1.msra.mxu0 0.0
        %2844 = vmatprep.subr.mxu0 0.0
        %2845 = vmatpush1.msra.mxu0 0.0
        %2846 = vmatprep.subr.mxu0 0.0
        %2847 = vmatpush1.msra.mxu0 0.0
        %2848 = vmatprep.subr.mxu0 0.0
        %2849 = vmatpush1.msra.mxu0 0.0
        %2850 = vmatprep.subr.mxu0 0.0
        %2851 = vmatpush1.msra.mxu0 0.0
        %2852 = vmatprep.subr.mxu0 0.0
        %2853 = vmatpush1.msra.mxu0 0.0
        %2854 = vmatprep.subr.mxu0 0.0
        %2855 = vmatpush1.msra.mxu0 0.0
        %2856 = vmatprep.mubr.f32.mxu0 0.0
        %2857 = vmatmul.mubr.f32.gmra.mrb[0].mxu0 %v2790
        %v2858 = vpop.f32.mrb[0].mxu0
        %v2859 = vadd.f32 0.0, %v2858
        %v2860 = vpop.f32.mrb[0].mxu0
        %2861 = vdwg.mxu0
        %v2862 = vld [vmem:[%s550] sm:$0xff]
        %v2863 = vld [vmem:[%s550 + $0x8] sm:$0xff]
        %v2864 = vld [vmem:[%s550 + $0x10] sm:$0xff]
        %v2865 = vld [vmem:[%s550 + $0x18] sm:$0xff]
        %v2867 = vsel %vm1581, %v2000, 0
        %v2870 = vsel %vm1581, %v2640, 0
        %2872 = vmatprep.subr.mxu0 0.0
        %2873 = vmatpush1.msra.mxu0 %v2862
        %2874 = vmatprep.subr.mxu0 0.0
        %2875 = vmatpush1.msra.mxu0 0.0
        %2876 = vmatprep.subr.mxu0 0.0
        %2877 = vmatpush1.msra.mxu0 0.0
        %2878 = vmatprep.subr.mxu0 0.0
        %2879 = vmatpush1.msra.mxu0 0.0
        %2880 = vmatprep.subr.mxu0 0.0
        %2881 = vmatpush1.msra.mxu0 0.0
        %2882 = vmatprep.subr.mxu0 0.0
        %2883 = vmatpush1.msra.mxu0 0.0
        %2884 = vmatprep.subr.mxu0 0.0
        %2885 = vmatpush1.msra.mxu0 0.0
        %2886 = vmatprep.subr.mxu0 0.0
        %2887 = vmatpush1.msra.mxu0 0.0
        %2888 = vmatprep.subr.mxu0 0.0
        %2889 = vmatpush1.msra.mxu0 0.0
        %2890 = vmatprep.subr.mxu0 0.0
        %2891 = vmatpush1.msra.mxu0 0.0
        %2892 = vmatprep.subr.mxu0 0.0
        %2893 = vmatpush1.msra.mxu0 0.0
        %2894 = vmatprep.subr.mxu0 0.0
        %2895 = vmatpush1.msra.mxu0 0.0
        %2896 = vmatprep.subr.mxu0 0.0
        %2897 = vmatpush1.msra.mxu0 0.0
        %2898 = vmatprep.subr.mxu0 0.0
        %2899 = vmatpush1.msra.mxu0 0.0
        %2900 = vmatprep.subr.mxu0 0.0
        %2901 = vmatpush1.msra.mxu0 0.0
        %2902 = vmatprep.subr.mxu0 0.0
        %2903 = vmatpush1.msra.mxu0 0.0
        %2904 = vmatprep.subr.mxu0 0.0
        %2905 = vmatpush1.msra.mxu0 0.0
        %2906 = vmatprep.subr.mxu0 0.0
        %2907 = vmatpush1.msra.mxu0 0.0
        %2908 = vmatprep.subr.mxu0 0.0
        %2909 = vmatpush1.msra.mxu0 0.0
        %2910 = vmatprep.subr.mxu0 0.0
        %2911 = vmatpush1.msra.mxu0 0.0
        %2912 = vmatprep.subr.mxu0 0.0
        %2913 = vmatpush1.msra.mxu0 0.0
        %2914 = vmatprep.subr.mxu0 0.0
        %2915 = vmatpush1.msra.mxu0 0.0
        %2916 = vmatprep.subr.mxu0 0.0
        %2917 = vmatpush1.msra.mxu0 0.0
        %2918 = vmatprep.subr.mxu0 0.0
        %2919 = vmatpush1.msra.mxu0 0.0
        %2920 = vmatprep.subr.mxu0 0.0
        %2921 = vmatpush1.msra.mxu0 0.0
        %2922 = vmatprep.subr.mxu0 0.0
        %2923 = vmatpush1.msra.mxu0 0.0
        %2924 = vmatprep.subr.mxu0 0.0
        %2925 = vmatpush1.msra.mxu0 0.0
        %2926 = vmatprep.subr.mxu0 0.0
        %2927 = vmatpush1.msra.mxu0 0.0
        %2928 = vmatprep.subr.mxu0 0.0
        %2929 = vmatpush1.msra.mxu0 0.0
        %2930 = vmatprep.subr.mxu0 0.0
        %2931 = vmatpush1.msra.mxu0 0.0
        %2932 = vmatprep.subr.mxu0 0.0
        %2933 = vmatpush1.msra.mxu0 0.0
        %2934 = vmatprep.subr.mxu0 0.0
        %2935 = vmatpush1.msra.mxu0 0.0
        %2936 = vmatprep.mubr.f32.mxu0 0.0
        %2937 = vmatmul.mubr.f32.gmra.mrb[0].mxu0 %v2867
        %v2938 = vpop.f32.mrb[0].mxu0
        %v2939 = vadd.f32 0.0, %v2938
        %v2940 = vpop.f32.mrb[0].mxu0
        %2941 = vmatprep.mubr.f32.mxu0 0.0
        %2942 = vmatmul.mubr.f32.gmra.mrb[0].mxu0 %v2870
        %v2943 = vpop.f32.mrb[0].mxu0
        %v2944 = vadd.f32 0.0, %v2943
        %v2945 = vpop.f32.mrb[0].mxu0
        %2946 = vdwg.mxu0
        %v2948 = vsel %vm1581, %v2073, 0
        %v2951 = vsel %vm1581, %v2713, 0
        %2953 = vmatprep.subr.mxu0 0.0
        %2954 = vmatpush1.msra.mxu0 %v2863
        %2955 = vmatprep.subr.mxu0 0.0
        %2956 = vmatpush1.msra.mxu0 0.0
        %2957 = vmatprep.subr.mxu0 0.0
        %2958 = vmatpush1.msra.mxu0 0.0
        %2959 = vmatprep.subr.mxu0 0.0
        %2960 = vmatpush1.msra.mxu0 0.0
        %2961 = vmatprep.subr.mxu0 0.0
        %2962 = vmatpush1.msra.mxu0 0.0
        %2963 = vmatprep.subr.mxu0 0.0
        %2964 = vmatpush1.msra.mxu0 0.0
        %2965 = vmatprep.subr.mxu0 0.0
        %2966 = vmatpush1.msra.mxu0 0.0
        %2967 = vmatprep.subr.mxu0 0.0
        %2968 = vmatpush1.msra.mxu0 0.0
        %2969 = vmatprep.subr.mxu0 0.0
        %2970 = vmatpush1.msra.mxu0 0.0
        %2971 = vmatprep.subr.mxu0 0.0
        %2972 = vmatpush1.msra.mxu0 0.0
        %2973 = vmatprep.subr.mxu0 0.0
        %2974 = vmatpush1.msra.mxu0 0.0
        %2975 = vmatprep.subr.mxu0 0.0
        %2976 = vmatpush1.msra.mxu0 0.0
        %2977 = vmatprep.subr.mxu0 0.0
        %2978 = vmatpush1.msra.mxu0 0.0
        %2979 = vmatprep.subr.mxu0 0.0
        %2980 = vmatpush1.msra.mxu0 0.0
        %2981 = vmatprep.subr.mxu0 0.0
        %2982 = vmatpush1.msra.mxu0 0.0
        %2983 = vmatprep.subr.mxu0 0.0
        %2984 = vmatpush1.msra.mxu0 0.0
        %2985 = vmatprep.subr.mxu0 0.0
        %2986 = vmatpush1.msra.mxu0 0.0
        %2987 = vmatprep.subr.mxu0 0.0
        %2988 = vmatpush1.msra.mxu0 0.0
        %2989 = vmatprep.subr.mxu0 0.0
        %2990 = vmatpush1.msra.mxu0 0.0
        %2991 = vmatprep.subr.mxu0 0.0
        %2992 = vmatpush1.msra.mxu0 0.0
        %2993 = vmatprep.subr.mxu0 0.0
        %2994 = vmatpush1.msra.mxu0 0.0
        %2995 = vmatprep.subr.mxu0 0.0
        %2996 = vmatpush1.msra.mxu0 0.0
        %2997 = vmatprep.subr.mxu0 0.0
        %2998 = vmatpush1.msra.mxu0 0.0
        %2999 = vmatprep.subr.mxu0 0.0
        %3000 = vmatpush1.msra.mxu0 0.0
        %3001 = vmatprep.subr.mxu0 0.0
        %3002 = vmatpush1.msra.mxu0 0.0
        %3003 = vmatprep.subr.mxu0 0.0
        %3004 = vmatpush1.msra.mxu0 0.0
        %3005 = vmatprep.subr.mxu0 0.0
        %3006 = vmatpush1.msra.mxu0 0.0
        %3007 = vmatprep.subr.mxu0 0.0
        %3008 = vmatpush1.msra.mxu0 0.0
        %3009 = vmatprep.subr.mxu0 0.0
        %3010 = vmatpush1.msra.mxu0 0.0
        %3011 = vmatprep.subr.mxu0 0.0
        %3012 = vmatpush1.msra.mxu0 0.0
        %3013 = vmatprep.subr.mxu0 0.0
        %3014 = vmatpush1.msra.mxu0 0.0
        %3015 = vmatprep.subr.mxu0 0.0
        %3016 = vmatpush1.msra.mxu0 0.0
        %3017 = vmatprep.mubr.f32.mxu0 0.0
        %3018 = vmatmul.mubr.f32.gmra.mrb[0].mxu0 %v2948
        %v3019 = vpop.f32.mrb[0].mxu0
        %v3020 = vadd.f32 0.0, %v3019
        %v3021 = vpop.f32.mrb[0].mxu0
        %3022 = vmatprep.mubr.f32.mxu0 0.0
        %3023 = vmatmul.mubr.f32.gmra.mrb[0].mxu0 %v2951
        %v3024 = vpop.f32.mrb[0].mxu0
        %v3025 = vadd.f32 0.0, %v3024
        %v3026 = vpop.f32.mrb[0].mxu0
        %3027 = vdwg.mxu0
        %v3029 = vsel %vm1581, %v2146, 0
        %v3032 = vsel %vm1581, %v2786, 0
        %3034 = vmatprep.subr.mxu0 0.0
        %3035 = vmatpush1.msra.mxu0 %v2864
        %3036 = vmatprep.subr.mxu0 0.0
        %3037 = vmatpush1.msra.mxu0 0.0
        %3038 = vmatprep.subr.mxu0 0.0
        %3039 = vmatpush1.msra.mxu0 0.0
        %3040 = vmatprep.subr.mxu0 0.0
        %3041 = vmatpush1.msra.mxu0 0.0
        %3042 = vmatprep.subr.mxu0 0.0
        %3043 = vmatpush1.msra.mxu0 0.0
        %3044 = vmatprep.subr.mxu0 0.0
        %3045 = vmatpush1.msra.mxu0 0.0
        %3046 = vmatprep.subr.mxu0 0.0
        %3047 = vmatpush1.msra.mxu0 0.0
        %3048 = vmatprep.subr.mxu0 0.0
        %3049 = vmatpush1.msra.mxu0 0.0
        %3050 = vmatprep.subr.mxu0 0.0
        %3051 = vmatpush1.msra.mxu0 0.0
        %3052 = vmatprep.subr.mxu0 0.0
        %3053 = vmatpush1.msra.mxu0 0.0
        %3054 = vmatprep.subr.mxu0 0.0
        %3055 = vmatpush1.msra.mxu0 0.0
        %3056 = vmatprep.subr.mxu0 0.0
        %3057 = vmatpush1.msra.mxu0 0.0
        %3058 = vmatprep.subr.mxu0 0.0
        %3059 = vmatpush1.msra.mxu0 0.0
        %3060 = vmatprep.subr.mxu0 0.0
        %3061 = vmatpush1.msra.mxu0 0.0
        %3062 = vmatprep.subr.mxu0 0.0
        %3063 = vmatpush1.msra.mxu0 0.0
        %3064 = vmatprep.subr.mxu0 0.0
        %3065 = vmatpush1.msra.mxu0 0.0
        %3066 = vmatprep.subr.mxu0 0.0
        %3067 = vmatpush1.msra.mxu0 0.0
        %3068 = vmatprep.subr.mxu0 0.0
        %3069 = vmatpush1.msra.mxu0 0.0
        %3070 = vmatprep.subr.mxu0 0.0
        %3071 = vmatpush1.msra.mxu0 0.0
        %3072 = vmatprep.subr.mxu0 0.0
        %3073 = vmatpush1.msra.mxu0 0.0
        %3074 = vmatprep.subr.mxu0 0.0
        %3075 = vmatpush1.msra.mxu0 0.0
        %3076 = vmatprep.subr.mxu0 0.0
        %3077 = vmatpush1.msra.mxu0 0.0
        %3078 = vmatprep.subr.mxu0 0.0
        %3079 = vmatpush1.msra.mxu0 0.0
        %3080 = vmatprep.subr.mxu0 0.0
        %3081 = vmatpush1.msra.mxu0 0.0
        %3082 = vmatprep.subr.mxu0 0.0
        %3083 = vmatpush1.msra.mxu0 0.0
        %3084 = vmatprep.subr.mxu0 0.0
        %3085 = vmatpush1.msra.mxu0 0.0
        %3086 = vmatprep.subr.mxu0 0.0
        %3087 = vmatpush1.msra.mxu0 0.0
        %3088 = vmatprep.subr.mxu0 0.0
        %3089 = vmatpush1.msra.mxu0 0.0
        %3090 = vmatprep.subr.mxu0 0.0
        %3091 = vmatpush1.msra.mxu0 0.0
        %3092 = vmatprep.subr.mxu0 0.0
        %3093 = vmatpush1.msra.mxu0 0.0
        %3094 = vmatprep.subr.mxu0 0.0
        %3095 = vmatpush1.msra.mxu0 0.0
        %3096 = vmatprep.subr.mxu0 0.0
        %3097 = vmatpush1.msra.mxu0 0.0
        %3098 = vmatprep.mubr.f32.mxu0 0.0
        %3099 = vmatmul.mubr.f32.gmra.mrb[0].mxu0 %v3029
        %v3100 = vpop.f32.mrb[0].mxu0
        %v3101 = vadd.f32 0.0, %v3100
        %v3102 = vpop.f32.mrb[0].mxu0
        %3103 = vmatprep.mubr.f32.mxu0 0.0
        %3104 = vmatmul.mubr.f32.gmra.mrb[0].mxu0 %v3032
        %v3105 = vpop.f32.mrb[0].mxu0
        %v3106 = vadd.f32 0.0, %v3105
        %v3107 = vpop.f32.mrb[0].mxu0
        %3108 = vdwg.mxu0
        %v3110 = vsel %vm1581, %v2219, 0
        %v3113 = vsel %vm1581, %v2859, 0
        %3115 = vmatprep.subr.mxu0 0.0
        %3116 = vmatpush1.msra.mxu0 %v2865
        %3117 = vmatprep.subr.mxu0 0.0
        %3118 = vmatpush1.msra.mxu0 0.0
        %3119 = vmatprep.subr.mxu0 0.0
        %3120 = vmatpush1.msra.mxu0 0.0
        %3121 = vmatprep.subr.mxu0 0.0
        %3122 = vmatpush1.msra.mxu0 0.0
        %3123 = vmatprep.subr.mxu0 0.0
        %3124 = vmatpush1.msra.mxu0 0.0
        %3125 = vmatprep.subr.mxu0 0.0
        %3126 = vmatpush1.msra.mxu0 0.0
        %3127 = vmatprep.subr.mxu0 0.0
        %3128 = vmatpush1.msra.mxu0 0.0
        %3129 = vmatprep.subr.mxu0 0.0
        %3130 = vmatpush1.msra.mxu0 0.0
        %3131 = vmatprep.subr.mxu0 0.0
        %3132 = vmatpush1.msra.mxu0 0.0
        %3133 = vmatprep.subr.mxu0 0.0
        %3134 = vmatpush1.msra.mxu0 0.0
        %3135 = vmatprep.subr.mxu0 0.0
        %3136 = vmatpush1.msra.mxu0 0.0
        %3137 = vmatprep.subr.mxu0 0.0
        %3138 = vmatpush1.msra.mxu0 0.0
        %3139 = vmatprep.subr.mxu0 0.0
        %3140 = vmatpush1.msra.mxu0 0.0
        %3141 = vmatprep.subr.mxu0 0.0
        %3142 = vmatpush1.msra.mxu0 0.0
        %3143 = vmatprep.subr.mxu0 0.0
        %3144 = vmatpush1.msra.mxu0 0.0
        %3145 = vmatprep.subr.mxu0 0.0
        %3146 = vmatpush1.msra.mxu0 0.0
        %3147 = vmatprep.subr.mxu0 0.0
        %3148 = vmatpush1.msra.mxu0 0.0
        %3149 = vmatprep.subr.mxu0 0.0
        %3150 = vmatpush1.msra.mxu0 0.0
        %3151 = vmatprep.subr.mxu0 0.0
        %3152 = vmatpush1.msra.mxu0 0.0
        %3153 = vmatprep.subr.mxu0 0.0
        %3154 = vmatpush1.msra.mxu0 0.0
        %3155 = vmatprep.subr.mxu0 0.0
        %3156 = vmatpush1.msra.mxu0 0.0
        %3157 = vmatprep.subr.mxu0 0.0
        %3158 = vmatpush1.msra.mxu0 0.0
        %3159 = vmatprep.subr.mxu0 0.0
        %3160 = vmatpush1.msra.mxu0 0.0
        %3161 = vmatprep.subr.mxu0 0.0
        %3162 = vmatpush1.msra.mxu0 0.0
        %3163 = vmatprep.subr.mxu0 0.0
        %3164 = vmatpush1.msra.mxu0 0.0
        %3165 = vmatprep.subr.mxu0 0.0
        %3166 = vmatpush1.msra.mxu0 0.0
        %3167 = vmatprep.subr.mxu0 0.0
        %3168 = vmatpush1.msra.mxu0 0.0
        %3169 = vmatprep.subr.mxu0 0.0
        %3170 = vmatpush1.msra.mxu0 0.0
        %3171 = vmatprep.subr.mxu0 0.0
        %3172 = vmatpush1.msra.mxu0 0.0
        %3173 = vmatprep.subr.mxu0 0.0
        %3174 = vmatpush1.msra.mxu0 0.0
        %3175 = vmatprep.subr.mxu0 0.0
        %3176 = vmatpush1.msra.mxu0 0.0
        %3177 = vmatprep.subr.mxu0 0.0
        %3178 = vmatpush1.msra.mxu0 0.0
        %3179 = vmatprep.mubr.f32.mxu0 0.0
        %3180 = vmatmul.mubr.f32.gmra.mrb[0].mxu0 %v3110
        %v3181 = vpop.f32.mrb[0].mxu0
        %v3182 = vadd.f32 0.0, %v3181
        %v3183 = vpop.f32.mrb[0].mxu0
        %3184 = vmatprep.mubr.f32.mxu0 0.0
        %3185 = vmatmul.mubr.f32.gmra.mrb[0].mxu0 %v3113
        %v3186 = vpop.f32.mrb[0].mxu0
        %v3187 = vadd.f32 0.0, %v3186
        %v3188 = vpop.f32.mrb[0].mxu0
        %3189 = vdwg.mxu0
        %v3190 = vsel %vm581, %v2939, 0.0
        %v3191 = vsel %vm581, %v3020, 0.0
        %v3192 = vadd.f32 %v3190, %v3191
        %v3193 = vsel %vm581, %v3101, 0.0
        %v3194 = vadd.f32 %v3192, %v3193
        %v3195 = vsel %vm581, %v3182, 0.0
        %v3196 = vadd.f32 %v3194, %v3195
        %v3197 = vsel %vm581, %v2944, 0.0
        %v3198 = vsel %vm581, %v3025, 0.0
        %v3199 = vadd.f32 %v3197, %v3198
        %v3200 = vsel %vm581, %v3106, 0.0
        %v3201 = vadd.f32 %v3199, %v3200
        %v3202 = vsel %vm581, %v3187, 0.0
        %v3203 = vadd.f32 %v3201, %v3202
        %v3204 = vld [vmem:[%s553] sm:$0x1]
        %v3206 = vlaneseq
        %v3207 = vshrl.u32 %v3206, 7
        %v3208 = vsub.s32 0, %v3207
        %v3209 = vrot.slane %v3204, %v3208
        %v3211 = vadd.f32 %v3196, %v3209
        %v3212 = vadd.f32 %v3203, %v3209
        %v3213 = vadd.f32 %v579, %v3211
        %v3214 = vadd.f32 %v580, %v3212
        %v3215 = vld [vmem:[%s558] sm:$0xff]
        %v3216 = vld [vmem:[%s558 + $0x8] sm:$0xff]
        %v3217 = vld [vmem:[%s558 + $0x10] sm:$0xff]
        %v3218 = vld [vmem:[%s558 + $0x18] sm:$0xff]
        %v3219 = vld [vmem:[%s561] sm:$0x1]
        %v3221 = vlaneseq
        %v3222 = vshrl.u32 %v3221, 7
        %v3223 = vsub.s32 0, %v3222
        %v3224 = vrot.slane %v3219, %v3223
        %v3227 = vsel %vm581, %v3213, 0
        %v3230 = vsel %vm581, %v3214, 0
        %3232 = vmatprep.subr.mxu0 0.0
        %3233 = vmatpush1.msra.mxu0 %v3215
        %3234 = vmatprep.subr.mxu0 0.0
        %3235 = vmatpush1.msra.mxu0 %v3216
        %3236 = vmatprep.subr.mxu0 0.0
        %3237 = vmatpush1.msra.mxu0 %v3217
        %3238 = vmatprep.subr.mxu0 0.0
        %3239 = vmatpush1.msra.mxu0 %v3218
        %3240 = vmatprep.subr.mxu0 0.0
        %3241 = vmatpush1.msra.mxu0 0.0
        %3242 = vmatprep.subr.mxu0 0.0
        %3243 = vmatpush1.msra.mxu0 0.0
        %3244 = vmatprep.subr.mxu0 0.0
        %3245 = vmatpush1.msra.mxu0 0.0
        %3246 = vmatprep.subr.mxu0 0.0
        %3247 = vmatpush1.msra.mxu0 0.0
        %3248 = vmatprep.subr.mxu0 0.0
        %3249 = vmatpush1.msra.mxu0 0.0
        %3250 = vmatprep.subr.mxu0 0.0
        %3251 = vmatpush1.msra.mxu0 0.0
        %3252 = vmatprep.subr.mxu0 0.0
        %3253 = vmatpush1.msra.mxu0 0.0
        %3254 = vmatprep.subr.mxu0 0.0
        %3255 = vmatpush1.msra.mxu0 0.0
        %3256 = vmatprep.subr.mxu0 0.0
        %3257 = vmatpush1.msra.mxu0 0.0
        %3258 = vmatprep.subr.mxu0 0.0
        %3259 = vmatpush1.msra.mxu0 0.0
        %3260 = vmatprep.subr.mxu0 0.0
        %3261 = vmatpush1.msra.mxu0 0.0
        %3262 = vmatprep.subr.mxu0 0.0
        %3263 = vmatpush1.msra.mxu0 0.0
        %3264 = vmatprep.subr.mxu0 0.0
        %3265 = vmatpush1.msra.mxu0 0.0
        %3266 = vmatprep.subr.mxu0 0.0
        %3267 = vmatpush1.msra.mxu0 0.0
        %3268 = vmatprep.subr.mxu0 0.0
        %3269 = vmatpush1.msra.mxu0 0.0
        %3270 = vmatprep.subr.mxu0 0.0
        %3271 = vmatpush1.msra.mxu0 0.0
        %3272 = vmatprep.subr.mxu0 0.0
        %3273 = vmatpush1.msra.mxu0 0.0
        %3274 = vmatprep.subr.mxu0 0.0
        %3275 = vmatpush1.msra.mxu0 0.0
        %3276 = vmatprep.subr.mxu0 0.0
        %3277 = vmatpush1.msra.mxu0 0.0
        %3278 = vmatprep.subr.mxu0 0.0
        %3279 = vmatpush1.msra.mxu0 0.0
        %3280 = vmatprep.subr.mxu0 0.0
        %3281 = vmatpush1.msra.mxu0 0.0
        %3282 = vmatprep.subr.mxu0 0.0
        %3283 = vmatpush1.msra.mxu0 0.0
        %3284 = vmatprep.subr.mxu0 0.0
        %3285 = vmatpush1.msra.mxu0 0.0
        %3286 = vmatprep.subr.mxu0 0.0
        %3287 = vmatpush1.msra.mxu0 0.0
        %3288 = vmatprep.subr.mxu0 0.0
        %3289 = vmatpush1.msra.mxu0 0.0
        %3290 = vmatprep.subr.mxu0 0.0
        %3291 = vmatpush1.msra.mxu0 0.0
        %3292 = vmatprep.subr.mxu0 0.0
        %3293 = vmatpush1.msra.mxu0 0.0
        %3294 = vmatprep.subr.mxu0 0.0
        %3295 = vmatpush1.msra.mxu0 0.0
        %3296 = vmatprep.mubr.f32.mxu0 0.0
        %3297 = vmatmul.mubr.f32.gmra.mrb[0].mxu0 %v3227
        %v3298 = vpop.f32.mrb[0].mxu0
        %v3299 = vadd.f32 %v3224, %v3298
        %v3300 = vpop.f32.mrb[0].mxu0
        %3301 = vmatprep.mubr.f32.mxu0 0.0
        %3302 = vmatmul.mubr.f32.gmra.mrb[0].mxu0 %v3230
        %v3303 = vpop.f32.mrb[0].mxu0
        %v3304 = vadd.f32 %v3224, %v3303
        %v3305 = vpop.f32.mrb[0].mxu0
        %3306 = vdwg.mxu0
        %v3307 = vmul.f32 %v3299, 0.5
        %v3308 = vmul.f32 %v3304, 0.5
        %v3309 = vmul.f32 %v3299, 0.70710677
        %v3310 = vmul.f32 %v3304, 0.70710677
        %v3311 = verf.f32.pop %v3309
        %v3312 = verf.f32.pop %v3310
        %v3313 = vadd.f32 %v3311, 1.0
        %v3314 = vadd.f32 %v3312, 1.0
        %v3315 = vmul.f32 %v3307, %v3313
        %v3316 = vmul.f32 %v3308, %v3314
        %v3317 = vld [vmem:[%s566] sm:$0xff]
        %v3318 = vld [vmem:[%s566 + $0x8] sm:$0xff]
        %v3319 = vld [vmem:[%s566 + $0x10] sm:$0xff]
        %v3320 = vld [vmem:[%s566 + $0x18] sm:$0xff]
        %v3321 = vld [vmem:[%s566 + $0x20] sm:$0xff]
        %v3322 = vld [vmem:[%s566 + $0x28] sm:$0xff]
        %v3323 = vld [vmem:[%s566 + $0x30] sm:$0xff]
        %v3324 = vld [vmem:[%s566 + $0x38] sm:$0xff]
        %v3325 = vld [vmem:[%s569] sm:$0x1]
        %v3327 = vlaneseq
        %v3328 = vshrl.u32 %v3327, 7
        %v3329 = vsub.s32 0, %v3328
        %v3330 = vrot.slane %v3325, %v3329
        %vm3332 = vcmask 523264
        %v3334 = vsel %vm3332, %v3315, 0
        %v3337 = vsel %vm3332, %v3316, 0
        %3339 = vmatprep.subr.mxu0 0.0
        %3340 = vmatpush1.msra.mxu0 %v3317
        %3341 = vmatprep.subr.mxu0 0.0
        %3342 = vmatpush1.msra.mxu0 %v3318
        %3343 = vmatprep.subr.mxu0 0.0
        %3344 = vmatpush1.msra.mxu0 %v3319
        %3345 = vmatprep.subr.mxu0 0.0
        %3346 = vmatpush1.msra.mxu0 %v3320
        %3347 = vmatprep.subr.mxu0 0.0
        %3348 = vmatpush1.msra.mxu0 %v3321
        %3349 = vmatprep.subr.mxu0 0.0
        %3350 = vmatpush1.msra.mxu0 %v3322
        %3351 = vmatprep.subr.mxu0 0.0
        %3352 = vmatpush1.msra.mxu0 %v3323
        %3353 = vmatprep.subr.mxu0 0.0
        %3354 = vmatpush1.msra.mxu0 %v3324
        %3355 = vmatprep.subr.mxu0 0.0
        %3356 = vmatpush1.msra.mxu0 0.0
        %3357 = vmatprep.subr.mxu0 0.0
        %3358 = vmatpush1.msra.mxu0 0.0
        %3359 = vmatprep.subr.mxu0 0.0
        %3360 = vmatpush1.msra.mxu0 0.0
        %3361 = vmatprep.subr.mxu0 0.0
        %3362 = vmatpush1.msra.mxu0 0.0
        %3363 = vmatprep.subr.mxu0 0.0
        %3364 = vmatpush1.msra.mxu0 0.0
        %3365 = vmatprep.subr.mxu0 0.0
        %3366 = vmatpush1.msra.mxu0 0.0
        %3367 = vmatprep.subr.mxu0 0.0
        %3368 = vmatpush1.msra.mxu0 0.0
        %3369 = vmatprep.subr.mxu0 0.0
        %3370 = vmatpush1.msra.mxu0 0.0
        %3371 = vmatprep.subr.mxu0 0.0
        %3372 = vmatpush1.msra.mxu0 0.0
        %3373 = vmatprep.subr.mxu0 0.0
        %3374 = vmatpush1.msra.mxu0 0.0
        %3375 = vmatprep.subr.mxu0 0.0
        %3376 = vmatpush1.msra.mxu0 0.0
        %3377 = vmatprep.subr.mxu0 0.0
        %3378 = vmatpush1.msra.mxu0 0.0
        %3379 = vmatprep.subr.mxu0 0.0
        %3380 = vmatpush1.msra.mxu0 0.0
        %3381 = vmatprep.subr.mxu0 0.0
        %3382 = vmatpush1.msra.mxu0 0.0
        %3383 = vmatprep.subr.mxu0 0.0
        %3384 = vmatpush1.msra.mxu0 0.0
        %3385 = vmatprep.subr.mxu0 0.0
        %3386 = vmatpush1.msra.mxu0 0.0
        %3387 = vmatprep.subr.mxu0 0.0
        %3388 = vmatpush1.msra.mxu0 0.0
        %3389 = vmatprep.subr.mxu0 0.0
        %3390 = vmatpush1.msra.mxu0 0.0
        %3391 = vmatprep.subr.mxu0 0.0
        %3392 = vmatpush1.msra.mxu0 0.0
        %3393 = vmatprep.subr.mxu0 0.0
        %3394 = vmatpush1.msra.mxu0 0.0
        %3395 = vmatprep.subr.mxu0 0.0
        %3396 = vmatpush1.msra.mxu0 0.0
        %3397 = vmatprep.subr.mxu0 0.0
        %3398 = vmatpush1.msra.mxu0 0.0
        %3399 = vmatprep.subr.mxu0 0.0
        %3400 = vmatpush1.msra.mxu0 0.0
        %3401 = vmatprep.subr.mxu0 0.0
        %3402 = vmatpush1.msra.mxu0 0.0
        %3403 = vmatprep.mubr.f32.mxu0 0.0
        %3404 = vmatmul.mubr.f32.gmra.mrb[0].mxu0 %v3334
        %v3405 = vpop.f32.mrb[0].mxu0
        %v3406 = vadd.f32 %v3330, %v3405
        %v3407 = vpop.f32.mrb[0].mxu0
        %3408 = vmatprep.mubr.f32.mxu0 0.0
        %3409 = vmatmul.mubr.f32.gmra.mrb[0].mxu0 %v3337
        %v3410 = vpop.f32.mrb[0].mxu0
        %v3411 = vadd.f32 %v3330, %v3410
        %v3412 = vpop.f32.mrb[0].mxu0
        %3413 = vdwg.mxu0
        %v3414 = vadd.f32 %v3213, %v3406
        %v3415 = vadd.f32 %v3214, %v3411
        %3416 = vst.msk [vmem:[#allocation2] sm:$0xff] %vm581, %v3414
        %3417 = vst.msk [vmem:[#allocation2 + $0x8] sm:$0xff] %vm581, %v3415
        %p3418 = scmp.eq.s32.totalorder %s24, 1
        // Predicated region
        $region73: #{tpu_custom_call.1} parent=67 // pred_check
          %p3419 = pneg %p3418
        $region74: #{tpu_custom_call.1} parent=67 // pred_check_branch
          %3421 = sbr.rel (%p3419) target = $region76
        $region75: #{tpu_custom_call.1} parent=67 // pred_region
          %3422 = vst.msk [vmem:[#allocation3] sm:$0xff] %vm581, %v3414
          %3423 = vst.msk [vmem:[#allocation3 + $0x8] sm:$0xff] %vm581, %v3415
        $region76: #{tpu_custom_call.1} parent=67 // pred_fallthru
          _
        // Predicated region
        $region77: #{tpu_custom_call.1} parent=67 // pred_check
          %p3424 = pneg %p344
        $region78: #{tpu_custom_call.1} parent=67 // pred_check_branch
          %3426 = sbr.rel (%p3424) target = $region80
        $region79: #{tpu_custom_call.1} parent=67 // pred_region
          %s3428 = ssub.s32 256, 256
          %3429 = vsyncadd [#allocation4], %s3428
          %s3430 = sshll.u32 [#allocation3], 4
          %s3431 = int_to_ptr.vmem [resolvable:$true] %s3430
          %3436 = dma.vmem_to_hbm [thread:$0]  %s3431, 256, %s12, [#allocation4], 128, 128, 8
        $region80: #{tpu_custom_call.1} parent=67 // pred_fallthru
          _
        // Predicated region
        $region81: #{tpu_custom_call.1} parent=67 // pred_check
          %p3437 = pneg %p344
        $region82: #{tpu_custom_call.1} parent=67 // pred_check_branch
          %3439 = sbr.rel (%p3437) target = $region84
        $region83: #{tpu_custom_call.1} parent=67 // pred_region
          %3440 = dma.done [#allocation4], 256
        $region84: #{tpu_custom_call.1} parent=67 // pred_fallthru
          _
      $region68: #{tpu_custom_call.1} parent=5 // pred_fallthru
        _
      %p3441 = scmp.le.s32.totalorder 2, %s19
      // Predicated region
      $region85: #{tpu_custom_call.1} parent=5 // pred_check
        %p3442 = pneg %p3441
      $region86: #{tpu_custom_call.1} parent=5 // pred_check_branch
        %3444 = sbr.rel (%p3442) target = $region88
      $region87: #{tpu_custom_call.1} parent=5 // pred_region
        %s3445 = ssub.s32 %s19, 2
      $region88: #{tpu_custom_call.1} parent=5 // pred_fallthru
        _
    $region6: #{tpu_custom_call.1} parent=1 // loop_footer
      %s23 = sadd.s32 1, %s19
    $region7: #{tpu_custom_call.1} parent=1 // loop_footer_branch
      %18 = sbr.rel target = $region3
    $region8: #{tpu_custom_call.1} parent=1 // loop_exit
      _
    %3446 = vsyncpa [#allocation4], 1
    %s3447 = scalar_lea.sflag [#allocation4], 1
    %3448 = vsyncpa %s3447, 1

</llo_original>
